<compile_context>
chip_gen: v7x
topology: tpu7x:2x2x1
jax: 0.10.0
libtpu: 0.0.40
codegen_flags: <defaults>
</compile_context>

<pallas_src>
import functools
import math

import jax
import jax.numpy as jnp
from jax.experimental import pallas as pl
from jax.experimental.pallas import tpu as pltpu  # noqa: F401  (kept for TPU backend symmetry)

# ---------------- small, forward-consistent config ----------------
VOCAB = 100            # token ids drawn from [0, VOCAB)
VOCAB_PAD = 128        # embedding table padded to a lane-aligned row count
MAX_POS = 16
HIDDEN = 32            # backbone hidden_size (small stand-in for xlm-roberta-large)
NUM_HEADS = 2
HEAD_DIM = HIDDEN // NUM_HEADS
INTERMEDIATE = 4 * HIDDEN
NUM_LAYERS = 2
COMBINED_TOKENS_SIZE = 512
NUM_CLASSES = 7
LN_EPS = 1e-5

INV_SQRT2 = 1.0 / math.sqrt(2.0)
ATTN_SCALE = 1.0 / math.sqrt(HEAD_DIM)


# ---------------- in-kernel helpers (operate on values, not refs) ----------------
def _gelu(x):
    # exact GELU (matches torch.nn.GELU() default); erf goes to the EUP slot.
    return 0.5 * x * (1.0 + jax.lax.erf(x * INV_SQRT2))


def _layernorm(x, g, b, eps=LN_EPS):
    mu = jnp.mean(x, axis=-1, keepdims=True)
    var = jnp.mean((x - mu) ** 2, axis=-1, keepdims=True)
    return (x - mu) * jax.lax.rsqrt(var + eps) * g + b


# ---------------- one fused kernel: embeddings + backbone + pooler + head ----------------
def _fused_model_kernel(ids_ref, mask_ref,
                        wemb_ref, pemb_ref, temb_ref,
                        embg_ref, embb_ref,
                        wqkv_ref, bqkv_ref, wo_ref, bo_ref,
                        ln1g_ref, ln1b_ref,
                        wi_ref, bi_ref, wf_ref, bf_ref,
                        ln2g_ref, ln2b_ref,
                        poolw_ref, poolb_ref,
                        fc1w_ref, fc1b_ref, fc2w_ref, fc2b_ref,
                        logits_ref, *, batch, seq):
    H, NH, HD, L = HIDDEN, NUM_HEADS, HEAD_DIM, NUM_LAYERS
    BS = batch * seq

    # ---- embedding lookup as a one-hot MXU matmul (in-kernel gather) ----
    ids = ids_ref[...]                                                     # (B*S, 1) int32
    vocab_iota = jax.lax.broadcasted_iota(jnp.int32, (BS, VOCAB_PAD), 1)
    one_hot = jnp.where(vocab_iota == ids, 1.0, 0.0)                       # (B*S, VOCAB_PAD) f32
    tok = jnp.dot(one_hot, wemb_ref[...], preferred_element_type=jnp.float32)  # (B*S, H)

    # position + token-type embeddings, then embedding LayerNorm
    emb = (tok.reshape(batch, seq, H)
           + pemb_ref[0:seq, :][None, :, :]
           + temb_ref[...][None, :, :])
    h = _layernorm(emb, embg_ref[...], embb_ref[...]).reshape(BS, H)

    # additive attention-mask bias (0 for keep, -1e9 for pad), computed in-kernel
    bias = (1.0 - mask_ref[...].astype(jnp.float32)) * -1e9                # (B, S)

    # ---- transformer layers (static unroll; all weights resident in VMEM) ----
    for l in range(L):
        # fused QKV projection: one (B*S, H) @ (H, 3H) matmul
        qkv = jnp.dot(h, wqkv_ref[l], preferred_element_type=jnp.float32) + bqkv_ref[l]
        q = qkv[:, 0 * H:1 * H]
        k = qkv[:, 1 * H:2 * H]
        v = qkv[:, 2 * H:3 * H]

        # attention over all batches/heads, short static unrolled loops
        ctx_rows = []
        for b in range(batch):
            qb = q[b * seq:(b + 1) * seq, :]               # (S, H)
            kb = k[b * seq:(b + 1) * seq, :]
            vb = v[b * seq:(b + 1) * seq, :]
            bias_b = bias[b:b + 1, :]                      # (1, S), broadcast over query rows
            head_ctx = []
            for hh in range(NH):
                qh = qb[:, hh * HD:(hh + 1) * HD]          # (S, D)
                kh = kb[:, hh * HD:(hh + 1) * HD]
                vh = vb[:, hh * HD:(hh + 1) * HD]
                s = jnp.dot(qh, kh.T, preferred_element_type=jnp.float32) * ATTN_SCALE
                s = s + bias_b
                m = jnp.max(s, axis=-1, keepdims=True)
                p = jnp.exp(s - m)
                p = p * pl.reciprocal(jnp.sum(p, axis=-1, keepdims=True), approx=True)
                head_ctx.append(jnp.dot(p, vh, preferred_element_type=jnp.float32))
            ctx_rows.append(jnp.concatenate(head_ctx, axis=-1))     # (S, H)
        ctx = jnp.concatenate(ctx_rows, axis=0)                     # (B*S, H)

        # attention output projection + residual + LN
        attn_out = jnp.dot(ctx, wo_ref[l], preferred_element_type=jnp.float32) + bo_ref[l]
        h = _layernorm(attn_out + h, ln1g_ref[l], ln1b_ref[l])

        # FFN: dense -> GELU -> dense + residual + LN
        inter = _gelu(jnp.dot(h, wi_ref[l], preferred_element_type=jnp.float32) + bi_ref[l])
        ffn_out = jnp.dot(inter, wf_ref[l], preferred_element_type=jnp.float32) + bf_ref[l]
        h = _layernorm(ffn_out + h, ln2g_ref[l], ln2b_ref[l])

    # ---- pooler on the CLS token of every batch row (rows 0, S, 2S, ...) ----
    cls = jnp.concatenate([h[b * seq:b * seq + 1, :] for b in range(batch)], axis=0)  # (B, H)
    pooled = jnp.tanh(
        jnp.dot(cls, poolw_ref[...], preferred_element_type=jnp.float32) + poolb_ref[...])

    # ---- classification head: fc1 -> GELU -> fc2 ----
    hid = _gelu(
        jnp.dot(pooled, fc1w_ref[...], preferred_element_type=jnp.float32) + fc1b_ref[...])
    logits = jnp.dot(hid, fc2w_ref[...], preferred_element_type=jnp.float32) + fc2b_ref[...]

    logits_ref[...] = logits.astype(logits_ref.dtype)


# ---------------- deterministic parameter init (stand-in for pretrained weights) ----------------
def init_params(seed=42):
    key = jax.random.PRNGKey(seed)

    def nrm(k, shape):
        return (0.02 * jax.random.normal(k, shape)).astype(jnp.float32)

    ks = iter(jax.random.split(key, 16))
    H, I, L = HIDDEN, INTERMEDIATE, NUM_LAYERS
    # Per-layer weights are stacked along a leading layer axis so the whole
    # backbone is one pallas_call with every weight resident in VMEM.
    params = {
        "word_emb": nrm(next(ks), (VOCAB_PAD, H)),   # rows >= VOCAB are never selected
        "pos_emb": nrm(next(ks), (MAX_POS, H)),
        "type_emb": nrm(next(ks), (1, H)),
        "emb_ln_g": jnp.ones((1, H), jnp.float32),
        "emb_ln_b": jnp.zeros((1, H), jnp.float32),
        "wqkv": nrm(next(ks), (L, H, 3 * H)),
        "bqkv": jnp.zeros((L, 1, 3 * H), jnp.float32),
        "wo": nrm(next(ks), (L, H, H)),
        "bo": jnp.zeros((L, 1, H), jnp.float32),
        "ln1_g": jnp.ones((L, 1, H), jnp.float32),
        "ln1_b": jnp.zeros((L, 1, H), jnp.float32),
        "wi": nrm(next(ks), (L, H, I)),
        "bi": jnp.zeros((L, 1, I), jnp.float32),
        "wf": nrm(next(ks), (L, I, H)),
        "bf": jnp.zeros((L, 1, H), jnp.float32),
        "ln2_g": jnp.ones((L, 1, H), jnp.float32),
        "ln2_b": jnp.zeros((L, 1, H), jnp.float32),
        "pool_w": nrm(next(ks), (H, H)),
        "pool_b": jnp.zeros((1, H), jnp.float32),
        "fc1_w": nrm(next(ks), (H, COMBINED_TOKENS_SIZE)),
        "fc1_b": jnp.zeros((1, COMBINED_TOKENS_SIZE), jnp.float32),
        "fc2_w": nrm(next(ks), (COMBINED_TOKENS_SIZE, NUM_CLASSES)),
        "fc2_b": jnp.zeros((1, NUM_CLASSES), jnp.float32),
    }
    return params


# ---------------- model forward ----------------
def model_forward(params, input_ids, attention_mask):
    B, S = input_ids.shape
    ids = input_ids.reshape(B * S, 1).astype(jnp.int32)   # metadata-only reshape

    kernel = functools.partial(_fused_model_kernel, batch=B, seq=S)
    logits = pl.pallas_call(
        kernel,
        out_shape=jax.ShapeDtypeStruct((B, NUM_CLASSES), jnp.float32),
    )(ids, attention_mask.astype(jnp.int32),
      params["word_emb"], params["pos_emb"], params["type_emb"],
      params["emb_ln_g"], params["emb_ln_b"],
      params["wqkv"], params["bqkv"], params["wo"], params["bo"],
      params["ln1_g"], params["ln1_b"],
      params["wi"], params["bi"], params["wf"], params["bf"],
      params["ln2_g"], params["ln2_b"],
      params["pool_w"], params["pool_b"],
      params["fc1_w"], params["fc1_b"], params["fc2_w"], params["fc2_b"])

    # The original forward() runs the backbone + head twice on identical inputs;
    # at inference the second pass is bit-identical (deterministic, no dropout),
    # so the single fused result is shared for both outputs.
    return logits, logits


if __name__ == "__main__":
    B, S = 2, 8
    key = jax.random.PRNGKey(0)
    kid, _ = jax.random.split(key)
    input_ids = jax.random.randint(kid, (B, S), 0, VOCAB, dtype=jnp.int32)
    attention_mask = jnp.array(
        [[1, 1, 1, 1, 1, 1, 1, 1],
         [1, 1, 1, 1, 1, 0, 0, 0]], dtype=jnp.int32)

    params = init_params(seed=42)

    fwd = jax.jit(model_forward)
    logits1, logits2 = fwd(params, input_ids, attention_mask)
    jax.block_until_ready((logits1, logits2))

    assert logits1.shape == (B, NUM_CLASSES) and logits2.shape == (B, NUM_CLASSES)
    print("KERNEL_OK")
</pallas_src>

<mosaic_0001>
module attributes {stable_mosaic.version = 11 : i64} {
  func.func @_fused_model_kernel(%arg0: memref<16x1xi32, #tpu.memory_space<vmem>>, %arg1: memref<2x8xi32, #tpu.memory_space<vmem>>, %arg2: memref<128x32xf32, #tpu.memory_space<vmem>>, %arg3: memref<16x32xf32, #tpu.memory_space<vmem>>, %arg4: memref<1x32xf32, #tpu.memory_space<vmem>>, %arg5: memref<1x32xf32, #tpu.memory_space<vmem>>, %arg6: memref<1x32xf32, #tpu.memory_space<vmem>>, %arg7: memref<2x32x96xf32, #tpu.memory_space<vmem>>, %arg8: memref<2x1x96xf32, #tpu.memory_space<vmem>>, %arg9: memref<2x32x32xf32, #tpu.memory_space<vmem>>, %arg10: memref<2x1x32xf32, #tpu.memory_space<vmem>>, %arg11: memref<2x1x32xf32, #tpu.memory_space<vmem>>, %arg12: memref<2x1x32xf32, #tpu.memory_space<vmem>>, %arg13: memref<2x32x128xf32, #tpu.memory_space<vmem>>, %arg14: memref<2x1x128xf32, #tpu.memory_space<vmem>>, %arg15: memref<2x128x32xf32, #tpu.memory_space<vmem>>, %arg16: memref<2x1x32xf32, #tpu.memory_space<vmem>>, %arg17: memref<2x1x32xf32, #tpu.memory_space<vmem>>, %arg18: memref<2x1x32xf32, #tpu.memory_space<vmem>>, %arg19: memref<32x32xf32, #tpu.memory_space<vmem>>, %arg20: memref<1x32xf32, #tpu.memory_space<vmem>>, %arg21: memref<32x512xf32, #tpu.memory_space<vmem>>, %arg22: memref<1x512xf32, #tpu.memory_space<vmem>>, %arg23: memref<512x7xf32, #tpu.memory_space<vmem>>, %arg24: memref<1x7xf32, #tpu.memory_space<vmem>>, %arg25: memref<2x7xf32, #tpu.memory_space<vmem>>) attributes {dimension_semantics = [], scalar_prefetch = 0 : i64, scratch_operands = 0 : i64, tpu.core_type = #tpu.core_type<tc>} {
    %c0 = arith.constant 0 : index
    %c0_0 = arith.constant 0 : index
    %0 = vector.load %arg0[%c0, %c0_0] : memref<16x1xi32, #tpu.memory_space<vmem>>, vector<16x1xi32>
    %1 = tpu.iota {dimensions = array<i32: 1>} : vector<16x128xi32>
    %2 = vector.broadcast %0 : vector<16x1xi32> to vector<16x128xi32>
    %3 = arith.cmpi eq, %1, %2 : vector<16x128xi32>
    %cst = arith.constant 1.000000e+00 : f32
    %cst_1 = arith.constant 0.000000e+00 : f32
    %4 = vector.broadcast %cst : f32 to vector<16x128xf32>
    %5 = vector.broadcast %cst_1 : f32 to vector<16x128xf32>
    %6 = arith.select %3, %4, %5 : vector<16x128xi1>, vector<16x128xf32>
    %c0_2 = arith.constant 0 : index
    %c0_3 = arith.constant 0 : index
    %7 = vector.load %arg2[%c0_2, %c0_3] : memref<128x32xf32, #tpu.memory_space<vmem>>, vector<128x32xf32>
    %cst_4 = arith.constant dense<0.000000e+00> : vector<16x32xf32>
    %8 = tpu.matmul %6, %7, %cst_4 {dimension_numbers = #tpu.dot_dimension_numbers<[1], [0], [0], [1], [0, 0, 1, 1], [], []>} : vector<16x128xf32>, vector<128x32xf32>, vector<16x32xf32> -> vector<16x32xf32>
    %9 = vector.shape_cast %8 : vector<16x32xf32> to vector<2x8x32xf32>
    %c0_5 = arith.constant 0 : index
    %c0_6 = arith.constant 0 : index
    %10 = vector.load %arg3[%c0_5, %c0_6] : memref<16x32xf32, #tpu.memory_space<vmem>>, vector<8x32xf32>
    %11 = vector.shape_cast %10 : vector<8x32xf32> to vector<1x8x32xf32>
    %12 = vector.broadcast %11 : vector<1x8x32xf32> to vector<2x8x32xf32>
    %13 = arith.addf %9, %12 : vector<2x8x32xf32>
    %c0_7 = arith.constant 0 : index
    %c0_8 = arith.constant 0 : index
    %14 = vector.load %arg4[%c0_7, %c0_8] : memref<1x32xf32, #tpu.memory_space<vmem>>, vector<1x32xf32>
    %15 = vector.shape_cast %14 : vector<1x32xf32> to vector<1x1x32xf32>
    %16 = vector.broadcast %15 : vector<1x1x32xf32> to vector<2x8x32xf32>
    %17 = arith.addf %13, %16 : vector<2x8x32xf32>
    %c0_9 = arith.constant 0 : index
    %c0_10 = arith.constant 0 : index
    %18 = vector.load %arg5[%c0_9, %c0_10] : memref<1x32xf32, #tpu.memory_space<vmem>>, vector<1x32xf32>
    %c0_11 = arith.constant 0 : index
    %c0_12 = arith.constant 0 : index
    %19 = vector.load %arg6[%c0_11, %c0_12] : memref<1x32xf32, #tpu.memory_space<vmem>>, vector<1x32xf32>
    %cst_13 = arith.constant dense<0.000000e+00> : vector<2x8xf32>
    %20 = vector.multi_reduction <add>, %17, %cst_13 [2] : vector<2x8x32xf32> to vector<2x8xf32>
    %21 = vector.shape_cast %20 : vector<2x8xf32> to vector<2x8x1xf32>
    %cst_14 = arith.constant 3.200000e+01 : f32
    %22 = vector.broadcast %cst_14 : f32 to vector<2x8x1xf32>
    %23 = arith.divf %21, %22 : vector<2x8x1xf32>
    %24 = vector.broadcast %23 : vector<2x8x1xf32> to vector<2x8x32xf32>
    %25 = arith.subf %17, %24 : vector<2x8x32xf32>
    %26 = arith.mulf %25, %25 : vector<2x8x32xf32>
    %cst_15 = arith.constant dense<0.000000e+00> : vector<2x8xf32>
    %27 = vector.multi_reduction <add>, %26, %cst_15 [2] : vector<2x8x32xf32> to vector<2x8xf32>
    %28 = vector.shape_cast %27 : vector<2x8xf32> to vector<2x8x1xf32>
    %cst_16 = arith.constant 3.200000e+01 : f32
    %29 = vector.broadcast %cst_16 : f32 to vector<2x8x1xf32>
    %30 = arith.divf %28, %29 : vector<2x8x1xf32>
    %31 = vector.broadcast %23 : vector<2x8x1xf32> to vector<2x8x32xf32>
    %32 = arith.subf %17, %31 : vector<2x8x32xf32>
    %cst_17 = arith.constant 9.99999974E-6 : f32
    %33 = vector.broadcast %cst_17 : f32 to vector<2x8x1xf32>
    %34 = arith.addf %30, %33 : vector<2x8x1xf32>
    %35 = math.rsqrt %34 : vector<2x8x1xf32>
    %36 = vector.broadcast %35 : vector<2x8x1xf32> to vector<2x8x32xf32>
    %37 = arith.mulf %32, %36 : vector<2x8x32xf32>
    %38 = vector.shape_cast %18 : vector<1x32xf32> to vector<1x1x32xf32>
    %39 = vector.broadcast %38 : vector<1x1x32xf32> to vector<2x8x32xf32>
    %40 = arith.mulf %37, %39 : vector<2x8x32xf32>
    %41 = vector.shape_cast %19 : vector<1x32xf32> to vector<1x1x32xf32>
    %42 = vector.broadcast %41 : vector<1x1x32xf32> to vector<2x8x32xf32>
    %43 = arith.addf %40, %42 : vector<2x8x32xf32>
    %44 = vector.shape_cast %43 : vector<2x8x32xf32> to vector<16x32xf32>
    %c0_18 = arith.constant 0 : index
    %c0_19 = arith.constant 0 : index
    %45 = vector.load %arg1[%c0_18, %c0_19] : memref<2x8xi32, #tpu.memory_space<vmem>>, vector<2x8xi32>
    %46 = arith.sitofp %45 : vector<2x8xi32> to vector<2x8xf32>
    %cst_20 = arith.constant 1.000000e+00 : f32
    %47 = vector.broadcast %cst_20 : f32 to vector<2x8xf32>
    %48 = arith.subf %47, %46 : vector<2x8xf32>
    %cst_21 = arith.constant -1.000000e+09 : f32
    %49 = vector.broadcast %cst_21 : f32 to vector<2x8xf32>
    %50 = arith.mulf %48, %49 : vector<2x8xf32>
    %c0_22 = arith.constant 0 : index
    %c0_23 = arith.constant 0 : index
    %c0_24 = arith.constant 0 : index
    %51 = vector.load %arg7[%c0_22, %c0_23, %c0_24] : memref<2x32x96xf32, #tpu.memory_space<vmem>>, vector<1x32x96xf32>
    %52 = vector.shape_cast %51 : vector<1x32x96xf32> to vector<32x96xf32>
    %cst_25 = arith.constant dense<0.000000e+00> : vector<16x96xf32>
    %53 = tpu.matmul %44, %52, %cst_25 {dimension_numbers = #tpu.dot_dimension_numbers<[1], [0], [0], [1], [0, 0, 1, 1], [], []>} : vector<16x32xf32>, vector<32x96xf32>, vector<16x96xf32> -> vector<16x96xf32>
    %c0_26 = arith.constant 0 : index
    %c0_27 = arith.constant 0 : index
    %c0_28 = arith.constant 0 : index
    %54 = vector.load %arg8[%c0_26, %c0_27, %c0_28] : memref<2x1x96xf32, #tpu.memory_space<vmem>>, vector<1x1x96xf32>
    %55 = vector.shape_cast %54 : vector<1x1x96xf32> to vector<1x96xf32>
    %56 = vector.broadcast %55 : vector<1x96xf32> to vector<16x96xf32>
    %57 = arith.addf %53, %56 : vector<16x96xf32>
    %58 = vector.extract_strided_slice %57 {offsets = [0, 0], sizes = [16, 32], strides = [1, 1]} : vector<16x96xf32> to vector<16x32xf32>
    %59 = vector.extract_strided_slice %57 {offsets = [0, 32], sizes = [16, 32], strides = [1, 1]} : vector<16x96xf32> to vector<16x32xf32>
    %60 = vector.extract_strided_slice %57 {offsets = [0, 64], sizes = [16, 32], strides = [1, 1]} : vector<16x96xf32> to vector<16x32xf32>
    %61 = vector.extract_strided_slice %58 {offsets = [0, 0], sizes = [8, 32], strides = [1, 1]} : vector<16x32xf32> to vector<8x32xf32>
    %62 = vector.extract_strided_slice %59 {offsets = [0, 0], sizes = [8, 32], strides = [1, 1]} : vector<16x32xf32> to vector<8x32xf32>
    %63 = vector.extract_strided_slice %60 {offsets = [0, 0], sizes = [8, 32], strides = [1, 1]} : vector<16x32xf32> to vector<8x32xf32>
    %64 = vector.extract_strided_slice %50 {offsets = [0, 0], sizes = [1, 8], strides = [1, 1]} : vector<2x8xf32> to vector<1x8xf32>
    %65 = vector.extract_strided_slice %61 {offsets = [0, 0], sizes = [8, 16], strides = [1, 1]} : vector<8x32xf32> to vector<8x16xf32>
    %66 = vector.extract_strided_slice %62 {offsets = [0, 0], sizes = [8, 16], strides = [1, 1]} : vector<8x32xf32> to vector<8x16xf32>
    %67 = vector.extract_strided_slice %63 {offsets = [0, 0], sizes = [8, 16], strides = [1, 1]} : vector<8x32xf32> to vector<8x16xf32>
    %68 = tpu.transpose %66, [1, 0] : vector<8x16xf32> -> vector<16x8xf32>
    %cst_29 = arith.constant dense<0.000000e+00> : vector<8x8xf32>
    %69 = tpu.matmul %65, %68, %cst_29 {dimension_numbers = #tpu.dot_dimension_numbers<[1], [0], [0], [1], [0, 0, 1, 1], [], []>} : vector<8x16xf32>, vector<16x8xf32>, vector<8x8xf32> -> vector<8x8xf32>
    %cst_30 = arith.constant 2.500000e-01 : f32
    %70 = vector.broadcast %cst_30 : f32 to vector<8x8xf32>
    %71 = arith.mulf %69, %70 : vector<8x8xf32>
    %72 = vector.broadcast %64 : vector<1x8xf32> to vector<8x8xf32>
    %73 = arith.addf %71, %72 : vector<8x8xf32>
    %cst_31 = arith.constant dense<0xFF800000> : vector<8xf32>
    %74 = vector.multi_reduction <maximumf>, %73, %cst_31 [1] : vector<8x8xf32> to vector<8xf32>
    %75 = vector.shape_cast %74 : vector<8xf32> to vector<8x1xf32>
    %76 = vector.broadcast %75 : vector<8x1xf32> to vector<8x8xf32>
    %77 = arith.subf %73, %76 : vector<8x8xf32>
    %78 = math.exp %77 : vector<8x8xf32>
    %cst_32 = arith.constant dense<0.000000e+00> : vector<8xf32>
    %79 = vector.multi_reduction <add>, %78, %cst_32 [1] : vector<8x8xf32> to vector<8xf32>
    %80 = vector.shape_cast %79 : vector<8xf32> to vector<8x1xf32>
    %81 = tpu.reciprocal %80 {approx = true} : vector<8x1xf32> -> vector<8x1xf32>
    %82 = vector.broadcast %81 : vector<8x1xf32> to vector<8x8xf32>
    %83 = arith.mulf %78, %82 : vector<8x8xf32>
    %cst_33 = arith.constant dense<0.000000e+00> : vector<8x16xf32>
    %84 = tpu.matmul %83, %67, %cst_33 {dimension_numbers = #tpu.dot_dimension_numbers<[1], [0], [0], [1], [0, 0, 1, 1], [], []>} : vector<8x8xf32>, vector<8x16xf32>, vector<8x16xf32> -> vector<8x16xf32>
    %85 = vector.extract_strided_slice %61 {offsets = [0, 16], sizes = [8, 16], strides = [1, 1]} : vector<8x32xf32> to vector<8x16xf32>
    %86 = vector.extract_strided_slice %62 {offsets = [0, 16], sizes = [8, 16], strides = [1, 1]} : vector<8x32xf32> to vector<8x16xf32>
    %87 = vector.extract_strided_slice %63 {offsets = [0, 16], sizes = [8, 16], strides = [1, 1]} : vector<8x32xf32> to vector<8x16xf32>
    %88 = tpu.transpose %86, [1, 0] : vector<8x16xf32> -> vector<16x8xf32>
    %cst_34 = arith.constant dense<0.000000e+00> : vector<8x8xf32>
    %89 = tpu.matmul %85, %88, %cst_34 {dimension_numbers = #tpu.dot_dimension_numbers<[1], [0], [0], [1], [0, 0, 1, 1], [], []>} : vector<8x16xf32>, vector<16x8xf32>, vector<8x8xf32> -> vector<8x8xf32>
    %cst_35 = arith.constant 2.500000e-01 : f32
    %90 = vector.broadcast %cst_35 : f32 to vector<8x8xf32>
    %91 = arith.mulf %89, %90 : vector<8x8xf32>
    %92 = vector.broadcast %64 : vector<1x8xf32> to vector<8x8xf32>
    %93 = arith.addf %91, %92 : vector<8x8xf32>
    %cst_36 = arith.constant dense<0xFF800000> : vector<8xf32>
    %94 = vector.multi_reduction <maximumf>, %93, %cst_36 [1] : vector<8x8xf32> to vector<8xf32>
    %95 = vector.shape_cast %94 : vector<8xf32> to vector<8x1xf32>
    %96 = vector.broadcast %95 : vector<8x1xf32> to vector<8x8xf32>
    %97 = arith.subf %93, %96 : vector<8x8xf32>
    %98 = math.exp %97 : vector<8x8xf32>
    %cst_37 = arith.constant dense<0.000000e+00> : vector<8xf32>
    %99 = vector.multi_reduction <add>, %98, %cst_37 [1] : vector<8x8xf32> to vector<8xf32>
    %100 = vector.shape_cast %99 : vector<8xf32> to vector<8x1xf32>
    %101 = tpu.reciprocal %100 {approx = true} : vector<8x1xf32> -> vector<8x1xf32>
    %102 = vector.broadcast %101 : vector<8x1xf32> to vector<8x8xf32>
    %103 = arith.mulf %98, %102 : vector<8x8xf32>
    %cst_38 = arith.constant dense<0.000000e+00> : vector<8x16xf32>
    %104 = tpu.matmul %103, %87, %cst_38 {dimension_numbers = #tpu.dot_dimension_numbers<[1], [0], [0], [1], [0, 0, 1, 1], [], []>} : vector<8x8xf32>, vector<8x16xf32>, vector<8x16xf32> -> vector<8x16xf32>
    %105 = tpu.concatenate %84, %104 in 1 : vector<8x16xf32>, vector<8x16xf32> -> vector<8x32xf32>
    %106 = vector.extract_strided_slice %58 {offsets = [8, 0], sizes = [8, 32], strides = [1, 1]} : vector<16x32xf32> to vector<8x32xf32>
    %107 = vector.extract_strided_slice %59 {offsets = [8, 0], sizes = [8, 32], strides = [1, 1]} : vector<16x32xf32> to vector<8x32xf32>
    %108 = vector.extract_strided_slice %60 {offsets = [8, 0], sizes = [8, 32], strides = [1, 1]} : vector<16x32xf32> to vector<8x32xf32>
    %109 = vector.extract_strided_slice %50 {offsets = [1, 0], sizes = [1, 8], strides = [1, 1]} : vector<2x8xf32> to vector<1x8xf32>
    %110 = vector.extract_strided_slice %106 {offsets = [0, 0], sizes = [8, 16], strides = [1, 1]} : vector<8x32xf32> to vector<8x16xf32>
    %111 = vector.extract_strided_slice %107 {offsets = [0, 0], sizes = [8, 16], strides = [1, 1]} : vector<8x32xf32> to vector<8x16xf32>
    %112 = vector.extract_strided_slice %108 {offsets = [0, 0], sizes = [8, 16], strides = [1, 1]} : vector<8x32xf32> to vector<8x16xf32>
    %113 = tpu.transpose %111, [1, 0] : vector<8x16xf32> -> vector<16x8xf32>
    %cst_39 = arith.constant dense<0.000000e+00> : vector<8x8xf32>
    %114 = tpu.matmul %110, %113, %cst_39 {dimension_numbers = #tpu.dot_dimension_numbers<[1], [0], [0], [1], [0, 0, 1, 1], [], []>} : vector<8x16xf32>, vector<16x8xf32>, vector<8x8xf32> -> vector<8x8xf32>
    %cst_40 = arith.constant 2.500000e-01 : f32
    %115 = vector.broadcast %cst_40 : f32 to vector<8x8xf32>
    %116 = arith.mulf %114, %115 : vector<8x8xf32>
    %117 = vector.broadcast %109 : vector<1x8xf32> to vector<8x8xf32>
    %118 = arith.addf %116, %117 : vector<8x8xf32>
    %cst_41 = arith.constant dense<0xFF800000> : vector<8xf32>
    %119 = vector.multi_reduction <maximumf>, %118, %cst_41 [1] : vector<8x8xf32> to vector<8xf32>
    %120 = vector.shape_cast %119 : vector<8xf32> to vector<8x1xf32>
    %121 = vector.broadcast %120 : vector<8x1xf32> to vector<8x8xf32>
    %122 = arith.subf %118, %121 : vector<8x8xf32>
    %123 = math.exp %122 : vector<8x8xf32>
    %cst_42 = arith.constant dense<0.000000e+00> : vector<8xf32>
    %124 = vector.multi_reduction <add>, %123, %cst_42 [1] : vector<8x8xf32> to vector<8xf32>
    %125 = vector.shape_cast %124 : vector<8xf32> to vector<8x1xf32>
    %126 = tpu.reciprocal %125 {approx = true} : vector<8x1xf32> -> vector<8x1xf32>
    %127 = vector.broadcast %126 : vector<8x1xf32> to vector<8x8xf32>
    %128 = arith.mulf %123, %127 : vector<8x8xf32>
    %cst_43 = arith.constant dense<0.000000e+00> : vector<8x16xf32>
    %129 = tpu.matmul %128, %112, %cst_43 {dimension_numbers = #tpu.dot_dimension_numbers<[1], [0], [0], [1], [0, 0, 1, 1], [], []>} : vector<8x8xf32>, vector<8x16xf32>, vector<8x16xf32> -> vector<8x16xf32>
    %130 = vector.extract_strided_slice %106 {offsets = [0, 16], sizes = [8, 16], strides = [1, 1]} : vector<8x32xf32> to vector<8x16xf32>
    %131 = vector.extract_strided_slice %107 {offsets = [0, 16], sizes = [8, 16], strides = [1, 1]} : vector<8x32xf32> to vector<8x16xf32>
    %132 = vector.extract_strided_slice %108 {offsets = [0, 16], sizes = [8, 16], strides = [1, 1]} : vector<8x32xf32> to vector<8x16xf32>
    %133 = tpu.transpose %131, [1, 0] : vector<8x16xf32> -> vector<16x8xf32>
    %cst_44 = arith.constant dense<0.000000e+00> : vector<8x8xf32>
    %134 = tpu.matmul %130, %133, %cst_44 {dimension_numbers = #tpu.dot_dimension_numbers<[1], [0], [0], [1], [0, 0, 1, 1], [], []>} : vector<8x16xf32>, vector<16x8xf32>, vector<8x8xf32> -> vector<8x8xf32>
    %cst_45 = arith.constant 2.500000e-01 : f32
    %135 = vector.broadcast %cst_45 : f32 to vector<8x8xf32>
    %136 = arith.mulf %134, %135 : vector<8x8xf32>
    %137 = vector.broadcast %109 : vector<1x8xf32> to vector<8x8xf32>
    %138 = arith.addf %136, %137 : vector<8x8xf32>
    %cst_46 = arith.constant dense<0xFF800000> : vector<8xf32>
    %139 = vector.multi_reduction <maximumf>, %138, %cst_46 [1] : vector<8x8xf32> to vector<8xf32>
    %140 = vector.shape_cast %139 : vector<8xf32> to vector<8x1xf32>
    %141 = vector.broadcast %140 : vector<8x1xf32> to vector<8x8xf32>
    %142 = arith.subf %138, %141 : vector<8x8xf32>
    %143 = math.exp %142 : vector<8x8xf32>
    %cst_47 = arith.constant dense<0.000000e+00> : vector<8xf32>
    %144 = vector.multi_reduction <add>, %143, %cst_47 [1] : vector<8x8xf32> to vector<8xf32>
    %145 = vector.shape_cast %144 : vector<8xf32> to vector<8x1xf32>
    %146 = tpu.reciprocal %145 {approx = true} : vector<8x1xf32> -> vector<8x1xf32>
    %147 = vector.broadcast %146 : vector<8x1xf32> to vector<8x8xf32>
    %148 = arith.mulf %143, %147 : vector<8x8xf32>
    %cst_48 = arith.constant dense<0.000000e+00> : vector<8x16xf32>
    %149 = tpu.matmul %148, %132, %cst_48 {dimension_numbers = #tpu.dot_dimension_numbers<[1], [0], [0], [1], [0, 0, 1, 1], [], []>} : vector<8x8xf32>, vector<8x16xf32>, vector<8x16xf32> -> vector<8x16xf32>
    %150 = tpu.concatenate %129, %149 in 1 : vector<8x16xf32>, vector<8x16xf32> -> vector<8x32xf32>
    %151 = tpu.concatenate %105, %150 in 0 : vector<8x32xf32>, vector<8x32xf32> -> vector<16x32xf32>
    %c0_49 = arith.constant 0 : index
    %c0_50 = arith.constant 0 : index
    %c0_51 = arith.constant 0 : index
    %152 = vector.load %arg9[%c0_49, %c0_50, %c0_51] : memref<2x32x32xf32, #tpu.memory_space<vmem>>, vector<1x32x32xf32>
    %153 = vector.shape_cast %152 : vector<1x32x32xf32> to vector<32x32xf32>
    %cst_52 = arith.constant dense<0.000000e+00> : vector<16x32xf32>
    %154 = tpu.matmul %151, %153, %cst_52 {dimension_numbers = #tpu.dot_dimension_numbers<[1], [0], [0], [1], [0, 0, 1, 1], [], []>} : vector<16x32xf32>, vector<32x32xf32>, vector<16x32xf32> -> vector<16x32xf32>
    %c0_53 = arith.constant 0 : index
    %c0_54 = arith.constant 0 : index
    %c0_55 = arith.constant 0 : index
    %155 = vector.load %arg10[%c0_53, %c0_54, %c0_55] : memref<2x1x32xf32, #tpu.memory_space<vmem>>, vector<1x1x32xf32>
    %156 = vector.shape_cast %155 : vector<1x1x32xf32> to vector<1x32xf32>
    %157 = vector.broadcast %156 : vector<1x32xf32> to vector<16x32xf32>
    %158 = arith.addf %154, %157 : vector<16x32xf32>
    %159 = arith.addf %158, %44 : vector<16x32xf32>
    %c0_56 = arith.constant 0 : index
    %c0_57 = arith.constant 0 : index
    %c0_58 = arith.constant 0 : index
    %160 = vector.load %arg11[%c0_56, %c0_57, %c0_58] : memref<2x1x32xf32, #tpu.memory_space<vmem>>, vector<1x1x32xf32>
    %161 = vector.shape_cast %160 : vector<1x1x32xf32> to vector<1x32xf32>
    %c0_59 = arith.constant 0 : index
    %c0_60 = arith.constant 0 : index
    %c0_61 = arith.constant 0 : index
    %162 = vector.load %arg12[%c0_59, %c0_60, %c0_61] : memref<2x1x32xf32, #tpu.memory_space<vmem>>, vector<1x1x32xf32>
    %163 = vector.shape_cast %162 : vector<1x1x32xf32> to vector<1x32xf32>
    %cst_62 = arith.constant dense<0.000000e+00> : vector<16xf32>
    %164 = vector.multi_reduction <add>, %159, %cst_62 [1] : vector<16x32xf32> to vector<16xf32>
    %165 = vector.shape_cast %164 : vector<16xf32> to vector<16x1xf32>
    %cst_63 = arith.constant 3.200000e+01 : f32
    %166 = vector.broadcast %cst_63 : f32 to vector<16x1xf32>
    %167 = arith.divf %165, %166 : vector<16x1xf32>
    %168 = vector.broadcast %167 : vector<16x1xf32> to vector<16x32xf32>
    %169 = arith.subf %159, %168 : vector<16x32xf32>
    %170 = arith.mulf %169, %169 : vector<16x32xf32>
    %cst_64 = arith.constant dense<0.000000e+00> : vector<16xf32>
    %171 = vector.multi_reduction <add>, %170, %cst_64 [1] : vector<16x32xf32> to vector<16xf32>
    %172 = vector.shape_cast %171 : vector<16xf32> to vector<16x1xf32>
    %cst_65 = arith.constant 3.200000e+01 : f32
    %173 = vector.broadcast %cst_65 : f32 to vector<16x1xf32>
    %174 = arith.divf %172, %173 : vector<16x1xf32>
    %175 = vector.broadcast %167 : vector<16x1xf32> to vector<16x32xf32>
    %176 = arith.subf %159, %175 : vector<16x32xf32>
    %cst_66 = arith.constant 9.99999974E-6 : f32
    %177 = vector.broadcast %cst_66 : f32 to vector<16x1xf32>
    %178 = arith.addf %174, %177 : vector<16x1xf32>
    %179 = math.rsqrt %178 : vector<16x1xf32>
    %180 = vector.broadcast %179 : vector<16x1xf32> to vector<16x32xf32>
    %181 = arith.mulf %176, %180 : vector<16x32xf32>
    %182 = vector.broadcast %161 : vector<1x32xf32> to vector<16x32xf32>
    %183 = arith.mulf %181, %182 : vector<16x32xf32>
    %184 = vector.broadcast %163 : vector<1x32xf32> to vector<16x32xf32>
    %185 = arith.addf %183, %184 : vector<16x32xf32>
    %c0_67 = arith.constant 0 : index
    %c0_68 = arith.constant 0 : index
    %c0_69 = arith.constant 0 : index
    %186 = vector.load %arg13[%c0_67, %c0_68, %c0_69] : memref<2x32x128xf32, #tpu.memory_space<vmem>>, vector<1x32x128xf32>
    %187 = vector.shape_cast %186 : vector<1x32x128xf32> to vector<32x128xf32>
    %cst_70 = arith.constant dense<0.000000e+00> : vector<16x128xf32>
    %188 = tpu.matmul %185, %187, %cst_70 {dimension_numbers = #tpu.dot_dimension_numbers<[1], [0], [0], [1], [0, 0, 1, 1], [], []>} : vector<16x32xf32>, vector<32x128xf32>, vector<16x128xf32> -> vector<16x128xf32>
    %c0_71 = arith.constant 0 : index
    %c0_72 = arith.constant 0 : index
    %c0_73 = arith.constant 0 : index
    %189 = vector.load %arg14[%c0_71, %c0_72, %c0_73] : memref<2x1x128xf32, #tpu.memory_space<vmem>>, vector<1x1x128xf32>
    %190 = vector.shape_cast %189 : vector<1x1x128xf32> to vector<1x128xf32>
    %191 = vector.broadcast %190 : vector<1x128xf32> to vector<16x128xf32>
    %192 = arith.addf %188, %191 : vector<16x128xf32>
    %cst_74 = arith.constant 5.000000e-01 : f32
    %193 = vector.broadcast %cst_74 : f32 to vector<16x128xf32>
    %194 = arith.mulf %193, %192 : vector<16x128xf32>
    %cst_75 = arith.constant 0.707106769 : f32
    %195 = vector.broadcast %cst_75 : f32 to vector<16x128xf32>
    %196 = arith.mulf %192, %195 : vector<16x128xf32>
    %197 = math.erf %196 : vector<16x128xf32>
    %cst_76 = arith.constant 1.000000e+00 : f32
    %198 = vector.broadcast %cst_76 : f32 to vector<16x128xf32>
    %199 = arith.addf %198, %197 : vector<16x128xf32>
    %200 = arith.mulf %194, %199 : vector<16x128xf32>
    %c0_77 = arith.constant 0 : index
    %c0_78 = arith.constant 0 : index
    %c0_79 = arith.constant 0 : index
    %201 = vector.load %arg15[%c0_77, %c0_78, %c0_79] : memref<2x128x32xf32, #tpu.memory_space<vmem>>, vector<1x128x32xf32>
    %202 = vector.shape_cast %201 : vector<1x128x32xf32> to vector<128x32xf32>
    %cst_80 = arith.constant dense<0.000000e+00> : vector<16x32xf32>
    %203 = tpu.matmul %200, %202, %cst_80 {dimension_numbers = #tpu.dot_dimension_numbers<[1], [0], [0], [1], [0, 0, 1, 1], [], []>} : vector<16x128xf32>, vector<128x32xf32>, vector<16x32xf32> -> vector<16x32xf32>
    %c0_81 = arith.constant 0 : index
    %c0_82 = arith.constant 0 : index
    %c0_83 = arith.constant 0 : index
    %204 = vector.load %arg16[%c0_81, %c0_82, %c0_83] : memref<2x1x32xf32, #tpu.memory_space<vmem>>, vector<1x1x32xf32>
    %205 = vector.shape_cast %204 : vector<1x1x32xf32> to vector<1x32xf32>
    %206 = vector.broadcast %205 : vector<1x32xf32> to vector<16x32xf32>
    %207 = arith.addf %203, %206 : vector<16x32xf32>
    %208 = arith.addf %207, %185 : vector<16x32xf32>
    %c0_84 = arith.constant 0 : index
    %c0_85 = arith.constant 0 : index
    %c0_86 = arith.constant 0 : index
    %209 = vector.load %arg17[%c0_84, %c0_85, %c0_86] : memref<2x1x32xf32, #tpu.memory_space<vmem>>, vector<1x1x32xf32>
    %210 = vector.shape_cast %209 : vector<1x1x32xf32> to vector<1x32xf32>
    %c0_87 = arith.constant 0 : index
    %c0_88 = arith.constant 0 : index
    %c0_89 = arith.constant 0 : index
    %211 = vector.load %arg18[%c0_87, %c0_88, %c0_89] : memref<2x1x32xf32, #tpu.memory_space<vmem>>, vector<1x1x32xf32>
    %212 = vector.shape_cast %211 : vector<1x1x32xf32> to vector<1x32xf32>
    %cst_90 = arith.constant dense<0.000000e+00> : vector<16xf32>
    %213 = vector.multi_reduction <add>, %208, %cst_90 [1] : vector<16x32xf32> to vector<16xf32>
    %214 = vector.shape_cast %213 : vector<16xf32> to vector<16x1xf32>
    %cst_91 = arith.constant 3.200000e+01 : f32
    %215 = vector.broadcast %cst_91 : f32 to vector<16x1xf32>
    %216 = arith.divf %214, %215 : vector<16x1xf32>
    %217 = vector.broadcast %216 : vector<16x1xf32> to vector<16x32xf32>
    %218 = arith.subf %208, %217 : vector<16x32xf32>
    %219 = arith.mulf %218, %218 : vector<16x32xf32>
    %cst_92 = arith.constant dense<0.000000e+00> : vector<16xf32>
    %220 = vector.multi_reduction <add>, %219, %cst_92 [1] : vector<16x32xf32> to vector<16xf32>
    %221 = vector.shape_cast %220 : vector<16xf32> to vector<16x1xf32>
    %cst_93 = arith.constant 3.200000e+01 : f32
    %222 = vector.broadcast %cst_93 : f32 to vector<16x1xf32>
    %223 = arith.divf %221, %222 : vector<16x1xf32>
    %224 = vector.broadcast %216 : vector<16x1xf32> to vector<16x32xf32>
    %225 = arith.subf %208, %224 : vector<16x32xf32>
    %cst_94 = arith.constant 9.99999974E-6 : f32
    %226 = vector.broadcast %cst_94 : f32 to vector<16x1xf32>
    %227 = arith.addf %223, %226 : vector<16x1xf32>
    %228 = math.rsqrt %227 : vector<16x1xf32>
    %229 = vector.broadcast %228 : vector<16x1xf32> to vector<16x32xf32>
    %230 = arith.mulf %225, %229 : vector<16x32xf32>
    %231 = vector.broadcast %210 : vector<1x32xf32> to vector<16x32xf32>
    %232 = arith.mulf %230, %231 : vector<16x32xf32>
    %233 = vector.broadcast %212 : vector<1x32xf32> to vector<16x32xf32>
    %234 = arith.addf %232, %233 : vector<16x32xf32>
    %c1 = arith.constant 1 : index
    %c0_95 = arith.constant 0 : index
    %c0_96 = arith.constant 0 : index
    %235 = vector.load %arg7[%c1, %c0_95, %c0_96] : memref<2x32x96xf32, #tpu.memory_space<vmem>>, vector<1x32x96xf32>
    %236 = vector.shape_cast %235 : vector<1x32x96xf32> to vector<32x96xf32>
    %cst_97 = arith.constant dense<0.000000e+00> : vector<16x96xf32>
    %237 = tpu.matmul %234, %236, %cst_97 {dimension_numbers = #tpu.dot_dimension_numbers<[1], [0], [0], [1], [0, 0, 1, 1], [], []>} : vector<16x32xf32>, vector<32x96xf32>, vector<16x96xf32> -> vector<16x96xf32>
    %c1_98 = arith.constant 1 : index
    %c0_99 = arith.constant 0 : index
    %c0_100 = arith.constant 0 : index
    %238 = vector.load %arg8[%c1_98, %c0_99, %c0_100] : memref<2x1x96xf32, #tpu.memory_space<vmem>>, vector<1x1x96xf32>
    %239 = vector.shape_cast %238 : vector<1x1x96xf32> to vector<1x96xf32>
    %240 = vector.broadcast %239 : vector<1x96xf32> to vector<16x96xf32>
    %241 = arith.addf %237, %240 : vector<16x96xf32>
    %242 = vector.extract_strided_slice %241 {offsets = [0, 0], sizes = [16, 32], strides = [1, 1]} : vector<16x96xf32> to vector<16x32xf32>
    %243 = vector.extract_strided_slice %241 {offsets = [0, 32], sizes = [16, 32], strides = [1, 1]} : vector<16x96xf32> to vector<16x32xf32>
    %244 = vector.extract_strided_slice %241 {offsets = [0, 64], sizes = [16, 32], strides = [1, 1]} : vector<16x96xf32> to vector<16x32xf32>
    %245 = vector.extract_strided_slice %242 {offsets = [0, 0], sizes = [8, 32], strides = [1, 1]} : vector<16x32xf32> to vector<8x32xf32>
    %246 = vector.extract_strided_slice %243 {offsets = [0, 0], sizes = [8, 32], strides = [1, 1]} : vector<16x32xf32> to vector<8x32xf32>
    %247 = vector.extract_strided_slice %244 {offsets = [0, 0], sizes = [8, 32], strides = [1, 1]} : vector<16x32xf32> to vector<8x32xf32>
    %248 = vector.extract_strided_slice %50 {offsets = [0, 0], sizes = [1, 8], strides = [1, 1]} : vector<2x8xf32> to vector<1x8xf32>
    %249 = vector.extract_strided_slice %245 {offsets = [0, 0], sizes = [8, 16], strides = [1, 1]} : vector<8x32xf32> to vector<8x16xf32>
    %250 = vector.extract_strided_slice %246 {offsets = [0, 0], sizes = [8, 16], strides = [1, 1]} : vector<8x32xf32> to vector<8x16xf32>
    %251 = vector.extract_strided_slice %247 {offsets = [0, 0], sizes = [8, 16], strides = [1, 1]} : vector<8x32xf32> to vector<8x16xf32>
    %252 = tpu.transpose %250, [1, 0] : vector<8x16xf32> -> vector<16x8xf32>
    %cst_101 = arith.constant dense<0.000000e+00> : vector<8x8xf32>
    %253 = tpu.matmul %249, %252, %cst_101 {dimension_numbers = #tpu.dot_dimension_numbers<[1], [0], [0], [1], [0, 0, 1, 1], [], []>} : vector<8x16xf32>, vector<16x8xf32>, vector<8x8xf32> -> vector<8x8xf32>
    %cst_102 = arith.constant 2.500000e-01 : f32
    %254 = vector.broadcast %cst_102 : f32 to vector<8x8xf32>
    %255 = arith.mulf %253, %254 : vector<8x8xf32>
    %256 = vector.broadcast %248 : vector<1x8xf32> to vector<8x8xf32>
    %257 = arith.addf %255, %256 : vector<8x8xf32>
    %cst_103 = arith.constant dense<0xFF800000> : vector<8xf32>
    %258 = vector.multi_reduction <maximumf>, %257, %cst_103 [1] : vector<8x8xf32> to vector<8xf32>
    %259 = vector.shape_cast %258 : vector<8xf32> to vector<8x1xf32>
    %260 = vector.broadcast %259 : vector<8x1xf32> to vector<8x8xf32>
    %261 = arith.subf %257, %260 : vector<8x8xf32>
    %262 = math.exp %261 : vector<8x8xf32>
    %cst_104 = arith.constant dense<0.000000e+00> : vector<8xf32>
    %263 = vector.multi_reduction <add>, %262, %cst_104 [1] : vector<8x8xf32> to vector<8xf32>
    %264 = vector.shape_cast %263 : vector<8xf32> to vector<8x1xf32>
    %265 = tpu.reciprocal %264 {approx = true} : vector<8x1xf32> -> vector<8x1xf32>
    %266 = vector.broadcast %265 : vector<8x1xf32> to vector<8x8xf32>
    %267 = arith.mulf %262, %266 : vector<8x8xf32>
    %cst_105 = arith.constant dense<0.000000e+00> : vector<8x16xf32>
    %268 = tpu.matmul %267, %251, %cst_105 {dimension_numbers = #tpu.dot_dimension_numbers<[1], [0], [0], [1], [0, 0, 1, 1], [], []>} : vector<8x8xf32>, vector<8x16xf32>, vector<8x16xf32> -> vector<8x16xf32>
    %269 = vector.extract_strided_slice %245 {offsets = [0, 16], sizes = [8, 16], strides = [1, 1]} : vector<8x32xf32> to vector<8x16xf32>
    %270 = vector.extract_strided_slice %246 {offsets = [0, 16], sizes = [8, 16], strides = [1, 1]} : vector<8x32xf32> to vector<8x16xf32>
    %271 = vector.extract_strided_slice %247 {offsets = [0, 16], sizes = [8, 16], strides = [1, 1]} : vector<8x32xf32> to vector<8x16xf32>
    %272 = tpu.transpose %270, [1, 0] : vector<8x16xf32> -> vector<16x8xf32>
    %cst_106 = arith.constant dense<0.000000e+00> : vector<8x8xf32>
    %273 = tpu.matmul %269, %272, %cst_106 {dimension_numbers = #tpu.dot_dimension_numbers<[1], [0], [0], [1], [0, 0, 1, 1], [], []>} : vector<8x16xf32>, vector<16x8xf32>, vector<8x8xf32> -> vector<8x8xf32>
    %cst_107 = arith.constant 2.500000e-01 : f32
    %274 = vector.broadcast %cst_107 : f32 to vector<8x8xf32>
    %275 = arith.mulf %273, %274 : vector<8x8xf32>
    %276 = vector.broadcast %248 : vector<1x8xf32> to vector<8x8xf32>
    %277 = arith.addf %275, %276 : vector<8x8xf32>
    %cst_108 = arith.constant dense<0xFF800000> : vector<8xf32>
    %278 = vector.multi_reduction <maximumf>, %277, %cst_108 [1] : vector<8x8xf32> to vector<8xf32>
    %279 = vector.shape_cast %278 : vector<8xf32> to vector<8x1xf32>
    %280 = vector.broadcast %279 : vector<8x1xf32> to vector<8x8xf32>
    %281 = arith.subf %277, %280 : vector<8x8xf32>
    %282 = math.exp %281 : vector<8x8xf32>
    %cst_109 = arith.constant dense<0.000000e+00> : vector<8xf32>
    %283 = vector.multi_reduction <add>, %282, %cst_109 [1] : vector<8x8xf32> to vector<8xf32>
    %284 = vector.shape_cast %283 : vector<8xf32> to vector<8x1xf32>
    %285 = tpu.reciprocal %284 {approx = true} : vector<8x1xf32> -> vector<8x1xf32>
    %286 = vector.broadcast %285 : vector<8x1xf32> to vector<8x8xf32>
    %287 = arith.mulf %282, %286 : vector<8x8xf32>
    %cst_110 = arith.constant dense<0.000000e+00> : vector<8x16xf32>
    %288 = tpu.matmul %287, %271, %cst_110 {dimension_numbers = #tpu.dot_dimension_numbers<[1], [0], [0], [1], [0, 0, 1, 1], [], []>} : vector<8x8xf32>, vector<8x16xf32>, vector<8x16xf32> -> vector<8x16xf32>
    %289 = tpu.concatenate %268, %288 in 1 : vector<8x16xf32>, vector<8x16xf32> -> vector<8x32xf32>
    %290 = vector.extract_strided_slice %242 {offsets = [8, 0], sizes = [8, 32], strides = [1, 1]} : vector<16x32xf32> to vector<8x32xf32>
    %291 = vector.extract_strided_slice %243 {offsets = [8, 0], sizes = [8, 32], strides = [1, 1]} : vector<16x32xf32> to vector<8x32xf32>
    %292 = vector.extract_strided_slice %244 {offsets = [8, 0], sizes = [8, 32], strides = [1, 1]} : vector<16x32xf32> to vector<8x32xf32>
    %293 = vector.extract_strided_slice %50 {offsets = [1, 0], sizes = [1, 8], strides = [1, 1]} : vector<2x8xf32> to vector<1x8xf32>
    %294 = vector.extract_strided_slice %290 {offsets = [0, 0], sizes = [8, 16], strides = [1, 1]} : vector<8x32xf32> to vector<8x16xf32>
    %295 = vector.extract_strided_slice %291 {offsets = [0, 0], sizes = [8, 16], strides = [1, 1]} : vector<8x32xf32> to vector<8x16xf32>
    %296 = vector.extract_strided_slice %292 {offsets = [0, 0], sizes = [8, 16], strides = [1, 1]} : vector<8x32xf32> to vector<8x16xf32>
    %297 = tpu.transpose %295, [1, 0] : vector<8x16xf32> -> vector<16x8xf32>
    %cst_111 = arith.constant dense<0.000000e+00> : vector<8x8xf32>
    %298 = tpu.matmul %294, %297, %cst_111 {dimension_numbers = #tpu.dot_dimension_numbers<[1], [0], [0], [1], [0, 0, 1, 1], [], []>} : vector<8x16xf32>, vector<16x8xf32>, vector<8x8xf32> -> vector<8x8xf32>
    %cst_112 = arith.constant 2.500000e-01 : f32
    %299 = vector.broadcast %cst_112 : f32 to vector<8x8xf32>
    %300 = arith.mulf %298, %299 : vector<8x8xf32>
    %301 = vector.broadcast %293 : vector<1x8xf32> to vector<8x8xf32>
    %302 = arith.addf %300, %301 : vector<8x8xf32>
    %cst_113 = arith.constant dense<0xFF800000> : vector<8xf32>
    %303 = vector.multi_reduction <maximumf>, %302, %cst_113 [1] : vector<8x8xf32> to vector<8xf32>
    %304 = vector.shape_cast %303 : vector<8xf32> to vector<8x1xf32>
    %305 = vector.broadcast %304 : vector<8x1xf32> to vector<8x8xf32>
    %306 = arith.subf %302, %305 : vector<8x8xf32>
    %307 = math.exp %306 : vector<8x8xf32>
    %cst_114 = arith.constant dense<0.000000e+00> : vector<8xf32>
    %308 = vector.multi_reduction <add>, %307, %cst_114 [1] : vector<8x8xf32> to vector<8xf32>
    %309 = vector.shape_cast %308 : vector<8xf32> to vector<8x1xf32>
    %310 = tpu.reciprocal %309 {approx = true} : vector<8x1xf32> -> vector<8x1xf32>
    %311 = vector.broadcast %310 : vector<8x1xf32> to vector<8x8xf32>
    %312 = arith.mulf %307, %311 : vector<8x8xf32>
    %cst_115 = arith.constant dense<0.000000e+00> : vector<8x16xf32>
    %313 = tpu.matmul %312, %296, %cst_115 {dimension_numbers = #tpu.dot_dimension_numbers<[1], [0], [0], [1], [0, 0, 1, 1], [], []>} : vector<8x8xf32>, vector<8x16xf32>, vector<8x16xf32> -> vector<8x16xf32>
    %314 = vector.extract_strided_slice %290 {offsets = [0, 16], sizes = [8, 16], strides = [1, 1]} : vector<8x32xf32> to vector<8x16xf32>
    %315 = vector.extract_strided_slice %291 {offsets = [0, 16], sizes = [8, 16], strides = [1, 1]} : vector<8x32xf32> to vector<8x16xf32>
    %316 = vector.extract_strided_slice %292 {offsets = [0, 16], sizes = [8, 16], strides = [1, 1]} : vector<8x32xf32> to vector<8x16xf32>
    %317 = tpu.transpose %315, [1, 0] : vector<8x16xf32> -> vector<16x8xf32>
    %cst_116 = arith.constant dense<0.000000e+00> : vector<8x8xf32>
    %318 = tpu.matmul %314, %317, %cst_116 {dimension_numbers = #tpu.dot_dimension_numbers<[1], [0], [0], [1], [0, 0, 1, 1], [], []>} : vector<8x16xf32>, vector<16x8xf32>, vector<8x8xf32> -> vector<8x8xf32>
    %cst_117 = arith.constant 2.500000e-01 : f32
    %319 = vector.broadcast %cst_117 : f32 to vector<8x8xf32>
    %320 = arith.mulf %318, %319 : vector<8x8xf32>
    %321 = vector.broadcast %293 : vector<1x8xf32> to vector<8x8xf32>
    %322 = arith.addf %320, %321 : vector<8x8xf32>
    %cst_118 = arith.constant dense<0xFF800000> : vector<8xf32>
    %323 = vector.multi_reduction <maximumf>, %322, %cst_118 [1] : vector<8x8xf32> to vector<8xf32>
    %324 = vector.shape_cast %323 : vector<8xf32> to vector<8x1xf32>
    %325 = vector.broadcast %324 : vector<8x1xf32> to vector<8x8xf32>
    %326 = arith.subf %322, %325 : vector<8x8xf32>
    %327 = math.exp %326 : vector<8x8xf32>
    %cst_119 = arith.constant dense<0.000000e+00> : vector<8xf32>
    %328 = vector.multi_reduction <add>, %327, %cst_119 [1] : vector<8x8xf32> to vector<8xf32>
    %329 = vector.shape_cast %328 : vector<8xf32> to vector<8x1xf32>
    %330 = tpu.reciprocal %329 {approx = true} : vector<8x1xf32> -> vector<8x1xf32>
    %331 = vector.broadcast %330 : vector<8x1xf32> to vector<8x8xf32>
    %332 = arith.mulf %327, %331 : vector<8x8xf32>
    %cst_120 = arith.constant dense<0.000000e+00> : vector<8x16xf32>
    %333 = tpu.matmul %332, %316, %cst_120 {dimension_numbers = #tpu.dot_dimension_numbers<[1], [0], [0], [1], [0, 0, 1, 1], [], []>} : vector<8x8xf32>, vector<8x16xf32>, vector<8x16xf32> -> vector<8x16xf32>
    %334 = tpu.concatenate %313, %333 in 1 : vector<8x16xf32>, vector<8x16xf32> -> vector<8x32xf32>
    %335 = tpu.concatenate %289, %334 in 0 : vector<8x32xf32>, vector<8x32xf32> -> vector<16x32xf32>
    %c1_121 = arith.constant 1 : index
    %c0_122 = arith.constant 0 : index
    %c0_123 = arith.constant 0 : index
    %336 = vector.load %arg9[%c1_121, %c0_122, %c0_123] : memref<2x32x32xf32, #tpu.memory_space<vmem>>, vector<1x32x32xf32>
    %337 = vector.shape_cast %336 : vector<1x32x32xf32> to vector<32x32xf32>
    %cst_124 = arith.constant dense<0.000000e+00> : vector<16x32xf32>
    %338 = tpu.matmul %335, %337, %cst_124 {dimension_numbers = #tpu.dot_dimension_numbers<[1], [0], [0], [1], [0, 0, 1, 1], [], []>} : vector<16x32xf32>, vector<32x32xf32>, vector<16x32xf32> -> vector<16x32xf32>
    %c1_125 = arith.constant 1 : index
    %c0_126 = arith.constant 0 : index
    %c0_127 = arith.constant 0 : index
    %339 = vector.load %arg10[%c1_125, %c0_126, %c0_127] : memref<2x1x32xf32, #tpu.memory_space<vmem>>, vector<1x1x32xf32>
    %340 = vector.shape_cast %339 : vector<1x1x32xf32> to vector<1x32xf32>
    %341 = vector.broadcast %340 : vector<1x32xf32> to vector<16x32xf32>
    %342 = arith.addf %338, %341 : vector<16x32xf32>
    %343 = arith.addf %342, %234 : vector<16x32xf32>
    %c1_128 = arith.constant 1 : index
    %c0_129 = arith.constant 0 : index
    %c0_130 = arith.constant 0 : index
    %344 = vector.load %arg11[%c1_128, %c0_129, %c0_130] : memref<2x1x32xf32, #tpu.memory_space<vmem>>, vector<1x1x32xf32>
    %345 = vector.shape_cast %344 : vector<1x1x32xf32> to vector<1x32xf32>
    %c1_131 = arith.constant 1 : index
    %c0_132 = arith.constant 0 : index
    %c0_133 = arith.constant 0 : index
    %346 = vector.load %arg12[%c1_131, %c0_132, %c0_133] : memref<2x1x32xf32, #tpu.memory_space<vmem>>, vector<1x1x32xf32>
    %347 = vector.shape_cast %346 : vector<1x1x32xf32> to vector<1x32xf32>
    %cst_134 = arith.constant dense<0.000000e+00> : vector<16xf32>
    %348 = vector.multi_reduction <add>, %343, %cst_134 [1] : vector<16x32xf32> to vector<16xf32>
    %349 = vector.shape_cast %348 : vector<16xf32> to vector<16x1xf32>
    %cst_135 = arith.constant 3.200000e+01 : f32
    %350 = vector.broadcast %cst_135 : f32 to vector<16x1xf32>
    %351 = arith.divf %349, %350 : vector<16x1xf32>
    %352 = vector.broadcast %351 : vector<16x1xf32> to vector<16x32xf32>
    %353 = arith.subf %343, %352 : vector<16x32xf32>
    %354 = arith.mulf %353, %353 : vector<16x32xf32>
    %cst_136 = arith.constant dense<0.000000e+00> : vector<16xf32>
    %355 = vector.multi_reduction <add>, %354, %cst_136 [1] : vector<16x32xf32> to vector<16xf32>
    %356 = vector.shape_cast %355 : vector<16xf32> to vector<16x1xf32>
    %cst_137 = arith.constant 3.200000e+01 : f32
    %357 = vector.broadcast %cst_137 : f32 to vector<16x1xf32>
    %358 = arith.divf %356, %357 : vector<16x1xf32>
    %359 = vector.broadcast %351 : vector<16x1xf32> to vector<16x32xf32>
    %360 = arith.subf %343, %359 : vector<16x32xf32>
    %cst_138 = arith.constant 9.99999974E-6 : f32
    %361 = vector.broadcast %cst_138 : f32 to vector<16x1xf32>
    %362 = arith.addf %358, %361 : vector<16x1xf32>
    %363 = math.rsqrt %362 : vector<16x1xf32>
    %364 = vector.broadcast %363 : vector<16x1xf32> to vector<16x32xf32>
    %365 = arith.mulf %360, %364 : vector<16x32xf32>
    %366 = vector.broadcast %345 : vector<1x32xf32> to vector<16x32xf32>
    %367 = arith.mulf %365, %366 : vector<16x32xf32>
    %368 = vector.broadcast %347 : vector<1x32xf32> to vector<16x32xf32>
    %369 = arith.addf %367, %368 : vector<16x32xf32>
    %c1_139 = arith.constant 1 : index
    %c0_140 = arith.constant 0 : index
    %c0_141 = arith.constant 0 : index
    %370 = vector.load %arg13[%c1_139, %c0_140, %c0_141] : memref<2x32x128xf32, #tpu.memory_space<vmem>>, vector<1x32x128xf32>
    %371 = vector.shape_cast %370 : vector<1x32x128xf32> to vector<32x128xf32>
    %cst_142 = arith.constant dense<0.000000e+00> : vector<16x128xf32>
    %372 = tpu.matmul %369, %371, %cst_142 {dimension_numbers = #tpu.dot_dimension_numbers<[1], [0], [0], [1], [0, 0, 1, 1], [], []>} : vector<16x32xf32>, vector<32x128xf32>, vector<16x128xf32> -> vector<16x128xf32>
    %c1_143 = arith.constant 1 : index
    %c0_144 = arith.constant 0 : index
    %c0_145 = arith.constant 0 : index
    %373 = vector.load %arg14[%c1_143, %c0_144, %c0_145] : memref<2x1x128xf32, #tpu.memory_space<vmem>>, vector<1x1x128xf32>
    %374 = vector.shape_cast %373 : vector<1x1x128xf32> to vector<1x128xf32>
    %375 = vector.broadcast %374 : vector<1x128xf32> to vector<16x128xf32>
    %376 = arith.addf %372, %375 : vector<16x128xf32>
    %cst_146 = arith.constant 5.000000e-01 : f32
    %377 = vector.broadcast %cst_146 : f32 to vector<16x128xf32>
    %378 = arith.mulf %377, %376 : vector<16x128xf32>
    %cst_147 = arith.constant 0.707106769 : f32
    %379 = vector.broadcast %cst_147 : f32 to vector<16x128xf32>
    %380 = arith.mulf %376, %379 : vector<16x128xf32>
    %381 = math.erf %380 : vector<16x128xf32>
    %cst_148 = arith.constant 1.000000e+00 : f32
    %382 = vector.broadcast %cst_148 : f32 to vector<16x128xf32>
    %383 = arith.addf %382, %381 : vector<16x128xf32>
    %384 = arith.mulf %378, %383 : vector<16x128xf32>
    %c1_149 = arith.constant 1 : index
    %c0_150 = arith.constant 0 : index
    %c0_151 = arith.constant 0 : index
    %385 = vector.load %arg15[%c1_149, %c0_150, %c0_151] : memref<2x128x32xf32, #tpu.memory_space<vmem>>, vector<1x128x32xf32>
    %386 = vector.shape_cast %385 : vector<1x128x32xf32> to vector<128x32xf32>
    %cst_152 = arith.constant dense<0.000000e+00> : vector<16x32xf32>
    %387 = tpu.matmul %384, %386, %cst_152 {dimension_numbers = #tpu.dot_dimension_numbers<[1], [0], [0], [1], [0, 0, 1, 1], [], []>} : vector<16x128xf32>, vector<128x32xf32>, vector<16x32xf32> -> vector<16x32xf32>
    %c1_153 = arith.constant 1 : index
    %c0_154 = arith.constant 0 : index
    %c0_155 = arith.constant 0 : index
    %388 = vector.load %arg16[%c1_153, %c0_154, %c0_155] : memref<2x1x32xf32, #tpu.memory_space<vmem>>, vector<1x1x32xf32>
    %389 = vector.shape_cast %388 : vector<1x1x32xf32> to vector<1x32xf32>
    %390 = vector.broadcast %389 : vector<1x32xf32> to vector<16x32xf32>
    %391 = arith.addf %387, %390 : vector<16x32xf32>
    %392 = arith.addf %391, %369 : vector<16x32xf32>
    %c1_156 = arith.constant 1 : index
    %c0_157 = arith.constant 0 : index
    %c0_158 = arith.constant 0 : index
    %393 = vector.load %arg17[%c1_156, %c0_157, %c0_158] : memref<2x1x32xf32, #tpu.memory_space<vmem>>, vector<1x1x32xf32>
    %394 = vector.shape_cast %393 : vector<1x1x32xf32> to vector<1x32xf32>
    %c1_159 = arith.constant 1 : index
    %c0_160 = arith.constant 0 : index
    %c0_161 = arith.constant 0 : index
    %395 = vector.load %arg18[%c1_159, %c0_160, %c0_161] : memref<2x1x32xf32, #tpu.memory_space<vmem>>, vector<1x1x32xf32>
    %396 = vector.shape_cast %395 : vector<1x1x32xf32> to vector<1x32xf32>
    %cst_162 = arith.constant dense<0.000000e+00> : vector<16xf32>
    %397 = vector.multi_reduction <add>, %392, %cst_162 [1] : vector<16x32xf32> to vector<16xf32>
    %398 = vector.shape_cast %397 : vector<16xf32> to vector<16x1xf32>
    %cst_163 = arith.constant 3.200000e+01 : f32
    %399 = vector.broadcast %cst_163 : f32 to vector<16x1xf32>
    %400 = arith.divf %398, %399 : vector<16x1xf32>
    %401 = vector.broadcast %400 : vector<16x1xf32> to vector<16x32xf32>
    %402 = arith.subf %392, %401 : vector<16x32xf32>
    %403 = arith.mulf %402, %402 : vector<16x32xf32>
    %cst_164 = arith.constant dense<0.000000e+00> : vector<16xf32>
    %404 = vector.multi_reduction <add>, %403, %cst_164 [1] : vector<16x32xf32> to vector<16xf32>
    %405 = vector.shape_cast %404 : vector<16xf32> to vector<16x1xf32>
    %cst_165 = arith.constant 3.200000e+01 : f32
    %406 = vector.broadcast %cst_165 : f32 to vector<16x1xf32>
    %407 = arith.divf %405, %406 : vector<16x1xf32>
    %408 = vector.broadcast %400 : vector<16x1xf32> to vector<16x32xf32>
    %409 = arith.subf %392, %408 : vector<16x32xf32>
    %cst_166 = arith.constant 9.99999974E-6 : f32
    %410 = vector.broadcast %cst_166 : f32 to vector<16x1xf32>
    %411 = arith.addf %407, %410 : vector<16x1xf32>
    %412 = math.rsqrt %411 : vector<16x1xf32>
    %413 = vector.broadcast %412 : vector<16x1xf32> to vector<16x32xf32>
    %414 = arith.mulf %409, %413 : vector<16x32xf32>
    %415 = vector.broadcast %394 : vector<1x32xf32> to vector<16x32xf32>
    %416 = arith.mulf %414, %415 : vector<16x32xf32>
    %417 = vector.broadcast %396 : vector<1x32xf32> to vector<16x32xf32>
    %418 = arith.addf %416, %417 : vector<16x32xf32>
    %419 = vector.extract_strided_slice %418 {offsets = [0, 0], sizes = [1, 32], strides = [1, 1]} : vector<16x32xf32> to vector<1x32xf32>
    %420 = vector.extract_strided_slice %418 {offsets = [8, 0], sizes = [1, 32], strides = [1, 1]} : vector<16x32xf32> to vector<1x32xf32>
    %421 = tpu.concatenate %419, %420 in 0 : vector<1x32xf32>, vector<1x32xf32> -> vector<2x32xf32>
    %c0_167 = arith.constant 0 : index
    %c0_168 = arith.constant 0 : index
    %422 = vector.load %arg19[%c0_167, %c0_168] : memref<32x32xf32, #tpu.memory_space<vmem>>, vector<32x32xf32>
    %cst_169 = arith.constant dense<0.000000e+00> : vector<2x32xf32>
    %423 = tpu.matmul %421, %422, %cst_169 {dimension_numbers = #tpu.dot_dimension_numbers<[1], [0], [0], [1], [0, 0, 1, 1], [], []>} : vector<2x32xf32>, vector<32x32xf32>, vector<2x32xf32> -> vector<2x32xf32>
    %c0_170 = arith.constant 0 : index
    %c0_171 = arith.constant 0 : index
    %424 = vector.load %arg20[%c0_170, %c0_171] : memref<1x32xf32, #tpu.memory_space<vmem>>, vector<1x32xf32>
    %425 = vector.broadcast %424 : vector<1x32xf32> to vector<2x32xf32>
    %426 = arith.addf %423, %425 : vector<2x32xf32>
    %427 = math.tanh %426 : vector<2x32xf32>
    %c0_172 = arith.constant 0 : index
    %c0_173 = arith.constant 0 : index
    %428 = vector.load %arg21[%c0_172, %c0_173] : memref<32x512xf32, #tpu.memory_space<vmem>>, vector<32x512xf32>
    %cst_174 = arith.constant dense<0.000000e+00> : vector<2x512xf32>
    %429 = tpu.matmul %427, %428, %cst_174 {dimension_numbers = #tpu.dot_dimension_numbers<[1], [0], [0], [1], [0, 0, 1, 1], [], []>} : vector<2x32xf32>, vector<32x512xf32>, vector<2x512xf32> -> vector<2x512xf32>
    %c0_175 = arith.constant 0 : index
    %c0_176 = arith.constant 0 : index
    %430 = vector.load %arg22[%c0_175, %c0_176] : memref<1x512xf32, #tpu.memory_space<vmem>>, vector<1x512xf32>
    %431 = vector.broadcast %430 : vector<1x512xf32> to vector<2x512xf32>
    %432 = arith.addf %429, %431 : vector<2x512xf32>
    %cst_177 = arith.constant 5.000000e-01 : f32
    %433 = vector.broadcast %cst_177 : f32 to vector<2x512xf32>
    %434 = arith.mulf %433, %432 : vector<2x512xf32>
    %cst_178 = arith.constant 0.707106769 : f32
    %435 = vector.broadcast %cst_178 : f32 to vector<2x512xf32>
    %436 = arith.mulf %432, %435 : vector<2x512xf32>
    %437 = math.erf %436 : vector<2x512xf32>
    %cst_179 = arith.constant 1.000000e+00 : f32
    %438 = vector.broadcast %cst_179 : f32 to vector<2x512xf32>
    %439 = arith.addf %438, %437 : vector<2x512xf32>
    %440 = arith.mulf %434, %439 : vector<2x512xf32>
    %c0_180 = arith.constant 0 : index
    %c0_181 = arith.constant 0 : index
    %441 = vector.load %arg23[%c0_180, %c0_181] : memref<512x7xf32, #tpu.memory_space<vmem>>, vector<512x7xf32>
    %cst_182 = arith.constant dense<0.000000e+00> : vector<2x7xf32>
    %442 = tpu.matmul %440, %441, %cst_182 {dimension_numbers = #tpu.dot_dimension_numbers<[1], [0], [0], [1], [0, 0, 1, 1], [], []>} : vector<2x512xf32>, vector<512x7xf32>, vector<2x7xf32> -> vector<2x7xf32>
    %c0_183 = arith.constant 0 : index
    %c0_184 = arith.constant 0 : index
    %443 = vector.load %arg24[%c0_183, %c0_184] : memref<1x7xf32, #tpu.memory_space<vmem>>, vector<1x7xf32>
    %444 = vector.broadcast %443 : vector<1x7xf32> to vector<2x7xf32>
    %445 = arith.addf %442, %444 : vector<2x7xf32>
    %c0_185 = arith.constant 0 : index
    %c0_186 = arith.constant 0 : index
    %446 = vector.load %arg25[%c0_185, %c0_186] : memref<2x7xf32, #tpu.memory_space<vmem>>, vector<2x7xf32>
    tpu.vector_store %arg25[%c0_185, %c0_186], %445 {strides = array<i32>} : memref<2x7xf32, #tpu.memory_space<vmem>>, vector<2x7xf32>,
    return
  }
}

</mosaic_0001>

<llo_original>
// kernel: model_forward.1
$region0: #{model_forward.1}
  #allocation0 [shape = 'u32[]', space=smem, size = 0x4, offset = 0x4, fixed_abs, tag = 'smem constant byte address 0x4 - core index']
  #allocation1 [shape = 'u32[144,128]{1,0:T(1,128)}', space=vmem, size = 0x12000, scoped, tag = 'internal scratch']
  %s0 = inlined_call_operand.vmem [shape: s32[16,1], index: 0, kind: input, shape index: {}]
  %s1 = inlined_call_operand.vmem [shape: s32[2,8], index: 1, kind: input, shape index: {}]
  %s2 = inlined_call_operand.vmem [shape: f32[128,32], index: 2, kind: input, shape index: {}]
  %s3 = inlined_call_operand.vmem [shape: f32[16,32], index: 3, kind: input, shape index: {}]
  %s4 = inlined_call_operand.vmem [shape: f32[1,32], index: 4, kind: input, shape index: {}]
  %s5 = inlined_call_operand.vmem [shape: f32[1,32], index: 5, kind: input, shape index: {}]
  %s6 = inlined_call_operand.vmem [shape: f32[1,32], index: 6, kind: input, shape index: {}]
  %s7 = inlined_call_operand.vmem [shape: f32[2,32,96], index: 7, kind: input, shape index: {}]
  %s8 = inlined_call_operand.vmem [shape: f32[2,1,96], index: 8, kind: input, shape index: {}]
  %s9 = inlined_call_operand.vmem [shape: f32[2,32,32], index: 9, kind: input, shape index: {}]
  %s10 = inlined_call_operand.vmem [shape: f32[2,1,32], index: 10, kind: input, shape index: {}]
  %s11 = inlined_call_operand.vmem [shape: f32[2,1,32], index: 11, kind: input, shape index: {}]
  %s12 = inlined_call_operand.vmem [shape: f32[2,1,32], index: 12, kind: input, shape index: {}]
  %s13 = inlined_call_operand.vmem [shape: f32[2,32,128], index: 13, kind: input, shape index: {}]
  %s14 = inlined_call_operand.vmem [shape: f32[2,1,128], index: 14, kind: input, shape index: {}]
  %s15 = inlined_call_operand.vmem [shape: f32[2,128,32], index: 15, kind: input, shape index: {}]
  %s16 = inlined_call_operand.vmem [shape: f32[2,1,32], index: 16, kind: input, shape index: {}]
  %s17 = inlined_call_operand.vmem [shape: f32[2,1,32], index: 17, kind: input, shape index: {}]
  %s18 = inlined_call_operand.vmem [shape: f32[2,1,32], index: 18, kind: input, shape index: {}]
  %s19 = inlined_call_operand.vmem [shape: f32[32,32], index: 19, kind: input, shape index: {}]
  %s20 = inlined_call_operand.vmem [shape: f32[1,32], index: 20, kind: input, shape index: {}]
  %s21 = inlined_call_operand.vmem [shape: f32[32,512], index: 21, kind: input, shape index: {}]
  %s22 = inlined_call_operand.vmem [shape: f32[1,512], index: 22, kind: input, shape index: {}]
  %s23 = inlined_call_operand.vmem [shape: f32[512,7], index: 23, kind: input, shape index: {}]
  %s24 = inlined_call_operand.vmem [shape: f32[1,7], index: 24, kind: input, shape index: {}]
  %s25 = inlined_call_operand.vmem [shape: f32[2,7], index: 25, kind: output, shape index: {}]
  %s26 = sld [smem:[#allocation0]]
  $region110: #{model_forward.1} parent=0
    _
  %s28 = ssub.s32 1, %s26
  %s29 = scalar_select 0, %s28, %s26
  // Predicated region
  $region2: #{model_forward.1} parent=0 // pred_check
    _
  $region3: #{model_forward.1} parent=0 // pred_check_branch
    %31 = sbr.rel (0) target = $region5
  $region4: #{model_forward.1} parent=0 // pred_region
    _
  $region5: #{model_forward.1} parent=0 // pred_fallthru
    _
  // Predicated region
  $region6: #{model_forward.1} parent=0 // pred_check
    _
  $region7: #{model_forward.1} parent=0 // pred_check_branch
    %33 = sbr.rel (0) target = $region9
  $region8: #{model_forward.1} parent=0 // pred_region
    _
  $region9: #{model_forward.1} parent=0 // pred_fallthru
    _
  // Predicated region
  $region10: #{model_forward.1} parent=0 // pred_check
    _
  $region11: #{model_forward.1} parent=0 // pred_check_branch
    %35 = sbr.rel (0) target = $region13
  $region12: #{model_forward.1} parent=0 // pred_region
    _
  $region13: #{model_forward.1} parent=0 // pred_fallthru
    _
  // Predicated region
  $region14: #{model_forward.1} parent=0 // pred_check
    _
  $region15: #{model_forward.1} parent=0 // pred_check_branch
    %37 = sbr.rel (0) target = $region17
  $region16: #{model_forward.1} parent=0 // pred_region
    _
  $region17: #{model_forward.1} parent=0 // pred_fallthru
    _
  // Predicated region
  $region18: #{model_forward.1} parent=0 // pred_check
    _
  $region19: #{model_forward.1} parent=0 // pred_check_branch
    %39 = sbr.rel (0) target = $region21
  $region20: #{model_forward.1} parent=0 // pred_region
    _
  $region21: #{model_forward.1} parent=0 // pred_fallthru
    _
  // Predicated region
  $region22: #{model_forward.1} parent=0 // pred_check
    _
  $region23: #{model_forward.1} parent=0 // pred_check_branch
    %41 = sbr.rel (0) target = $region25
  $region24: #{model_forward.1} parent=0 // pred_region
    _
  $region25: #{model_forward.1} parent=0 // pred_fallthru
    _
  // Predicated region
  $region26: #{model_forward.1} parent=0 // pred_check
    _
  $region27: #{model_forward.1} parent=0 // pred_check_branch
    %43 = sbr.rel (0) target = $region29
  $region28: #{model_forward.1} parent=0 // pred_region
    _
  $region29: #{model_forward.1} parent=0 // pred_fallthru
    _
  // Predicated region
  $region30: #{model_forward.1} parent=0 // pred_check
    _
  $region31: #{model_forward.1} parent=0 // pred_check_branch
    %45 = sbr.rel (0) target = $region33
  $region32: #{model_forward.1} parent=0 // pred_region
    _
  $region33: #{model_forward.1} parent=0 // pred_fallthru
    _
  // Predicated region
  $region34: #{model_forward.1} parent=0 // pred_check
    _
  $region35: #{model_forward.1} parent=0 // pred_check_branch
    %47 = sbr.rel (0) target = $region37
  $region36: #{model_forward.1} parent=0 // pred_region
    _
  $region37: #{model_forward.1} parent=0 // pred_fallthru
    _
  // Predicated region
  $region38: #{model_forward.1} parent=0 // pred_check
    _
  $region39: #{model_forward.1} parent=0 // pred_check_branch
    %49 = sbr.rel (0) target = $region41
  $region40: #{model_forward.1} parent=0 // pred_region
    _
  $region41: #{model_forward.1} parent=0 // pred_fallthru
    _
  // Predicated region
  $region42: #{model_forward.1} parent=0 // pred_check
    _
  $region43: #{model_forward.1} parent=0 // pred_check_branch
    %51 = sbr.rel (0) target = $region45
  $region44: #{model_forward.1} parent=0 // pred_region
    _
  $region45: #{model_forward.1} parent=0 // pred_fallthru
    _
  // Predicated region
  $region46: #{model_forward.1} parent=0 // pred_check
    _
  $region47: #{model_forward.1} parent=0 // pred_check_branch
    %53 = sbr.rel (0) target = $region49
  $region48: #{model_forward.1} parent=0 // pred_region
    _
  $region49: #{model_forward.1} parent=0 // pred_fallthru
    _
  // Predicated region
  $region50: #{model_forward.1} parent=0 // pred_check
    _
  $region51: #{model_forward.1} parent=0 // pred_check_branch
    %55 = sbr.rel (0) target = $region53
  $region52: #{model_forward.1} parent=0 // pred_region
    _
  $region53: #{model_forward.1} parent=0 // pred_fallthru
    _
  // Predicated region
  $region54: #{model_forward.1} parent=0 // pred_check
    _
  $region55: #{model_forward.1} parent=0 // pred_check_branch
    %57 = sbr.rel (0) target = $region57
  $region56: #{model_forward.1} parent=0 // pred_region
    _
  $region57: #{model_forward.1} parent=0 // pred_fallthru
    _
  // Predicated region
  $region58: #{model_forward.1} parent=0 // pred_check
    _
  $region59: #{model_forward.1} parent=0 // pred_check_branch
    %59 = sbr.rel (0) target = $region61
  $region60: #{model_forward.1} parent=0 // pred_region
    _
  $region61: #{model_forward.1} parent=0 // pred_fallthru
    _
  // Predicated region
  $region62: #{model_forward.1} parent=0 // pred_check
    _
  $region63: #{model_forward.1} parent=0 // pred_check_branch
    %61 = sbr.rel (0) target = $region65
  $region64: #{model_forward.1} parent=0 // pred_region
    _
  $region65: #{model_forward.1} parent=0 // pred_fallthru
    _
  // Predicated region
  $region66: #{model_forward.1} parent=0 // pred_check
    _
  $region67: #{model_forward.1} parent=0 // pred_check_branch
    %63 = sbr.rel (0) target = $region69
  $region68: #{model_forward.1} parent=0 // pred_region
    _
  $region69: #{model_forward.1} parent=0 // pred_fallthru
    _
  // Predicated region
  $region70: #{model_forward.1} parent=0 // pred_check
    _
  $region71: #{model_forward.1} parent=0 // pred_check_branch
    %65 = sbr.rel (0) target = $region73
  $region72: #{model_forward.1} parent=0 // pred_region
    _
  $region73: #{model_forward.1} parent=0 // pred_fallthru
    _
  // Predicated region
  $region74: #{model_forward.1} parent=0 // pred_check
    _
  $region75: #{model_forward.1} parent=0 // pred_check_branch
    %67 = sbr.rel (0) target = $region77
  $region76: #{model_forward.1} parent=0 // pred_region
    _
  $region77: #{model_forward.1} parent=0 // pred_fallthru
    _
  // Predicated region
  $region78: #{model_forward.1} parent=0 // pred_check
    _
  $region79: #{model_forward.1} parent=0 // pred_check_branch
    %69 = sbr.rel (0) target = $region81
  $region80: #{model_forward.1} parent=0 // pred_region
    _
  $region81: #{model_forward.1} parent=0 // pred_fallthru
    _
  // Predicated region
  $region82: #{model_forward.1} parent=0 // pred_check
    _
  $region83: #{model_forward.1} parent=0 // pred_check_branch
    %71 = sbr.rel (0) target = $region85
  $region84: #{model_forward.1} parent=0 // pred_region
    _
  $region85: #{model_forward.1} parent=0 // pred_fallthru
    _
  // Predicated region
  $region86: #{model_forward.1} parent=0 // pred_check
    _
  $region87: #{model_forward.1} parent=0 // pred_check_branch
    %73 = sbr.rel (0) target = $region89
  $region88: #{model_forward.1} parent=0 // pred_region
    _
  $region89: #{model_forward.1} parent=0 // pred_fallthru
    _
  // Predicated region
  $region90: #{model_forward.1} parent=0 // pred_check
    _
  $region91: #{model_forward.1} parent=0 // pred_check_branch
    %75 = sbr.rel (0) target = $region93
  $region92: #{model_forward.1} parent=0 // pred_region
    _
  $region93: #{model_forward.1} parent=0 // pred_fallthru
    _
  // Predicated region
  $region94: #{model_forward.1} parent=0 // pred_check
    _
  $region95: #{model_forward.1} parent=0 // pred_check_branch
    %77 = sbr.rel (0) target = $region97
  $region96: #{model_forward.1} parent=0 // pred_region
    _
  $region97: #{model_forward.1} parent=0 // pred_fallthru
    _
  // Predicated region
  $region98: #{model_forward.1} parent=0 // pred_check
    _
  $region99: #{model_forward.1} parent=0 // pred_check_branch
    %79 = sbr.rel (0) target = $region101
  $region100: #{model_forward.1} parent=0 // pred_region
    _
  $region101: #{model_forward.1} parent=0 // pred_fallthru
    _
  %v80 = vld [vmem:[%s0] sm:$0xff]
  %v81 = vld [vmem:[%s0 + $0x8] sm:$0xff]
  %v82 = vlaneseq
  %v83 = vand.u32 %v82, 127
  %84 = vset.pattern.permute.xlu0 0
  %85 = vperm.xlu0 %84, %v80
  %v86 = vpop.permute.xlu0 %85
  %87 = vset.pattern.permute.xlu0 0
  %88 = vperm.xlu0 %87, %v81
  %v89 = vpop.permute.xlu0 %88
  %vm90 = vcmp.eq.s32.totalorder %v83, %v86
  %vm91 = vcmp.eq.s32.totalorder %v83, %v89
  %v92 = vsel %vm90, 1.0, 0.0
  %v93 = vsel %vm91, 1.0, 0.0
  %v94 = vld [vmem:[%s2] sm:$0xff]
  %v95 = vld [vmem:[%s2 + $0x8] sm:$0xff]
  %v96 = vld [vmem:[%s2 + $0x10] sm:$0xff]
  %v97 = vld [vmem:[%s2 + $0x18] sm:$0xff]
  %v98 = vld [vmem:[%s2 + $0x20] sm:$0xff]
  %v99 = vld [vmem:[%s2 + $0x28] sm:$0xff]
  %v100 = vld [vmem:[%s2 + $0x30] sm:$0xff]
  %v101 = vld [vmem:[%s2 + $0x38] sm:$0xff]
  %v102 = vld [vmem:[%s2 + $0x40] sm:$0xff]
  %v103 = vld [vmem:[%s2 + $0x48] sm:$0xff]
  %v104 = vld [vmem:[%s2 + $0x50] sm:$0xff]
  %v105 = vld [vmem:[%s2 + $0x58] sm:$0xff]
  %v106 = vld [vmem:[%s2 + $0x60] sm:$0xff]
  %v107 = vld [vmem:[%s2 + $0x68] sm:$0xff]
  %v108 = vld [vmem:[%s2 + $0x70] sm:$0xff]
  %v109 = vld [vmem:[%s2 + $0x78] sm:$0xff]
  %110 = vmatprep.subr.mxu0 0.0
  %111 = vmatpush1.msra.mxu0 %v94
  %112 = vmatprep.subr.mxu0 0.0
  %113 = vmatpush1.msra.mxu0 %v95
  %114 = vmatprep.subr.mxu0 0.0
  %115 = vmatpush1.msra.mxu0 %v96
  %116 = vmatprep.subr.mxu0 0.0
  %117 = vmatpush1.msra.mxu0 %v97
  %118 = vmatprep.subr.mxu0 0.0
  %119 = vmatpush1.msra.mxu0 %v98
  %120 = vmatprep.subr.mxu0 0.0
  %121 = vmatpush1.msra.mxu0 %v99
  %122 = vmatprep.subr.mxu0 0.0
  %123 = vmatpush1.msra.mxu0 %v100
  %124 = vmatprep.subr.mxu0 0.0
  %125 = vmatpush1.msra.mxu0 %v101
  %126 = vmatprep.subr.mxu0 0.0
  %127 = vmatpush1.msra.mxu0 %v102
  %128 = vmatprep.subr.mxu0 0.0
  %129 = vmatpush1.msra.mxu0 %v103
  %130 = vmatprep.subr.mxu0 0.0
  %131 = vmatpush1.msra.mxu0 %v104
  %132 = vmatprep.subr.mxu0 0.0
  %133 = vmatpush1.msra.mxu0 %v105
  %134 = vmatprep.subr.mxu0 0.0
  %135 = vmatpush1.msra.mxu0 %v106
  %136 = vmatprep.subr.mxu0 0.0
  %137 = vmatpush1.msra.mxu0 %v107
  %138 = vmatprep.subr.mxu0 0.0
  %139 = vmatpush1.msra.mxu0 %v108
  %140 = vmatprep.subr.mxu0 0.0
  %141 = vmatpush1.msra.mxu0 %v109
  %142 = vmatprep.subr.mxu0 0.0
  %143 = vmatpush1.msra.mxu0 0.0
  %144 = vmatprep.subr.mxu0 0.0
  %145 = vmatpush1.msra.mxu0 0.0
  %146 = vmatprep.subr.mxu0 0.0
  %147 = vmatpush1.msra.mxu0 0.0
  %148 = vmatprep.subr.mxu0 0.0
  %149 = vmatpush1.msra.mxu0 0.0
  %150 = vmatprep.subr.mxu0 0.0
  %151 = vmatpush1.msra.mxu0 0.0
  %152 = vmatprep.subr.mxu0 0.0
  %153 = vmatpush1.msra.mxu0 0.0
  %154 = vmatprep.subr.mxu0 0.0
  %155 = vmatpush1.msra.mxu0 0.0
  %156 = vmatprep.subr.mxu0 0.0
  %157 = vmatpush1.msra.mxu0 0.0
  %158 = vmatprep.subr.mxu0 0.0
  %159 = vmatpush1.msra.mxu0 0.0
  %160 = vmatprep.subr.mxu0 0.0
  %161 = vmatpush1.msra.mxu0 0.0
  %162 = vmatprep.subr.mxu0 0.0
  %163 = vmatpush1.msra.mxu0 0.0
  %164 = vmatprep.subr.mxu0 0.0
  %165 = vmatpush1.msra.mxu0 0.0
  %166 = vmatprep.subr.mxu0 0.0
  %167 = vmatpush1.msra.mxu0 0.0
  %168 = vmatprep.subr.mxu0 0.0
  %169 = vmatpush1.msra.mxu0 0.0
  %170 = vmatprep.subr.mxu0 0.0
  %171 = vmatpush1.msra.mxu0 0.0
  %172 = vmatprep.subr.mxu0 0.0
  %173 = vmatpush1.msra.mxu0 0.0
  %174 = vmatprep.mubr.f32.mxu0 0.0
  %175 = vmatmul.mubr.f32.gmra.mrb[0].mxu0 %v92
  %v176 = vpop.f32.mrb[0].mxu0
  %v177 = vadd.f32 0.0, %v176
  %v178 = vpop.f32.mrb[0].mxu0
  %179 = vmatprep.mubr.f32.mxu0 0.0
  %180 = vmatmul.mubr.f32.gmra.mrb[0].mxu0 %v93
  %v181 = vpop.f32.mrb[0].mxu0
  %v182 = vadd.f32 0.0, %v181
  %v183 = vpop.f32.mrb[0].mxu0
  %184 = vdwg.mxu0
  %v185 = vld [vmem:[%s3] sm:$0xff]
  %v186 = vadd.f32 %v177, %v185
  %v187 = vadd.f32 %v182, %v185
  %v188 = vld [vmem:[%s4] sm:$0x1]
  %v190 = vlaneseq
  %v191 = vshrl.u32 %v190, 7
  %v192 = vsub.s32 0, %v191
  %v193 = vrot.slane %v188, %v192
  %v195 = vadd.f32 %v186, %v193
  %v196 = vadd.f32 %v187, %v193
  %v197 = vld [vmem:[%s5] sm:$0x1]
  %v198 = vld [vmem:[%s6] sm:$0x1]
  %vm199 = vcmask 261120
  %v200 = vsel %vm199, %v195, 0.0
  %201 = vadd.xlane.f32.xlu0 %v200
  %v202 = vpop.xlane.xlu0 %201
  %v203 = vsel %vm199, %v196, 0.0
  %204 = vadd.xlane.f32.xlu0 %v203
  %v205 = vpop.xlane.xlu0 %204
  %v206 = vrcp.pop 32.0
  %v207 = vmul.f32 %v202, %v206
  %v208 = vmul.f32 %v205, %v206
  %v209 = vsub.f32 %v195, %v207
  %v210 = vsub.f32 %v196, %v208
  %v211 = vmul.f32 %v209, %v209
  %v212 = vmul.f32 %v210, %v210
  %v213 = vsel %vm199, %v211, 0.0
  %214 = vadd.xlane.f32.xlu0 %v213
  %v215 = vpop.xlane.xlu0 %214
  %v216 = vsel %vm199, %v212, 0.0
  %217 = vadd.xlane.f32.xlu0 %v216
  %v218 = vpop.xlane.xlu0 %217
  %v219 = vmul.f32 %v215, %v206
  %v220 = vmul.f32 %v218, %v206
  %v221 = vadd.f32 %v219, 1e-05
  %v222 = vadd.f32 %v220, 1e-05
  %v223 = vrsqrt.pop %v221
  %v224 = vrsqrt.pop %v222
  %v225 = vmul.f32 %v209, %v223
  %v226 = vmul.f32 %v210, %v224
  %v228 = vlaneseq
  %v229 = vshrl.u32 %v228, 7
  %v230 = vsub.s32 0, %v229
  %v231 = vrot.slane %v197, %v230
  %v233 = vmul.f32 %v225, %v231
  %v234 = vmul.f32 %v226, %v231
  %v236 = vlaneseq
  %v237 = vshrl.u32 %v236, 7
  %v238 = vsub.s32 0, %v237
  %v239 = vrot.slane %v198, %v238
  %v241 = vadd.f32 %v233, %v239
  %v242 = vadd.f32 %v234, %v239
  %v243 = vld [vmem:[%s1] sm:$0x3]
  %v244 = vcvt.s32.f32 %v243
  %v245 = vsub.f32 1.0, %v244
  %v246 = vmul.f32 %v245, -1e+09
  %v247 = vld [vmem:[%s7] sm:$0xff]
  %v248 = vld [vmem:[%s7 + $0x8] sm:$0xff]
  %v249 = vld [vmem:[%s7 + $0x10] sm:$0xff]
  %v250 = vld [vmem:[%s7 + $0x18] sm:$0xff]
  %v251 = vld [vmem:[%s8] sm:$0x1]
  %v253 = vlaneseq
  %v254 = vshrl.u32 %v253, 7
  %v255 = vsub.s32 0, %v254
  %v256 = vrot.slane %v251, %v255
  %v259 = vsel %vm199, %v241, 0
  %v262 = vsel %vm199, %v242, 0
  %264 = vmatprep.subr.mxu0 0.0
  %265 = vmatpush1.msra.mxu0 %v247
  %266 = vmatprep.subr.mxu0 0.0
  %267 = vmatpush1.msra.mxu0 %v248
  %268 = vmatprep.subr.mxu0 0.0
  %269 = vmatpush1.msra.mxu0 %v249
  %270 = vmatprep.subr.mxu0 0.0
  %271 = vmatpush1.msra.mxu0 %v250
  %272 = vmatprep.subr.mxu0 0.0
  %273 = vmatpush1.msra.mxu0 0.0
  %274 = vmatprep.subr.mxu0 0.0
  %275 = vmatpush1.msra.mxu0 0.0
  %276 = vmatprep.subr.mxu0 0.0
  %277 = vmatpush1.msra.mxu0 0.0
  %278 = vmatprep.subr.mxu0 0.0
  %279 = vmatpush1.msra.mxu0 0.0
  %280 = vmatprep.subr.mxu0 0.0
  %281 = vmatpush1.msra.mxu0 0.0
  %282 = vmatprep.subr.mxu0 0.0
  %283 = vmatpush1.msra.mxu0 0.0
  %284 = vmatprep.subr.mxu0 0.0
  %285 = vmatpush1.msra.mxu0 0.0
  %286 = vmatprep.subr.mxu0 0.0
  %287 = vmatpush1.msra.mxu0 0.0
  %288 = vmatprep.subr.mxu0 0.0
  %289 = vmatpush1.msra.mxu0 0.0
  %290 = vmatprep.subr.mxu0 0.0
  %291 = vmatpush1.msra.mxu0 0.0
  %292 = vmatprep.subr.mxu0 0.0
  %293 = vmatpush1.msra.mxu0 0.0
  %294 = vmatprep.subr.mxu0 0.0
  %295 = vmatpush1.msra.mxu0 0.0
  %296 = vmatprep.subr.mxu0 0.0
  %297 = vmatpush1.msra.mxu0 0.0
  %298 = vmatprep.subr.mxu0 0.0
  %299 = vmatpush1.msra.mxu0 0.0
  %300 = vmatprep.subr.mxu0 0.0
  %301 = vmatpush1.msra.mxu0 0.0
  %302 = vmatprep.subr.mxu0 0.0
  %303 = vmatpush1.msra.mxu0 0.0
  %304 = vmatprep.subr.mxu0 0.0
  %305 = vmatpush1.msra.mxu0 0.0
  %306 = vmatprep.subr.mxu0 0.0
  %307 = vmatpush1.msra.mxu0 0.0
  %308 = vmatprep.subr.mxu0 0.0
  %309 = vmatpush1.msra.mxu0 0.0
  %310 = vmatprep.subr.mxu0 0.0
  %311 = vmatpush1.msra.mxu0 0.0
  %312 = vmatprep.subr.mxu0 0.0
  %313 = vmatpush1.msra.mxu0 0.0
  %314 = vmatprep.subr.mxu0 0.0
  %315 = vmatpush1.msra.mxu0 0.0
  %316 = vmatprep.subr.mxu0 0.0
  %317 = vmatpush1.msra.mxu0 0.0
  %318 = vmatprep.subr.mxu0 0.0
  %319 = vmatpush1.msra.mxu0 0.0
  %320 = vmatprep.subr.mxu0 0.0
  %321 = vmatpush1.msra.mxu0 0.0
  %322 = vmatprep.subr.mxu0 0.0
  %323 = vmatpush1.msra.mxu0 0.0
  %324 = vmatprep.subr.mxu0 0.0
  %325 = vmatpush1.msra.mxu0 0.0
  %326 = vmatprep.subr.mxu0 0.0
  %327 = vmatpush1.msra.mxu0 0.0
  %328 = vmatprep.mubr.f32.mxu0 0.0
  %329 = vmatmul.mubr.f32.gmra.mrb[0].mxu0 %v259
  %v330 = vpop.f32.mrb[0].mxu0
  %v331 = vadd.f32 %v256, %v330
  %v332 = vpop.f32.mrb[0].mxu0
  %333 = vmatprep.mubr.f32.mxu0 0.0
  %334 = vmatmul.mubr.f32.gmra.mrb[0].mxu0 %v262
  %v335 = vpop.f32.mrb[0].mxu0
  %v336 = vadd.f32 %v256, %v335
  %v337 = vpop.f32.mrb[0].mxu0
  %338 = vdwg.mxu0
  %340 = vrot.lane.b32.xlu0 %v331, 96
  %v341 = vpop.permute.xlu0 %340
  %vm342 = vcmask 130048
  %v343 = vsel %vm342, %v331, 0
  %v345 = vsel %vm342, %v341, 0
  %347 = vmatprep.subr.mxu0 0.0
  %348 = vmatpush1.xpose.msra.mxu0 %v345
  %349 = vmatprep.subr.mxu0 0.0
  %350 = vmatpush1.xpose.msra.mxu0 0.0
  %351 = vmatprep.subr.mxu0 0.0
  %352 = vmatpush1.xpose.msra.mxu0 0.0
  %353 = vmatprep.subr.mxu0 0.0
  %354 = vmatpush1.xpose.msra.mxu0 0.0
  %355 = vmatprep.subr.mxu0 0.0
  %356 = vmatpush1.xpose.msra.mxu0 0.0
  %357 = vmatprep.subr.mxu0 0.0
  %358 = vmatpush1.xpose.msra.mxu0 0.0
  %359 = vmatprep.subr.mxu0 0.0
  %360 = vmatpush1.xpose.msra.mxu0 0.0
  %361 = vmatprep.subr.mxu0 0.0
  %362 = vmatpush1.xpose.msra.mxu0 0.0
  %363 = vmatprep.subr.mxu0 0.0
  %364 = vmatpush1.xpose.msra.mxu0 0.0
  %365 = vmatprep.subr.mxu0 0.0
  %366 = vmatpush1.xpose.msra.mxu0 0.0
  %367 = vmatprep.subr.mxu0 0.0
  %368 = vmatpush1.xpose.msra.mxu0 0.0
  %369 = vmatprep.subr.mxu0 0.0
  %370 = vmatpush1.xpose.msra.mxu0 0.0
  %371 = vmatprep.subr.mxu0 0.0
  %372 = vmatpush1.xpose.msra.mxu0 0.0
  %373 = vmatprep.subr.mxu0 0.0
  %374 = vmatpush1.xpose.msra.mxu0 0.0
  %375 = vmatprep.subr.mxu0 0.0
  %376 = vmatpush1.xpose.msra.mxu0 0.0
  %377 = vmatprep.subr.mxu0 0.0
  %378 = vmatpush1.xpose.msra.mxu0 0.0
  %379 = vmatprep.subr.mxu0 0.0
  %380 = vmatpush1.xpose.msra.mxu0 0.0
  %381 = vmatprep.subr.mxu0 0.0
  %382 = vmatpush1.xpose.msra.mxu0 0.0
  %383 = vmatprep.subr.mxu0 0.0
  %384 = vmatpush1.xpose.msra.mxu0 0.0
  %385 = vmatprep.subr.mxu0 0.0
  %386 = vmatpush1.xpose.msra.mxu0 0.0
  %387 = vmatprep.subr.mxu0 0.0
  %388 = vmatpush1.xpose.msra.mxu0 0.0
  %389 = vmatprep.subr.mxu0 0.0
  %390 = vmatpush1.xpose.msra.mxu0 0.0
  %391 = vmatprep.subr.mxu0 0.0
  %392 = vmatpush1.xpose.msra.mxu0 0.0
  %393 = vmatprep.subr.mxu0 0.0
  %394 = vmatpush1.xpose.msra.mxu0 0.0
  %395 = vmatprep.subr.mxu0 0.0
  %396 = vmatpush1.xpose.msra.mxu0 0.0
  %397 = vmatprep.subr.mxu0 0.0
  %398 = vmatpush1.xpose.msra.mxu0 0.0
  %399 = vmatprep.subr.mxu0 0.0
  %400 = vmatpush1.xpose.msra.mxu0 0.0
  %401 = vmatprep.subr.mxu0 0.0
  %402 = vmatpush1.xpose.msra.mxu0 0.0
  %403 = vmatprep.subr.mxu0 0.0
  %404 = vmatpush1.xpose.msra.mxu0 0.0
  %405 = vmatprep.subr.mxu0 0.0
  %406 = vmatpush1.xpose.msra.mxu0 0.0
  %407 = vmatprep.subr.mxu0 0.0
  %408 = vmatpush1.xpose.msra.mxu0 0.0
  %409 = vmatprep.subr.mxu0 0.0
  %410 = vmatpush1.xpose.msra.mxu0 0.0
  %411 = vmatprep.mubr.f32.mxu0 0.0
  %412 = vmatmul.mubr.f32.gmra.mrb[0].mxu0 %v343
  %v413 = vpop.f32.mrb[0].mxu0
  %v414 = vadd.f32 0.0, %v413
  %v415 = vpop.f32.mrb[0].mxu0
  %416 = vdwg.mxu0
  %v417 = vmul.f32 %v414, 0.25
  %v418 = vlaneseq
  %v419 = vshrl.u32 %v418, 7
  %v420 = vsub.s32 0, %v419
  %v421 = vrot.slane %v246, %v420
  %v422 = vadd.f32 %v417, %v421
  %vm423 = vcmask 64512
  %v424 = vsel %vm423, %v422, -inf
  %425 = vmax.xlane.f32.xlu0 %v424
  %v426 = vpop.xlane.xlu0 %425
  %v427 = vsub.f32 %v422, %v426
  %v428 = vmul.f32 %v427, 1.442695
  %v429 = vpow.pop %v428
  %v430 = vsel %vm423, %v429, 0.0
  %431 = vadd.xlane.f32.xlu0 %v430
  %v432 = vpop.xlane.xlu0 %431
  %v433 = vrcp.pop %v432
  %v434 = vmul.f32 %v429, %v433
  %435 = vrot.lane.b32.xlu0 %v331, 64
  %v436 = vpop.permute.xlu0 %435
  %v439 = vsel %vm423, %v434, 0
  %441 = vmatprep.subr.mxu0 0.0
  %442 = vmatpush1.msra.mxu0 %v436
  %443 = vmatprep.subr.mxu0 0.0
  %444 = vmatpush1.msra.mxu0 0.0
  %445 = vmatprep.subr.mxu0 0.0
  %446 = vmatpush1.msra.mxu0 0.0
  %447 = vmatprep.subr.mxu0 0.0
  %448 = vmatpush1.msra.mxu0 0.0
  %449 = vmatprep.subr.mxu0 0.0
  %450 = vmatpush1.msra.mxu0 0.0
  %451 = vmatprep.subr.mxu0 0.0
  %452 = vmatpush1.msra.mxu0 0.0
  %453 = vmatprep.subr.mxu0 0.0
  %454 = vmatpush1.msra.mxu0 0.0
  %455 = vmatprep.subr.mxu0 0.0
  %456 = vmatpush1.msra.mxu0 0.0
  %457 = vmatprep.subr.mxu0 0.0
  %458 = vmatpush1.msra.mxu0 0.0
  %459 = vmatprep.subr.mxu0 0.0
  %460 = vmatpush1.msra.mxu0 0.0
  %461 = vmatprep.subr.mxu0 0.0
  %462 = vmatpush1.msra.mxu0 0.0
  %463 = vmatprep.subr.mxu0 0.0
  %464 = vmatpush1.msra.mxu0 0.0
  %465 = vmatprep.subr.mxu0 0.0
  %466 = vmatpush1.msra.mxu0 0.0
  %467 = vmatprep.subr.mxu0 0.0
  %468 = vmatpush1.msra.mxu0 0.0
  %469 = vmatprep.subr.mxu0 0.0
  %470 = vmatpush1.msra.mxu0 0.0
  %471 = vmatprep.subr.mxu0 0.0
  %472 = vmatpush1.msra.mxu0 0.0
  %473 = vmatprep.subr.mxu0 0.0
  %474 = vmatpush1.msra.mxu0 0.0
  %475 = vmatprep.subr.mxu0 0.0
  %476 = vmatpush1.msra.mxu0 0.0
  %477 = vmatprep.subr.mxu0 0.0
  %478 = vmatpush1.msra.mxu0 0.0
  %479 = vmatprep.subr.mxu0 0.0
  %480 = vmatpush1.msra.mxu0 0.0
  %481 = vmatprep.subr.mxu0 0.0
  %482 = vmatpush1.msra.mxu0 0.0
  %483 = vmatprep.subr.mxu0 0.0
  %484 = vmatpush1.msra.mxu0 0.0
  %485 = vmatprep.subr.mxu0 0.0
  %486 = vmatpush1.msra.mxu0 0.0
  %487 = vmatprep.subr.mxu0 0.0
  %488 = vmatpush1.msra.mxu0 0.0
  %489 = vmatprep.subr.mxu0 0.0
  %490 = vmatpush1.msra.mxu0 0.0
  %491 = vmatprep.subr.mxu0 0.0
  %492 = vmatpush1.msra.mxu0 0.0
  %493 = vmatprep.subr.mxu0 0.0
  %494 = vmatpush1.msra.mxu0 0.0
  %495 = vmatprep.subr.mxu0 0.0
  %496 = vmatpush1.msra.mxu0 0.0
  %497 = vmatprep.subr.mxu0 0.0
  %498 = vmatpush1.msra.mxu0 0.0
  %499 = vmatprep.subr.mxu0 0.0
  %500 = vmatpush1.msra.mxu0 0.0
  %501 = vmatprep.subr.mxu0 0.0
  %502 = vmatpush1.msra.mxu0 0.0
  %503 = vmatprep.subr.mxu0 0.0
  %504 = vmatpush1.msra.mxu0 0.0
  %505 = vmatprep.mubr.f32.mxu0 0.0
  %506 = vmatmul.mubr.f32.gmra.mrb[0].mxu0 %v439
  %v507 = vpop.f32.mrb[0].mxu0
  %v508 = vadd.f32 0.0, %v507
  %v509 = vpop.f32.mrb[0].mxu0
  %510 = vdwg.mxu0
  %511 = vrot.lane.b32.xlu0 %v331, 112
  %v512 = vpop.permute.xlu0 %511
  %513 = vrot.lane.b32.xlu0 %v331, 80
  %v514 = vpop.permute.xlu0 %513
  %v515 = vsel %vm342, %v512, 0
  %v517 = vsel %vm342, %v514, 0
  %519 = vmatprep.subr.mxu0 0.0
  %520 = vmatpush1.xpose.msra.mxu0 %v517
  %521 = vmatprep.subr.mxu0 0.0
  %522 = vmatpush1.xpose.msra.mxu0 0.0
  %523 = vmatprep.subr.mxu0 0.0
  %524 = vmatpush1.xpose.msra.mxu0 0.0
  %525 = vmatprep.subr.mxu0 0.0
  %526 = vmatpush1.xpose.msra.mxu0 0.0
  %527 = vmatprep.subr.mxu0 0.0
  %528 = vmatpush1.xpose.msra.mxu0 0.0
  %529 = vmatprep.subr.mxu0 0.0
  %530 = vmatpush1.xpose.msra.mxu0 0.0
  %531 = vmatprep.subr.mxu0 0.0
  %532 = vmatpush1.xpose.msra.mxu0 0.0
  %533 = vmatprep.subr.mxu0 0.0
  %534 = vmatpush1.xpose.msra.mxu0 0.0
  %535 = vmatprep.subr.mxu0 0.0
  %536 = vmatpush1.xpose.msra.mxu0 0.0
  %537 = vmatprep.subr.mxu0 0.0
  %538 = vmatpush1.xpose.msra.mxu0 0.0
  %539 = vmatprep.subr.mxu0 0.0
  %540 = vmatpush1.xpose.msra.mxu0 0.0
  %541 = vmatprep.subr.mxu0 0.0
  %542 = vmatpush1.xpose.msra.mxu0 0.0
  %543 = vmatprep.subr.mxu0 0.0
  %544 = vmatpush1.xpose.msra.mxu0 0.0
  %545 = vmatprep.subr.mxu0 0.0
  %546 = vmatpush1.xpose.msra.mxu0 0.0
  %547 = vmatprep.subr.mxu0 0.0
  %548 = vmatpush1.xpose.msra.mxu0 0.0
  %549 = vmatprep.subr.mxu0 0.0
  %550 = vmatpush1.xpose.msra.mxu0 0.0
  %551 = vmatprep.subr.mxu0 0.0
  %552 = vmatpush1.xpose.msra.mxu0 0.0
  %553 = vmatprep.subr.mxu0 0.0
  %554 = vmatpush1.xpose.msra.mxu0 0.0
  %555 = vmatprep.subr.mxu0 0.0
  %556 = vmatpush1.xpose.msra.mxu0 0.0
  %557 = vmatprep.subr.mxu0 0.0
  %558 = vmatpush1.xpose.msra.mxu0 0.0
  %559 = vmatprep.subr.mxu0 0.0
  %560 = vmatpush1.xpose.msra.mxu0 0.0
  %561 = vmatprep.subr.mxu0 0.0
  %562 = vmatpush1.xpose.msra.mxu0 0.0
  %563 = vmatprep.subr.mxu0 0.0
  %564 = vmatpush1.xpose.msra.mxu0 0.0
  %565 = vmatprep.subr.mxu0 0.0
  %566 = vmatpush1.xpose.msra.mxu0 0.0
  %567 = vmatprep.subr.mxu0 0.0
  %568 = vmatpush1.xpose.msra.mxu0 0.0
  %569 = vmatprep.subr.mxu0 0.0
  %570 = vmatpush1.xpose.msra.mxu0 0.0
  %571 = vmatprep.subr.mxu0 0.0
  %572 = vmatpush1.xpose.msra.mxu0 0.0
  %573 = vmatprep.subr.mxu0 0.0
  %574 = vmatpush1.xpose.msra.mxu0 0.0
  %575 = vmatprep.subr.mxu0 0.0
  %576 = vmatpush1.xpose.msra.mxu0 0.0
  %577 = vmatprep.subr.mxu0 0.0
  %578 = vmatpush1.xpose.msra.mxu0 0.0
  %579 = vmatprep.subr.mxu0 0.0
  %580 = vmatpush1.xpose.msra.mxu0 0.0
  %581 = vmatprep.subr.mxu0 0.0
  %582 = vmatpush1.xpose.msra.mxu0 0.0
  %583 = vmatprep.mubr.f32.mxu0 0.0
  %584 = vmatmul.mubr.f32.gmra.mrb[0].mxu0 %v515
  %v585 = vpop.f32.mrb[0].mxu0
  %v586 = vadd.f32 0.0, %v585
  %v587 = vpop.f32.mrb[0].mxu0
  %588 = vdwg.mxu0
  %v589 = vmul.f32 %v586, 0.25
  %v590 = vadd.f32 %v589, %v421
  %v591 = vsel %vm423, %v590, -inf
  %592 = vmax.xlane.f32.xlu0 %v591
  %v593 = vpop.xlane.xlu0 %592
  %v594 = vsub.f32 %v590, %v593
  %v595 = vmul.f32 %v594, 1.442695
  %v596 = vpow.pop %v595
  %v597 = vsel %vm423, %v596, 0.0
  %598 = vadd.xlane.f32.xlu0 %v597
  %v599 = vpop.xlane.xlu0 %598
  %v600 = vrcp.pop %v599
  %v601 = vmul.f32 %v596, %v600
  %602 = vrot.lane.b32.xlu0 %v331, 48
  %v603 = vpop.permute.xlu0 %602
  %v606 = vsel %vm423, %v601, 0
  %608 = vmatprep.subr.mxu0 0.0
  %609 = vmatpush1.msra.mxu0 %v603
  %610 = vmatprep.subr.mxu0 0.0
  %611 = vmatpush1.msra.mxu0 0.0
  %612 = vmatprep.subr.mxu0 0.0
  %613 = vmatpush1.msra.mxu0 0.0
  %614 = vmatprep.subr.mxu0 0.0
  %615 = vmatpush1.msra.mxu0 0.0
  %616 = vmatprep.subr.mxu0 0.0
  %617 = vmatpush1.msra.mxu0 0.0
  %618 = vmatprep.subr.mxu0 0.0
  %619 = vmatpush1.msra.mxu0 0.0
  %620 = vmatprep.subr.mxu0 0.0
  %621 = vmatpush1.msra.mxu0 0.0
  %622 = vmatprep.subr.mxu0 0.0
  %623 = vmatpush1.msra.mxu0 0.0
  %624 = vmatprep.subr.mxu0 0.0
  %625 = vmatpush1.msra.mxu0 0.0
  %626 = vmatprep.subr.mxu0 0.0
  %627 = vmatpush1.msra.mxu0 0.0
  %628 = vmatprep.subr.mxu0 0.0
  %629 = vmatpush1.msra.mxu0 0.0
  %630 = vmatprep.subr.mxu0 0.0
  %631 = vmatpush1.msra.mxu0 0.0
  %632 = vmatprep.subr.mxu0 0.0
  %633 = vmatpush1.msra.mxu0 0.0
  %634 = vmatprep.subr.mxu0 0.0
  %635 = vmatpush1.msra.mxu0 0.0
  %636 = vmatprep.subr.mxu0 0.0
  %637 = vmatpush1.msra.mxu0 0.0
  %638 = vmatprep.subr.mxu0 0.0
  %639 = vmatpush1.msra.mxu0 0.0
  %640 = vmatprep.subr.mxu0 0.0
  %641 = vmatpush1.msra.mxu0 0.0
  %642 = vmatprep.subr.mxu0 0.0
  %643 = vmatpush1.msra.mxu0 0.0
  %644 = vmatprep.subr.mxu0 0.0
  %645 = vmatpush1.msra.mxu0 0.0
  %646 = vmatprep.subr.mxu0 0.0
  %647 = vmatpush1.msra.mxu0 0.0
  %648 = vmatprep.subr.mxu0 0.0
  %649 = vmatpush1.msra.mxu0 0.0
  %650 = vmatprep.subr.mxu0 0.0
  %651 = vmatpush1.msra.mxu0 0.0
  %652 = vmatprep.subr.mxu0 0.0
  %653 = vmatpush1.msra.mxu0 0.0
  %654 = vmatprep.subr.mxu0 0.0
  %655 = vmatpush1.msra.mxu0 0.0
  %656 = vmatprep.subr.mxu0 0.0
  %657 = vmatpush1.msra.mxu0 0.0
  %658 = vmatprep.subr.mxu0 0.0
  %659 = vmatpush1.msra.mxu0 0.0
  %660 = vmatprep.subr.mxu0 0.0
  %661 = vmatpush1.msra.mxu0 0.0
  %662 = vmatprep.subr.mxu0 0.0
  %663 = vmatpush1.msra.mxu0 0.0
  %664 = vmatprep.subr.mxu0 0.0
  %665 = vmatpush1.msra.mxu0 0.0
  %666 = vmatprep.subr.mxu0 0.0
  %667 = vmatpush1.msra.mxu0 0.0
  %668 = vmatprep.subr.mxu0 0.0
  %669 = vmatpush1.msra.mxu0 0.0
  %670 = vmatprep.subr.mxu0 0.0
  %671 = vmatpush1.msra.mxu0 0.0
  %672 = vmatprep.mubr.f32.mxu0 0.0
  %673 = vmatmul.mubr.f32.gmra.mrb[0].mxu0 %v606
  %v674 = vpop.f32.mrb[0].mxu0
  %v675 = vadd.f32 0.0, %v674
  %v676 = vpop.f32.mrb[0].mxu0
  %677 = vdwg.mxu0
  %679 = vrot.lane.b32.xlu0 %v675, 16
  %v680 = vpop.permute.xlu0 %679
  %v682 = vsel %vm342, %v508, %v680
  %684 = vrot.lane.b32.xlu0 %v336, 96
  %v685 = vpop.permute.xlu0 %684
  %v686 = vsel %vm342, %v336, 0
  %v688 = vsel %vm342, %v685, 0
  %690 = vmatprep.subr.mxu0 0.0
  %691 = vmatpush1.xpose.msra.mxu0 %v688
  %692 = vmatprep.subr.mxu0 0.0
  %693 = vmatpush1.xpose.msra.mxu0 0.0
  %694 = vmatprep.subr.mxu0 0.0
  %695 = vmatpush1.xpose.msra.mxu0 0.0
  %696 = vmatprep.subr.mxu0 0.0
  %697 = vmatpush1.xpose.msra.mxu0 0.0
  %698 = vmatprep.subr.mxu0 0.0
  %699 = vmatpush1.xpose.msra.mxu0 0.0
  %700 = vmatprep.subr.mxu0 0.0
  %701 = vmatpush1.xpose.msra.mxu0 0.0
  %702 = vmatprep.subr.mxu0 0.0
  %703 = vmatpush1.xpose.msra.mxu0 0.0
  %704 = vmatprep.subr.mxu0 0.0
  %705 = vmatpush1.xpose.msra.mxu0 0.0
  %706 = vmatprep.subr.mxu0 0.0
  %707 = vmatpush1.xpose.msra.mxu0 0.0
  %708 = vmatprep.subr.mxu0 0.0
  %709 = vmatpush1.xpose.msra.mxu0 0.0
  %710 = vmatprep.subr.mxu0 0.0
  %711 = vmatpush1.xpose.msra.mxu0 0.0
  %712 = vmatprep.subr.mxu0 0.0
  %713 = vmatpush1.xpose.msra.mxu0 0.0
  %714 = vmatprep.subr.mxu0 0.0
  %715 = vmatpush1.xpose.msra.mxu0 0.0
  %716 = vmatprep.subr.mxu0 0.0
  %717 = vmatpush1.xpose.msra.mxu0 0.0
  %718 = vmatprep.subr.mxu0 0.0
  %719 = vmatpush1.xpose.msra.mxu0 0.0
  %720 = vmatprep.subr.mxu0 0.0
  %721 = vmatpush1.xpose.msra.mxu0 0.0
  %722 = vmatprep.subr.mxu0 0.0
  %723 = vmatpush1.xpose.msra.mxu0 0.0
  %724 = vmatprep.subr.mxu0 0.0
  %725 = vmatpush1.xpose.msra.mxu0 0.0
  %726 = vmatprep.subr.mxu0 0.0
  %727 = vmatpush1.xpose.msra.mxu0 0.0
  %728 = vmatprep.subr.mxu0 0.0
  %729 = vmatpush1.xpose.msra.mxu0 0.0
  %730 = vmatprep.subr.mxu0 0.0
  %731 = vmatpush1.xpose.msra.mxu0 0.0
  %732 = vmatprep.subr.mxu0 0.0
  %733 = vmatpush1.xpose.msra.mxu0 0.0
  %734 = vmatprep.subr.mxu0 0.0
  %735 = vmatpush1.xpose.msra.mxu0 0.0
  %736 = vmatprep.subr.mxu0 0.0
  %737 = vmatpush1.xpose.msra.mxu0 0.0
  %738 = vmatprep.subr.mxu0 0.0
  %739 = vmatpush1.xpose.msra.mxu0 0.0
  %740 = vmatprep.subr.mxu0 0.0
  %741 = vmatpush1.xpose.msra.mxu0 0.0
  %742 = vmatprep.subr.mxu0 0.0
  %743 = vmatpush1.xpose.msra.mxu0 0.0
  %744 = vmatprep.subr.mxu0 0.0
  %745 = vmatpush1.xpose.msra.mxu0 0.0
  %746 = vmatprep.subr.mxu0 0.0
  %747 = vmatpush1.xpose.msra.mxu0 0.0
  %748 = vmatprep.subr.mxu0 0.0
  %749 = vmatpush1.xpose.msra.mxu0 0.0
  %750 = vmatprep.subr.mxu0 0.0
  %751 = vmatpush1.xpose.msra.mxu0 0.0
  %752 = vmatprep.subr.mxu0 0.0
  %753 = vmatpush1.xpose.msra.mxu0 0.0
  %754 = vmatprep.mubr.f32.mxu0 0.0
  %755 = vmatmul.mubr.f32.gmra.mrb[0].mxu0 %v686
  %v756 = vpop.f32.mrb[0].mxu0
  %v757 = vadd.f32 0.0, %v756
  %v758 = vpop.f32.mrb[0].mxu0
  %759 = vdwg.mxu0
  %v760 = vmul.f32 %v757, 0.25
  %v761 = vlaneseq
  %v762 = vshrl.u32 %v761, 7
  %v763 = vsub.s32 1, %v762
  %v764 = vrot.slane %v246, %v763
  %v765 = vadd.f32 %v760, %v764
  %v766 = vsel %vm423, %v765, -inf
  %767 = vmax.xlane.f32.xlu0 %v766
  %v768 = vpop.xlane.xlu0 %767
  %v769 = vsub.f32 %v765, %v768
  %v770 = vmul.f32 %v769, 1.442695
  %v771 = vpow.pop %v770
  %v772 = vsel %vm423, %v771, 0.0
  %773 = vadd.xlane.f32.xlu0 %v772
  %v774 = vpop.xlane.xlu0 %773
  %v775 = vrcp.pop %v774
  %v776 = vmul.f32 %v771, %v775
  %777 = vrot.lane.b32.xlu0 %v336, 64
  %v778 = vpop.permute.xlu0 %777
  %v781 = vsel %vm423, %v776, 0
  %783 = vmatprep.subr.mxu0 0.0
  %784 = vmatpush1.msra.mxu0 %v778
  %785 = vmatprep.subr.mxu0 0.0
  %786 = vmatpush1.msra.mxu0 0.0
  %787 = vmatprep.subr.mxu0 0.0
  %788 = vmatpush1.msra.mxu0 0.0
  %789 = vmatprep.subr.mxu0 0.0
  %790 = vmatpush1.msra.mxu0 0.0
  %791 = vmatprep.subr.mxu0 0.0
  %792 = vmatpush1.msra.mxu0 0.0
  %793 = vmatprep.subr.mxu0 0.0
  %794 = vmatpush1.msra.mxu0 0.0
  %795 = vmatprep.subr.mxu0 0.0
  %796 = vmatpush1.msra.mxu0 0.0
  %797 = vmatprep.subr.mxu0 0.0
  %798 = vmatpush1.msra.mxu0 0.0
  %799 = vmatprep.subr.mxu0 0.0
  %800 = vmatpush1.msra.mxu0 0.0
  %801 = vmatprep.subr.mxu0 0.0
  %802 = vmatpush1.msra.mxu0 0.0
  %803 = vmatprep.subr.mxu0 0.0
  %804 = vmatpush1.msra.mxu0 0.0
  %805 = vmatprep.subr.mxu0 0.0
  %806 = vmatpush1.msra.mxu0 0.0
  %807 = vmatprep.subr.mxu0 0.0
  %808 = vmatpush1.msra.mxu0 0.0
  %809 = vmatprep.subr.mxu0 0.0
  %810 = vmatpush1.msra.mxu0 0.0
  %811 = vmatprep.subr.mxu0 0.0
  %812 = vmatpush1.msra.mxu0 0.0
  %813 = vmatprep.subr.mxu0 0.0
  %814 = vmatpush1.msra.mxu0 0.0
  %815 = vmatprep.subr.mxu0 0.0
  %816 = vmatpush1.msra.mxu0 0.0
  %817 = vmatprep.subr.mxu0 0.0
  %818 = vmatpush1.msra.mxu0 0.0
  %819 = vmatprep.subr.mxu0 0.0
  %820 = vmatpush1.msra.mxu0 0.0
  %821 = vmatprep.subr.mxu0 0.0
  %822 = vmatpush1.msra.mxu0 0.0
  %823 = vmatprep.subr.mxu0 0.0
  %824 = vmatpush1.msra.mxu0 0.0
  %825 = vmatprep.subr.mxu0 0.0
  %826 = vmatpush1.msra.mxu0 0.0
  %827 = vmatprep.subr.mxu0 0.0
  %828 = vmatpush1.msra.mxu0 0.0
  %829 = vmatprep.subr.mxu0 0.0
  %830 = vmatpush1.msra.mxu0 0.0
  %831 = vmatprep.subr.mxu0 0.0
  %832 = vmatpush1.msra.mxu0 0.0
  %833 = vmatprep.subr.mxu0 0.0
  %834 = vmatpush1.msra.mxu0 0.0
  %835 = vmatprep.subr.mxu0 0.0
  %836 = vmatpush1.msra.mxu0 0.0
  %837 = vmatprep.subr.mxu0 0.0
  %838 = vmatpush1.msra.mxu0 0.0
  %839 = vmatprep.subr.mxu0 0.0
  %840 = vmatpush1.msra.mxu0 0.0
  %841 = vmatprep.subr.mxu0 0.0
  %842 = vmatpush1.msra.mxu0 0.0
  %843 = vmatprep.subr.mxu0 0.0
  %844 = vmatpush1.msra.mxu0 0.0
  %845 = vmatprep.subr.mxu0 0.0
  %846 = vmatpush1.msra.mxu0 0.0
  %847 = vmatprep.mubr.f32.mxu0 0.0
  %848 = vmatmul.mubr.f32.gmra.mrb[0].mxu0 %v781
  %v849 = vpop.f32.mrb[0].mxu0
  %v850 = vadd.f32 0.0, %v849
  %v851 = vpop.f32.mrb[0].mxu0
  %852 = vdwg.mxu0
  %853 = vrot.lane.b32.xlu0 %v336, 112
  %v854 = vpop.permute.xlu0 %853
  %855 = vrot.lane.b32.xlu0 %v336, 80
  %v856 = vpop.permute.xlu0 %855
  %v857 = vsel %vm342, %v854, 0
  %v859 = vsel %vm342, %v856, 0
  %861 = vmatprep.subr.mxu0 0.0
  %862 = vmatpush1.xpose.msra.mxu0 %v859
  %863 = vmatprep.subr.mxu0 0.0
  %864 = vmatpush1.xpose.msra.mxu0 0.0
  %865 = vmatprep.subr.mxu0 0.0
  %866 = vmatpush1.xpose.msra.mxu0 0.0
  %867 = vmatprep.subr.mxu0 0.0
  %868 = vmatpush1.xpose.msra.mxu0 0.0
  %869 = vmatprep.subr.mxu0 0.0
  %870 = vmatpush1.xpose.msra.mxu0 0.0
  %871 = vmatprep.subr.mxu0 0.0
  %872 = vmatpush1.xpose.msra.mxu0 0.0
  %873 = vmatprep.subr.mxu0 0.0
  %874 = vmatpush1.xpose.msra.mxu0 0.0
  %875 = vmatprep.subr.mxu0 0.0
  %876 = vmatpush1.xpose.msra.mxu0 0.0
  %877 = vmatprep.subr.mxu0 0.0
  %878 = vmatpush1.xpose.msra.mxu0 0.0
  %879 = vmatprep.subr.mxu0 0.0
  %880 = vmatpush1.xpose.msra.mxu0 0.0
  %881 = vmatprep.subr.mxu0 0.0
  %882 = vmatpush1.xpose.msra.mxu0 0.0
  %883 = vmatprep.subr.mxu0 0.0
  %884 = vmatpush1.xpose.msra.mxu0 0.0
  %885 = vmatprep.subr.mxu0 0.0
  %886 = vmatpush1.xpose.msra.mxu0 0.0
  %887 = vmatprep.subr.mxu0 0.0
  %888 = vmatpush1.xpose.msra.mxu0 0.0
  %889 = vmatprep.subr.mxu0 0.0
  %890 = vmatpush1.xpose.msra.mxu0 0.0
  %891 = vmatprep.subr.mxu0 0.0
  %892 = vmatpush1.xpose.msra.mxu0 0.0
  %893 = vmatprep.subr.mxu0 0.0
  %894 = vmatpush1.xpose.msra.mxu0 0.0
  %895 = vmatprep.subr.mxu0 0.0
  %896 = vmatpush1.xpose.msra.mxu0 0.0
  %897 = vmatprep.subr.mxu0 0.0
  %898 = vmatpush1.xpose.msra.mxu0 0.0
  %899 = vmatprep.subr.mxu0 0.0
  %900 = vmatpush1.xpose.msra.mxu0 0.0
  %901 = vmatprep.subr.mxu0 0.0
  %902 = vmatpush1.xpose.msra.mxu0 0.0
  %903 = vmatprep.subr.mxu0 0.0
  %904 = vmatpush1.xpose.msra.mxu0 0.0
  %905 = vmatprep.subr.mxu0 0.0
  %906 = vmatpush1.xpose.msra.mxu0 0.0
  %907 = vmatprep.subr.mxu0 0.0
  %908 = vmatpush1.xpose.msra.mxu0 0.0
  %909 = vmatprep.subr.mxu0 0.0
  %910 = vmatpush1.xpose.msra.mxu0 0.0
  %911 = vmatprep.subr.mxu0 0.0
  %912 = vmatpush1.xpose.msra.mxu0 0.0
  %913 = vmatprep.subr.mxu0 0.0
  %914 = vmatpush1.xpose.msra.mxu0 0.0
  %915 = vmatprep.subr.mxu0 0.0
  %916 = vmatpush1.xpose.msra.mxu0 0.0
  %917 = vmatprep.subr.mxu0 0.0
  %918 = vmatpush1.xpose.msra.mxu0 0.0
  %919 = vmatprep.subr.mxu0 0.0
  %920 = vmatpush1.xpose.msra.mxu0 0.0
  %921 = vmatprep.subr.mxu0 0.0
  %922 = vmatpush1.xpose.msra.mxu0 0.0
  %923 = vmatprep.subr.mxu0 0.0
  %924 = vmatpush1.xpose.msra.mxu0 0.0
  %925 = vmatprep.mubr.f32.mxu0 0.0
  %926 = vmatmul.mubr.f32.gmra.mrb[0].mxu0 %v857
  %v927 = vpop.f32.mrb[0].mxu0
  %v928 = vadd.f32 0.0, %v927
  %v929 = vpop.f32.mrb[0].mxu0
  %930 = vdwg.mxu0
  %v931 = vmul.f32 %v928, 0.25
  %v932 = vadd.f32 %v931, %v764
  %v933 = vsel %vm423, %v932, -inf
  %934 = vmax.xlane.f32.xlu0 %v933
  %v935 = vpop.xlane.xlu0 %934
  %v936 = vsub.f32 %v932, %v935
  %v937 = vmul.f32 %v936, 1.442695
  %v938 = vpow.pop %v937
  %v939 = vsel %vm423, %v938, 0.0
  %940 = vadd.xlane.f32.xlu0 %v939
  %v941 = vpop.xlane.xlu0 %940
  %v942 = vrcp.pop %v941
  %v943 = vmul.f32 %v938, %v942
  %944 = vrot.lane.b32.xlu0 %v336, 48
  %v945 = vpop.permute.xlu0 %944
  %v948 = vsel %vm423, %v943, 0
  %950 = vmatprep.subr.mxu0 0.0
  %951 = vmatpush1.msra.mxu0 %v945
  %952 = vmatprep.subr.mxu0 0.0
  %953 = vmatpush1.msra.mxu0 0.0
  %954 = vmatprep.subr.mxu0 0.0
  %955 = vmatpush1.msra.mxu0 0.0
  %956 = vmatprep.subr.mxu0 0.0
  %957 = vmatpush1.msra.mxu0 0.0
  %958 = vmatprep.subr.mxu0 0.0
  %959 = vmatpush1.msra.mxu0 0.0
  %960 = vmatprep.subr.mxu0 0.0
  %961 = vmatpush1.msra.mxu0 0.0
  %962 = vmatprep.subr.mxu0 0.0
  %963 = vmatpush1.msra.mxu0 0.0
  %964 = vmatprep.subr.mxu0 0.0
  %965 = vmatpush1.msra.mxu0 0.0
  %966 = vmatprep.subr.mxu0 0.0
  %967 = vmatpush1.msra.mxu0 0.0
  %968 = vmatprep.subr.mxu0 0.0
  %969 = vmatpush1.msra.mxu0 0.0
  %970 = vmatprep.subr.mxu0 0.0
  %971 = vmatpush1.msra.mxu0 0.0
  %972 = vmatprep.subr.mxu0 0.0
  %973 = vmatpush1.msra.mxu0 0.0
  %974 = vmatprep.subr.mxu0 0.0
  %975 = vmatpush1.msra.mxu0 0.0
  %976 = vmatprep.subr.mxu0 0.0
  %977 = vmatpush1.msra.mxu0 0.0
  %978 = vmatprep.subr.mxu0 0.0
  %979 = vmatpush1.msra.mxu0 0.0
  %980 = vmatprep.subr.mxu0 0.0
  %981 = vmatpush1.msra.mxu0 0.0
  %982 = vmatprep.subr.mxu0 0.0
  %983 = vmatpush1.msra.mxu0 0.0
  %984 = vmatprep.subr.mxu0 0.0
  %985 = vmatpush1.msra.mxu0 0.0
  %986 = vmatprep.subr.mxu0 0.0
  %987 = vmatpush1.msra.mxu0 0.0
  %988 = vmatprep.subr.mxu0 0.0
  %989 = vmatpush1.msra.mxu0 0.0
  %990 = vmatprep.subr.mxu0 0.0
  %991 = vmatpush1.msra.mxu0 0.0
  %992 = vmatprep.subr.mxu0 0.0
  %993 = vmatpush1.msra.mxu0 0.0
  %994 = vmatprep.subr.mxu0 0.0
  %995 = vmatpush1.msra.mxu0 0.0
  %996 = vmatprep.subr.mxu0 0.0
  %997 = vmatpush1.msra.mxu0 0.0
  %998 = vmatprep.subr.mxu0 0.0
  %999 = vmatpush1.msra.mxu0 0.0
  %1000 = vmatprep.subr.mxu0 0.0
  %1001 = vmatpush1.msra.mxu0 0.0
  %1002 = vmatprep.subr.mxu0 0.0
  %1003 = vmatpush1.msra.mxu0 0.0
  %1004 = vmatprep.subr.mxu0 0.0
  %1005 = vmatpush1.msra.mxu0 0.0
  %1006 = vmatprep.subr.mxu0 0.0
  %1007 = vmatpush1.msra.mxu0 0.0
  %1008 = vmatprep.subr.mxu0 0.0
  %1009 = vmatpush1.msra.mxu0 0.0
  %1010 = vmatprep.subr.mxu0 0.0
  %1011 = vmatpush1.msra.mxu0 0.0
  %1012 = vmatprep.subr.mxu0 0.0
  %1013 = vmatpush1.msra.mxu0 0.0
  %1014 = vmatprep.mubr.f32.mxu0 0.0
  %1015 = vmatmul.mubr.f32.gmra.mrb[0].mxu0 %v948
  %v1016 = vpop.f32.mrb[0].mxu0
  %v1017 = vadd.f32 0.0, %v1016
  %v1018 = vpop.f32.mrb[0].mxu0
  %1019 = vdwg.mxu0
  %1021 = vrot.lane.b32.xlu0 %v1017, 16
  %v1022 = vpop.permute.xlu0 %1021
  %v1024 = vsel %vm342, %v850, %v1022
  %v1025 = vld [vmem:[%s9] sm:$0xff]
  %v1026 = vld [vmem:[%s9 + $0x8] sm:$0xff]
  %v1027 = vld [vmem:[%s9 + $0x10] sm:$0xff]
  %v1028 = vld [vmem:[%s9 + $0x18] sm:$0xff]
  %v1029 = vld [vmem:[%s10] sm:$0x1]
  %v1031 = vlaneseq
  %v1032 = vshrl.u32 %v1031, 7
  %v1033 = vsub.s32 0, %v1032
  %v1034 = vrot.slane %v1029, %v1033
  %v1037 = vsel %vm199, %v682, 0
  %v1040 = vsel %vm199, %v1024, 0
  %1042 = vmatprep.subr.mxu0 0.0
  %1043 = vmatpush1.msra.mxu0 %v1025
  %1044 = vmatprep.subr.mxu0 0.0
  %1045 = vmatpush1.msra.mxu0 %v1026
  %1046 = vmatprep.subr.mxu0 0.0
  %1047 = vmatpush1.msra.mxu0 %v1027
  %1048 = vmatprep.subr.mxu0 0.0
  %1049 = vmatpush1.msra.mxu0 %v1028
  %1050 = vmatprep.subr.mxu0 0.0
  %1051 = vmatpush1.msra.mxu0 0.0
  %1052 = vmatprep.subr.mxu0 0.0
  %1053 = vmatpush1.msra.mxu0 0.0
  %1054 = vmatprep.subr.mxu0 0.0
  %1055 = vmatpush1.msra.mxu0 0.0
  %1056 = vmatprep.subr.mxu0 0.0
  %1057 = vmatpush1.msra.mxu0 0.0
  %1058 = vmatprep.subr.mxu0 0.0
  %1059 = vmatpush1.msra.mxu0 0.0
  %1060 = vmatprep.subr.mxu0 0.0
  %1061 = vmatpush1.msra.mxu0 0.0
  %1062 = vmatprep.subr.mxu0 0.0
  %1063 = vmatpush1.msra.mxu0 0.0
  %1064 = vmatprep.subr.mxu0 0.0
  %1065 = vmatpush1.msra.mxu0 0.0
  %1066 = vmatprep.subr.mxu0 0.0
  %1067 = vmatpush1.msra.mxu0 0.0
  %1068 = vmatprep.subr.mxu0 0.0
  %1069 = vmatpush1.msra.mxu0 0.0
  %1070 = vmatprep.subr.mxu0 0.0
  %1071 = vmatpush1.msra.mxu0 0.0
  %1072 = vmatprep.subr.mxu0 0.0
  %1073 = vmatpush1.msra.mxu0 0.0
  %1074 = vmatprep.subr.mxu0 0.0
  %1075 = vmatpush1.msra.mxu0 0.0
  %1076 = vmatprep.subr.mxu0 0.0
  %1077 = vmatpush1.msra.mxu0 0.0
  %1078 = vmatprep.subr.mxu0 0.0
  %1079 = vmatpush1.msra.mxu0 0.0
  %1080 = vmatprep.subr.mxu0 0.0
  %1081 = vmatpush1.msra.mxu0 0.0
  %1082 = vmatprep.subr.mxu0 0.0
  %1083 = vmatpush1.msra.mxu0 0.0
  %1084 = vmatprep.subr.mxu0 0.0
  %1085 = vmatpush1.msra.mxu0 0.0
  %1086 = vmatprep.subr.mxu0 0.0
  %1087 = vmatpush1.msra.mxu0 0.0
  %1088 = vmatprep.subr.mxu0 0.0
  %1089 = vmatpush1.msra.mxu0 0.0
  %1090 = vmatprep.subr.mxu0 0.0
  %1091 = vmatpush1.msra.mxu0 0.0
  %1092 = vmatprep.subr.mxu0 0.0
  %1093 = vmatpush1.msra.mxu0 0.0
  %1094 = vmatprep.subr.mxu0 0.0
  %1095 = vmatpush1.msra.mxu0 0.0
  %1096 = vmatprep.subr.mxu0 0.0
  %1097 = vmatpush1.msra.mxu0 0.0
  %1098 = vmatprep.subr.mxu0 0.0
  %1099 = vmatpush1.msra.mxu0 0.0
  %1100 = vmatprep.subr.mxu0 0.0
  %1101 = vmatpush1.msra.mxu0 0.0
  %1102 = vmatprep.subr.mxu0 0.0
  %1103 = vmatpush1.msra.mxu0 0.0
  %1104 = vmatprep.subr.mxu0 0.0
  %1105 = vmatpush1.msra.mxu0 0.0
  %1106 = vmatprep.mubr.f32.mxu0 0.0
  %1107 = vmatmul.mubr.f32.gmra.mrb[0].mxu0 %v1037
  %v1108 = vpop.f32.mrb[0].mxu0
  %v1109 = vadd.f32 %v1034, %v1108
  %v1110 = vpop.f32.mrb[0].mxu0
  %1111 = vmatprep.mubr.f32.mxu0 0.0
  %1112 = vmatmul.mubr.f32.gmra.mrb[0].mxu0 %v1040
  %v1113 = vpop.f32.mrb[0].mxu0
  %v1114 = vadd.f32 %v1034, %v1113
  %v1115 = vpop.f32.mrb[0].mxu0
  %1116 = vdwg.mxu0
  %v1117 = vadd.f32 %v1109, %v241
  %v1118 = vadd.f32 %v1114, %v242
  %v1119 = vld [vmem:[%s11] sm:$0x1]
  %v1120 = vld [vmem:[%s12] sm:$0x1]
  %v1121 = vsel %vm199, %v1117, 0.0
  %1122 = vadd.xlane.f32.xlu0 %v1121
  %v1123 = vpop.xlane.xlu0 %1122
  %v1124 = vsel %vm199, %v1118, 0.0
  %1125 = vadd.xlane.f32.xlu0 %v1124
  %v1126 = vpop.xlane.xlu0 %1125
  %v1127 = vmul.f32 %v1123, %v206
  %v1128 = vmul.f32 %v1126, %v206
  %v1129 = vsub.f32 %v1117, %v1127
  %v1130 = vsub.f32 %v1118, %v1128
  %v1131 = vmul.f32 %v1129, %v1129
  %v1132 = vmul.f32 %v1130, %v1130
  %v1133 = vsel %vm199, %v1131, 0.0
  %1134 = vadd.xlane.f32.xlu0 %v1133
  %v1135 = vpop.xlane.xlu0 %1134
  %v1136 = vsel %vm199, %v1132, 0.0
  %1137 = vadd.xlane.f32.xlu0 %v1136
  %v1138 = vpop.xlane.xlu0 %1137
  %v1139 = vmul.f32 %v1135, %v206
  %v1140 = vmul.f32 %v1138, %v206
  %v1141 = vadd.f32 %v1139, 1e-05
  %v1142 = vadd.f32 %v1140, 1e-05
  %v1143 = vrsqrt.pop %v1141
  %v1144 = vrsqrt.pop %v1142
  %v1145 = vmul.f32 %v1129, %v1143
  %v1146 = vmul.f32 %v1130, %v1144
  %v1148 = vlaneseq
  %v1149 = vshrl.u32 %v1148, 7
  %v1150 = vsub.s32 0, %v1149
  %v1151 = vrot.slane %v1119, %v1150
  %v1153 = vmul.f32 %v1145, %v1151
  %v1154 = vmul.f32 %v1146, %v1151
  %v1156 = vlaneseq
  %v1157 = vshrl.u32 %v1156, 7
  %v1158 = vsub.s32 0, %v1157
  %v1159 = vrot.slane %v1120, %v1158
  %v1161 = vadd.f32 %v1153, %v1159
  %v1162 = vadd.f32 %v1154, %v1159
  %v1163 = vld [vmem:[%s13] sm:$0xff]
  %v1164 = vld [vmem:[%s13 + $0x8] sm:$0xff]
  %v1165 = vld [vmem:[%s13 + $0x10] sm:$0xff]
  %v1166 = vld [vmem:[%s13 + $0x18] sm:$0xff]
  %v1167 = vld [vmem:[%s14] sm:$0x1]
  %v1169 = vlaneseq
  %v1170 = vshrl.u32 %v1169, 7
  %v1171 = vsub.s32 0, %v1170
  %v1172 = vrot.slane %v1167, %v1171
  %v1175 = vsel %vm199, %v1161, 0
  %v1178 = vsel %vm199, %v1162, 0
  %1180 = vmatprep.subr.mxu0 0.0
  %1181 = vmatpush1.msra.mxu0 %v1163
  %1182 = vmatprep.subr.mxu0 0.0
  %1183 = vmatpush1.msra.mxu0 %v1164
  %1184 = vmatprep.subr.mxu0 0.0
  %1185 = vmatpush1.msra.mxu0 %v1165
  %1186 = vmatprep.subr.mxu0 0.0
  %1187 = vmatpush1.msra.mxu0 %v1166
  %1188 = vmatprep.subr.mxu0 0.0
  %1189 = vmatpush1.msra.mxu0 0.0
  %1190 = vmatprep.subr.mxu0 0.0
  %1191 = vmatpush1.msra.mxu0 0.0
  %1192 = vmatprep.subr.mxu0 0.0
  %1193 = vmatpush1.msra.mxu0 0.0
  %1194 = vmatprep.subr.mxu0 0.0
  %1195 = vmatpush1.msra.mxu0 0.0
  %1196 = vmatprep.subr.mxu0 0.0
  %1197 = vmatpush1.msra.mxu0 0.0
  %1198 = vmatprep.subr.mxu0 0.0
  %1199 = vmatpush1.msra.mxu0 0.0
  %1200 = vmatprep.subr.mxu0 0.0
  %1201 = vmatpush1.msra.mxu0 0.0
  %1202 = vmatprep.subr.mxu0 0.0
  %1203 = vmatpush1.msra.mxu0 0.0
  %1204 = vmatprep.subr.mxu0 0.0
  %1205 = vmatpush1.msra.mxu0 0.0
  %1206 = vmatprep.subr.mxu0 0.0
  %1207 = vmatpush1.msra.mxu0 0.0
  %1208 = vmatprep.subr.mxu0 0.0
  %1209 = vmatpush1.msra.mxu0 0.0
  %1210 = vmatprep.subr.mxu0 0.0
  %1211 = vmatpush1.msra.mxu0 0.0
  %1212 = vmatprep.subr.mxu0 0.0
  %1213 = vmatpush1.msra.mxu0 0.0
  %1214 = vmatprep.subr.mxu0 0.0
  %1215 = vmatpush1.msra.mxu0 0.0
  %1216 = vmatprep.subr.mxu0 0.0
  %1217 = vmatpush1.msra.mxu0 0.0
  %1218 = vmatprep.subr.mxu0 0.0
  %1219 = vmatpush1.msra.mxu0 0.0
  %1220 = vmatprep.subr.mxu0 0.0
  %1221 = vmatpush1.msra.mxu0 0.0
  %1222 = vmatprep.subr.mxu0 0.0
  %1223 = vmatpush1.msra.mxu0 0.0
  %1224 = vmatprep.subr.mxu0 0.0
  %1225 = vmatpush1.msra.mxu0 0.0
  %1226 = vmatprep.subr.mxu0 0.0
  %1227 = vmatpush1.msra.mxu0 0.0
  %1228 = vmatprep.subr.mxu0 0.0
  %1229 = vmatpush1.msra.mxu0 0.0
  %1230 = vmatprep.subr.mxu0 0.0
  %1231 = vmatpush1.msra.mxu0 0.0
  %1232 = vmatprep.subr.mxu0 0.0
  %1233 = vmatpush1.msra.mxu0 0.0
  %1234 = vmatprep.subr.mxu0 0.0
  %1235 = vmatpush1.msra.mxu0 0.0
  %1236 = vmatprep.subr.mxu0 0.0
  %1237 = vmatpush1.msra.mxu0 0.0
  %1238 = vmatprep.subr.mxu0 0.0
  %1239 = vmatpush1.msra.mxu0 0.0
  %1240 = vmatprep.subr.mxu0 0.0
  %1241 = vmatpush1.msra.mxu0 0.0
  %1242 = vmatprep.subr.mxu0 0.0
  %1243 = vmatpush1.msra.mxu0 0.0
  %1244 = vmatprep.mubr.f32.mxu0 0.0
  %1245 = vmatmul.mubr.f32.gmra.mrb[0].mxu0 %v1175
  %v1246 = vpop.f32.mrb[0].mxu0
  %v1247 = vadd.f32 %v1172, %v1246
  %v1248 = vpop.f32.mrb[0].mxu0
  %1249 = vmatprep.mubr.f32.mxu0 0.0
  %1250 = vmatmul.mubr.f32.gmra.mrb[0].mxu0 %v1178
  %v1251 = vpop.f32.mrb[0].mxu0
  %v1252 = vadd.f32 %v1172, %v1251
  %v1253 = vpop.f32.mrb[0].mxu0
  %1254 = vdwg.mxu0
  %v1255 = vmul.f32 %v1247, 0.5
  %v1256 = vmul.f32 %v1252, 0.5
  %v1257 = vmul.f32 %v1247, 0.70710677
  %v1258 = vmul.f32 %v1252, 0.70710677
  %v1259 = verf.f32.pop %v1257
  %v1260 = verf.f32.pop %v1258
  %v1261 = vadd.f32 %v1259, 1.0
  %v1262 = vadd.f32 %v1260, 1.0
  %v1263 = vmul.f32 %v1255, %v1261
  %v1264 = vmul.f32 %v1256, %v1262
  %v1265 = vld [vmem:[%s15] sm:$0xff]
  %v1266 = vld [vmem:[%s15 + $0x8] sm:$0xff]
  %v1267 = vld [vmem:[%s15 + $0x10] sm:$0xff]
  %v1268 = vld [vmem:[%s15 + $0x18] sm:$0xff]
  %v1269 = vld [vmem:[%s15 + $0x20] sm:$0xff]
  %v1270 = vld [vmem:[%s15 + $0x28] sm:$0xff]
  %v1271 = vld [vmem:[%s15 + $0x30] sm:$0xff]
  %v1272 = vld [vmem:[%s15 + $0x38] sm:$0xff]
  %v1273 = vld [vmem:[%s15 + $0x40] sm:$0xff]
  %v1274 = vld [vmem:[%s15 + $0x48] sm:$0xff]
  %v1275 = vld [vmem:[%s15 + $0x50] sm:$0xff]
  %v1276 = vld [vmem:[%s15 + $0x58] sm:$0xff]
  %v1277 = vld [vmem:[%s15 + $0x60] sm:$0xff]
  %v1278 = vld [vmem:[%s15 + $0x68] sm:$0xff]
  %v1279 = vld [vmem:[%s15 + $0x70] sm:$0xff]
  %v1280 = vld [vmem:[%s15 + $0x78] sm:$0xff]
  %v1281 = vld [vmem:[%s16] sm:$0x1]
  %v1283 = vlaneseq
  %v1284 = vshrl.u32 %v1283, 7
  %v1285 = vsub.s32 0, %v1284
  %v1286 = vrot.slane %v1281, %v1285
  %1288 = vmatprep.subr.mxu0 0.0
  %1289 = vmatpush1.msra.mxu0 %v1265
  %1290 = vmatprep.subr.mxu0 0.0
  %1291 = vmatpush1.msra.mxu0 %v1266
  %1292 = vmatprep.subr.mxu0 0.0
  %1293 = vmatpush1.msra.mxu0 %v1267
  %1294 = vmatprep.subr.mxu0 0.0
  %1295 = vmatpush1.msra.mxu0 %v1268
  %1296 = vmatprep.subr.mxu0 0.0
  %1297 = vmatpush1.msra.mxu0 %v1269
  %1298 = vmatprep.subr.mxu0 0.0
  %1299 = vmatpush1.msra.mxu0 %v1270
  %1300 = vmatprep.subr.mxu0 0.0
  %1301 = vmatpush1.msra.mxu0 %v1271
  %1302 = vmatprep.subr.mxu0 0.0
  %1303 = vmatpush1.msra.mxu0 %v1272
  %1304 = vmatprep.subr.mxu0 0.0
  %1305 = vmatpush1.msra.mxu0 %v1273
  %1306 = vmatprep.subr.mxu0 0.0
  %1307 = vmatpush1.msra.mxu0 %v1274
  %1308 = vmatprep.subr.mxu0 0.0
  %1309 = vmatpush1.msra.mxu0 %v1275
  %1310 = vmatprep.subr.mxu0 0.0
  %1311 = vmatpush1.msra.mxu0 %v1276
  %1312 = vmatprep.subr.mxu0 0.0
  %1313 = vmatpush1.msra.mxu0 %v1277
  %1314 = vmatprep.subr.mxu0 0.0
  %1315 = vmatpush1.msra.mxu0 %v1278
  %1316 = vmatprep.subr.mxu0 0.0
  %1317 = vmatpush1.msra.mxu0 %v1279
  %1318 = vmatprep.subr.mxu0 0.0
  %1319 = vmatpush1.msra.mxu0 %v1280
  %1320 = vmatprep.subr.mxu0 0.0
  %1321 = vmatpush1.msra.mxu0 0.0
  %1322 = vmatprep.subr.mxu0 0.0
  %1323 = vmatpush1.msra.mxu0 0.0
  %1324 = vmatprep.subr.mxu0 0.0
  %1325 = vmatpush1.msra.mxu0 0.0
  %1326 = vmatprep.subr.mxu0 0.0
  %1327 = vmatpush1.msra.mxu0 0.0
  %1328 = vmatprep.subr.mxu0 0.0
  %1329 = vmatpush1.msra.mxu0 0.0
  %1330 = vmatprep.subr.mxu0 0.0
  %1331 = vmatpush1.msra.mxu0 0.0
  %1332 = vmatprep.subr.mxu0 0.0
  %1333 = vmatpush1.msra.mxu0 0.0
  %1334 = vmatprep.subr.mxu0 0.0
  %1335 = vmatpush1.msra.mxu0 0.0
  %1336 = vmatprep.subr.mxu0 0.0
  %1337 = vmatpush1.msra.mxu0 0.0
  %1338 = vmatprep.subr.mxu0 0.0
  %1339 = vmatpush1.msra.mxu0 0.0
  %1340 = vmatprep.subr.mxu0 0.0
  %1341 = vmatpush1.msra.mxu0 0.0
  %1342 = vmatprep.subr.mxu0 0.0
  %1343 = vmatpush1.msra.mxu0 0.0
  %1344 = vmatprep.subr.mxu0 0.0
  %1345 = vmatpush1.msra.mxu0 0.0
  %1346 = vmatprep.subr.mxu0 0.0
  %1347 = vmatpush1.msra.mxu0 0.0
  %1348 = vmatprep.subr.mxu0 0.0
  %1349 = vmatpush1.msra.mxu0 0.0
  %1350 = vmatprep.subr.mxu0 0.0
  %1351 = vmatpush1.msra.mxu0 0.0
  %1352 = vmatprep.mubr.f32.mxu0 0.0
  %1353 = vmatmul.mubr.f32.gmra.mrb[0].mxu0 %v1263
  %v1354 = vpop.f32.mrb[0].mxu0
  %v1355 = vadd.f32 %v1286, %v1354
  %v1356 = vpop.f32.mrb[0].mxu0
  %1357 = vmatprep.mubr.f32.mxu0 0.0
  %1358 = vmatmul.mubr.f32.gmra.mrb[0].mxu0 %v1264
  %v1359 = vpop.f32.mrb[0].mxu0
  %v1360 = vadd.f32 %v1286, %v1359
  %v1361 = vpop.f32.mrb[0].mxu0
  %1362 = vdwg.mxu0
  %v1363 = vadd.f32 %v1355, %v1161
  %v1364 = vadd.f32 %v1360, %v1162
  %v1365 = vld [vmem:[%s17] sm:$0x1]
  %v1366 = vld [vmem:[%s18] sm:$0x1]
  %v1367 = vsel %vm199, %v1363, 0.0
  %1368 = vadd.xlane.f32.xlu0 %v1367
  %v1369 = vpop.xlane.xlu0 %1368
  %v1370 = vsel %vm199, %v1364, 0.0
  %1371 = vadd.xlane.f32.xlu0 %v1370
  %v1372 = vpop.xlane.xlu0 %1371
  %v1373 = vmul.f32 %v1369, %v206
  %v1374 = vmul.f32 %v1372, %v206
  %v1375 = vsub.f32 %v1363, %v1373
  %v1376 = vsub.f32 %v1364, %v1374
  %v1377 = vmul.f32 %v1375, %v1375
  %v1378 = vmul.f32 %v1376, %v1376
  %v1379 = vsel %vm199, %v1377, 0.0
  %1380 = vadd.xlane.f32.xlu0 %v1379
  %v1381 = vpop.xlane.xlu0 %1380
  %v1382 = vsel %vm199, %v1378, 0.0
  %1383 = vadd.xlane.f32.xlu0 %v1382
  %v1384 = vpop.xlane.xlu0 %1383
  %v1385 = vmul.f32 %v1381, %v206
  %v1386 = vmul.f32 %v1384, %v206
  %v1387 = vadd.f32 %v1385, 1e-05
  %v1388 = vadd.f32 %v1386, 1e-05
  %v1389 = vrsqrt.pop %v1387
  %v1390 = vrsqrt.pop %v1388
  %v1391 = vmul.f32 %v1375, %v1389
  %v1392 = vmul.f32 %v1376, %v1390
  %v1394 = vlaneseq
  %v1395 = vshrl.u32 %v1394, 7
  %v1396 = vsub.s32 0, %v1395
  %v1397 = vrot.slane %v1365, %v1396
  %v1399 = vmul.f32 %v1391, %v1397
  %v1400 = vmul.f32 %v1392, %v1397
  %v1402 = vlaneseq
  %v1403 = vshrl.u32 %v1402, 7
  %v1404 = vsub.s32 0, %v1403
  %v1405 = vrot.slane %v1366, %v1404
  %v1407 = vadd.f32 %v1399, %v1405
  %v1408 = vadd.f32 %v1400, %v1405
  %s1409 = scalar_lea.vmem %s7, 32
  %v1410 = vld [vmem:[%s1409] sm:$0xff]
  %v1411 = vld [vmem:[%s1409 + $0x8] sm:$0xff]
  %v1412 = vld [vmem:[%s1409 + $0x10] sm:$0xff]
  %v1413 = vld [vmem:[%s1409 + $0x18] sm:$0xff]
  %s1414 = scalar_lea.vmem %s8, 1
  %v1415 = vld [vmem:[%s1414] sm:$0x1]
  %v1417 = vlaneseq
  %v1418 = vshrl.u32 %v1417, 7
  %v1419 = vsub.s32 0, %v1418
  %v1420 = vrot.slane %v1415, %v1419
  %v1423 = vsel %vm199, %v1407, 0
  %v1426 = vsel %vm199, %v1408, 0
  %1428 = vmatprep.subr.mxu0 0.0
  %1429 = vmatpush1.msra.mxu0 %v1410
  %1430 = vmatprep.subr.mxu0 0.0
  %1431 = vmatpush1.msra.mxu0 %v1411
  %1432 = vmatprep.subr.mxu0 0.0
  %1433 = vmatpush1.msra.mxu0 %v1412
  %1434 = vmatprep.subr.mxu0 0.0
  %1435 = vmatpush1.msra.mxu0 %v1413
  %1436 = vmatprep.subr.mxu0 0.0
  %1437 = vmatpush1.msra.mxu0 0.0
  %1438 = vmatprep.subr.mxu0 0.0
  %1439 = vmatpush1.msra.mxu0 0.0
  %1440 = vmatprep.subr.mxu0 0.0
  %1441 = vmatpush1.msra.mxu0 0.0
  %1442 = vmatprep.subr.mxu0 0.0
  %1443 = vmatpush1.msra.mxu0 0.0
  %1444 = vmatprep.subr.mxu0 0.0
  %1445 = vmatpush1.msra.mxu0 0.0
  %1446 = vmatprep.subr.mxu0 0.0
  %1447 = vmatpush1.msra.mxu0 0.0
  %1448 = vmatprep.subr.mxu0 0.0
  %1449 = vmatpush1.msra.mxu0 0.0
  %1450 = vmatprep.subr.mxu0 0.0
  %1451 = vmatpush1.msra.mxu0 0.0
  %1452 = vmatprep.subr.mxu0 0.0
  %1453 = vmatpush1.msra.mxu0 0.0
  %1454 = vmatprep.subr.mxu0 0.0
  %1455 = vmatpush1.msra.mxu0 0.0
  %1456 = vmatprep.subr.mxu0 0.0
  %1457 = vmatpush1.msra.mxu0 0.0
  %1458 = vmatprep.subr.mxu0 0.0
  %1459 = vmatpush1.msra.mxu0 0.0
  %1460 = vmatprep.subr.mxu0 0.0
  %1461 = vmatpush1.msra.mxu0 0.0
  %1462 = vmatprep.subr.mxu0 0.0
  %1463 = vmatpush1.msra.mxu0 0.0
  %1464 = vmatprep.subr.mxu0 0.0
  %1465 = vmatpush1.msra.mxu0 0.0
  %1466 = vmatprep.subr.mxu0 0.0
  %1467 = vmatpush1.msra.mxu0 0.0
  %1468 = vmatprep.subr.mxu0 0.0
  %1469 = vmatpush1.msra.mxu0 0.0
  %1470 = vmatprep.subr.mxu0 0.0
  %1471 = vmatpush1.msra.mxu0 0.0
  %1472 = vmatprep.subr.mxu0 0.0
  %1473 = vmatpush1.msra.mxu0 0.0
  %1474 = vmatprep.subr.mxu0 0.0
  %1475 = vmatpush1.msra.mxu0 0.0
  %1476 = vmatprep.subr.mxu0 0.0
  %1477 = vmatpush1.msra.mxu0 0.0
  %1478 = vmatprep.subr.mxu0 0.0
  %1479 = vmatpush1.msra.mxu0 0.0
  %1480 = vmatprep.subr.mxu0 0.0
  %1481 = vmatpush1.msra.mxu0 0.0
  %1482 = vmatprep.subr.mxu0 0.0
  %1483 = vmatpush1.msra.mxu0 0.0
  %1484 = vmatprep.subr.mxu0 0.0
  %1485 = vmatpush1.msra.mxu0 0.0
  %1486 = vmatprep.subr.mxu0 0.0
  %1487 = vmatpush1.msra.mxu0 0.0
  %1488 = vmatprep.subr.mxu0 0.0
  %1489 = vmatpush1.msra.mxu0 0.0
  %1490 = vmatprep.subr.mxu0 0.0
  %1491 = vmatpush1.msra.mxu0 0.0
  %1492 = vmatprep.mubr.f32.mxu0 0.0
  %1493 = vmatmul.mubr.f32.gmra.mrb[0].mxu0 %v1423
  %v1494 = vpop.f32.mrb[0].mxu0
  %v1495 = vadd.f32 %v1420, %v1494
  %v1496 = vpop.f32.mrb[0].mxu0
  %1497 = vmatprep.mubr.f32.mxu0 0.0
  %1498 = vmatmul.mubr.f32.gmra.mrb[0].mxu0 %v1426
  %v1499 = vpop.f32.mrb[0].mxu0
  %v1500 = vadd.f32 %v1420, %v1499
  %v1501 = vpop.f32.mrb[0].mxu0
  %1502 = vdwg.mxu0
  %1504 = vrot.lane.b32.xlu0 %v1495, 96
  %v1505 = vpop.permute.xlu0 %1504
  %v1506 = vsel %vm342, %v1495, 0
  %v1508 = vsel %vm342, %v1505, 0
  %1510 = vmatprep.subr.mxu0 0.0
  %1511 = vmatpush1.xpose.msra.mxu0 %v1508
  %1512 = vmatprep.subr.mxu0 0.0
  %1513 = vmatpush1.xpose.msra.mxu0 0.0
  %1514 = vmatprep.subr.mxu0 0.0
  %1515 = vmatpush1.xpose.msra.mxu0 0.0
  %1516 = vmatprep.subr.mxu0 0.0
  %1517 = vmatpush1.xpose.msra.mxu0 0.0
  %1518 = vmatprep.subr.mxu0 0.0
  %1519 = vmatpush1.xpose.msra.mxu0 0.0
  %1520 = vmatprep.subr.mxu0 0.0
  %1521 = vmatpush1.xpose.msra.mxu0 0.0
  %1522 = vmatprep.subr.mxu0 0.0
  %1523 = vmatpush1.xpose.msra.mxu0 0.0
  %1524 = vmatprep.subr.mxu0 0.0
  %1525 = vmatpush1.xpose.msra.mxu0 0.0
  %1526 = vmatprep.subr.mxu0 0.0
  %1527 = vmatpush1.xpose.msra.mxu0 0.0
  %1528 = vmatprep.subr.mxu0 0.0
  %1529 = vmatpush1.xpose.msra.mxu0 0.0
  %1530 = vmatprep.subr.mxu0 0.0
  %1531 = vmatpush1.xpose.msra.mxu0 0.0
  %1532 = vmatprep.subr.mxu0 0.0
  %1533 = vmatpush1.xpose.msra.mxu0 0.0
  %1534 = vmatprep.subr.mxu0 0.0
  %1535 = vmatpush1.xpose.msra.mxu0 0.0
  %1536 = vmatprep.subr.mxu0 0.0
  %1537 = vmatpush1.xpose.msra.mxu0 0.0
  %1538 = vmatprep.subr.mxu0 0.0
  %1539 = vmatpush1.xpose.msra.mxu0 0.0
  %1540 = vmatprep.subr.mxu0 0.0
  %1541 = vmatpush1.xpose.msra.mxu0 0.0
  %1542 = vmatprep.subr.mxu0 0.0
  %1543 = vmatpush1.xpose.msra.mxu0 0.0
  %1544 = vmatprep.subr.mxu0 0.0
  %1545 = vmatpush1.xpose.msra.mxu0 0.0
  %1546 = vmatprep.subr.mxu0 0.0
  %1547 = vmatpush1.xpose.msra.mxu0 0.0
  %1548 = vmatprep.subr.mxu0 0.0
  %1549 = vmatpush1.xpose.msra.mxu0 0.0
  %1550 = vmatprep.subr.mxu0 0.0
  %1551 = vmatpush1.xpose.msra.mxu0 0.0
  %1552 = vmatprep.subr.mxu0 0.0
  %1553 = vmatpush1.xpose.msra.mxu0 0.0
  %1554 = vmatprep.subr.mxu0 0.0
  %1555 = vmatpush1.xpose.msra.mxu0 0.0
  %1556 = vmatprep.subr.mxu0 0.0
  %1557 = vmatpush1.xpose.msra.mxu0 0.0
  %1558 = vmatprep.subr.mxu0 0.0
  %1559 = vmatpush1.xpose.msra.mxu0 0.0
  %1560 = vmatprep.subr.mxu0 0.0
  %1561 = vmatpush1.xpose.msra.mxu0 0.0
  %1562 = vmatprep.subr.mxu0 0.0
  %1563 = vmatpush1.xpose.msra.mxu0 0.0
  %1564 = vmatprep.subr.mxu0 0.0
  %1565 = vmatpush1.xpose.msra.mxu0 0.0
  %1566 = vmatprep.subr.mxu0 0.0
  %1567 = vmatpush1.xpose.msra.mxu0 0.0
  %1568 = vmatprep.subr.mxu0 0.0
  %1569 = vmatpush1.xpose.msra.mxu0 0.0
  %1570 = vmatprep.subr.mxu0 0.0
  %1571 = vmatpush1.xpose.msra.mxu0 0.0
  %1572 = vmatprep.subr.mxu0 0.0
  %1573 = vmatpush1.xpose.msra.mxu0 0.0
  %1574 = vmatprep.mubr.f32.mxu0 0.0
  %1575 = vmatmul.mubr.f32.gmra.mrb[0].mxu0 %v1506
  %v1576 = vpop.f32.mrb[0].mxu0
  %v1577 = vadd.f32 0.0, %v1576
  %v1578 = vpop.f32.mrb[0].mxu0
  %1579 = vdwg.mxu0
  %v1580 = vmul.f32 %v1577, 0.25
  %v1581 = vadd.f32 %v1580, %v421
  %v1582 = vsel %vm423, %v1581, -inf
  %1583 = vmax.xlane.f32.xlu0 %v1582
  %v1584 = vpop.xlane.xlu0 %1583
  %v1585 = vsub.f32 %v1581, %v1584
  %v1586 = vmul.f32 %v1585, 1.442695
  %v1587 = vpow.pop %v1586
  %v1588 = vsel %vm423, %v1587, 0.0
  %1589 = vadd.xlane.f32.xlu0 %v1588
  %v1590 = vpop.xlane.xlu0 %1589
  %v1591 = vrcp.pop %v1590
  %v1592 = vmul.f32 %v1587, %v1591
  %1593 = vrot.lane.b32.xlu0 %v1495, 64
  %v1594 = vpop.permute.xlu0 %1593
  %v1597 = vsel %vm423, %v1592, 0
  %1599 = vmatprep.subr.mxu0 0.0
  %1600 = vmatpush1.msra.mxu0 %v1594
  %1601 = vmatprep.subr.mxu0 0.0
  %1602 = vmatpush1.msra.mxu0 0.0
  %1603 = vmatprep.subr.mxu0 0.0
  %1604 = vmatpush1.msra.mxu0 0.0
  %1605 = vmatprep.subr.mxu0 0.0
  %1606 = vmatpush1.msra.mxu0 0.0
  %1607 = vmatprep.subr.mxu0 0.0
  %1608 = vmatpush1.msra.mxu0 0.0
  %1609 = vmatprep.subr.mxu0 0.0
  %1610 = vmatpush1.msra.mxu0 0.0
  %1611 = vmatprep.subr.mxu0 0.0
  %1612 = vmatpush1.msra.mxu0 0.0
  %1613 = vmatprep.subr.mxu0 0.0
  %1614 = vmatpush1.msra.mxu0 0.0
  %1615 = vmatprep.subr.mxu0 0.0
  %1616 = vmatpush1.msra.mxu0 0.0
  %1617 = vmatprep.subr.mxu0 0.0
  %1618 = vmatpush1.msra.mxu0 0.0
  %1619 = vmatprep.subr.mxu0 0.0
  %1620 = vmatpush1.msra.mxu0 0.0
  %1621 = vmatprep.subr.mxu0 0.0
  %1622 = vmatpush1.msra.mxu0 0.0
  %1623 = vmatprep.subr.mxu0 0.0
  %1624 = vmatpush1.msra.mxu0 0.0
  %1625 = vmatprep.subr.mxu0 0.0
  %1626 = vmatpush1.msra.mxu0 0.0
  %1627 = vmatprep.subr.mxu0 0.0
  %1628 = vmatpush1.msra.mxu0 0.0
  %1629 = vmatprep.subr.mxu0 0.0
  %1630 = vmatpush1.msra.mxu0 0.0
  %1631 = vmatprep.subr.mxu0 0.0
  %1632 = vmatpush1.msra.mxu0 0.0
  %1633 = vmatprep.subr.mxu0 0.0
  %1634 = vmatpush1.msra.mxu0 0.0
  %1635 = vmatprep.subr.mxu0 0.0
  %1636 = vmatpush1.msra.mxu0 0.0
  %1637 = vmatprep.subr.mxu0 0.0
  %1638 = vmatpush1.msra.mxu0 0.0
  %1639 = vmatprep.subr.mxu0 0.0
  %1640 = vmatpush1.msra.mxu0 0.0
  %1641 = vmatprep.subr.mxu0 0.0
  %1642 = vmatpush1.msra.mxu0 0.0
  %1643 = vmatprep.subr.mxu0 0.0
  %1644 = vmatpush1.msra.mxu0 0.0
  %1645 = vmatprep.subr.mxu0 0.0
  %1646 = vmatpush1.msra.mxu0 0.0
  %1647 = vmatprep.subr.mxu0 0.0
  %1648 = vmatpush1.msra.mxu0 0.0
  %1649 = vmatprep.subr.mxu0 0.0
  %1650 = vmatpush1.msra.mxu0 0.0
  %1651 = vmatprep.subr.mxu0 0.0
  %1652 = vmatpush1.msra.mxu0 0.0
  %1653 = vmatprep.subr.mxu0 0.0
  %1654 = vmatpush1.msra.mxu0 0.0
  %1655 = vmatprep.subr.mxu0 0.0
  %1656 = vmatpush1.msra.mxu0 0.0
  %1657 = vmatprep.subr.mxu0 0.0
  %1658 = vmatpush1.msra.mxu0 0.0
  %1659 = vmatprep.subr.mxu0 0.0
  %1660 = vmatpush1.msra.mxu0 0.0
  %1661 = vmatprep.subr.mxu0 0.0
  %1662 = vmatpush1.msra.mxu0 0.0
  %1663 = vmatprep.mubr.f32.mxu0 0.0
  %1664 = vmatmul.mubr.f32.gmra.mrb[0].mxu0 %v1597
  %v1665 = vpop.f32.mrb[0].mxu0
  %v1666 = vadd.f32 0.0, %v1665
  %v1667 = vpop.f32.mrb[0].mxu0
  %1668 = vdwg.mxu0
  %1669 = vrot.lane.b32.xlu0 %v1495, 112
  %v1670 = vpop.permute.xlu0 %1669
  %1671 = vrot.lane.b32.xlu0 %v1495, 80
  %v1672 = vpop.permute.xlu0 %1671
  %v1673 = vsel %vm342, %v1670, 0
  %v1675 = vsel %vm342, %v1672, 0
  %1677 = vmatprep.subr.mxu0 0.0
  %1678 = vmatpush1.xpose.msra.mxu0 %v1675
  %1679 = vmatprep.subr.mxu0 0.0
  %1680 = vmatpush1.xpose.msra.mxu0 0.0
  %1681 = vmatprep.subr.mxu0 0.0
  %1682 = vmatpush1.xpose.msra.mxu0 0.0
  %1683 = vmatprep.subr.mxu0 0.0
  %1684 = vmatpush1.xpose.msra.mxu0 0.0
  %1685 = vmatprep.subr.mxu0 0.0
  %1686 = vmatpush1.xpose.msra.mxu0 0.0
  %1687 = vmatprep.subr.mxu0 0.0
  %1688 = vmatpush1.xpose.msra.mxu0 0.0
  %1689 = vmatprep.subr.mxu0 0.0
  %1690 = vmatpush1.xpose.msra.mxu0 0.0
  %1691 = vmatprep.subr.mxu0 0.0
  %1692 = vmatpush1.xpose.msra.mxu0 0.0
  %1693 = vmatprep.subr.mxu0 0.0
  %1694 = vmatpush1.xpose.msra.mxu0 0.0
  %1695 = vmatprep.subr.mxu0 0.0
  %1696 = vmatpush1.xpose.msra.mxu0 0.0
  %1697 = vmatprep.subr.mxu0 0.0
  %1698 = vmatpush1.xpose.msra.mxu0 0.0
  %1699 = vmatprep.subr.mxu0 0.0
  %1700 = vmatpush1.xpose.msra.mxu0 0.0
  %1701 = vmatprep.subr.mxu0 0.0
  %1702 = vmatpush1.xpose.msra.mxu0 0.0
  %1703 = vmatprep.subr.mxu0 0.0
  %1704 = vmatpush1.xpose.msra.mxu0 0.0
  %1705 = vmatprep.subr.mxu0 0.0
  %1706 = vmatpush1.xpose.msra.mxu0 0.0
  %1707 = vmatprep.subr.mxu0 0.0
  %1708 = vmatpush1.xpose.msra.mxu0 0.0
  %1709 = vmatprep.subr.mxu0 0.0
  %1710 = vmatpush1.xpose.msra.mxu0 0.0
  %1711 = vmatprep.subr.mxu0 0.0
  %1712 = vmatpush1.xpose.msra.mxu0 0.0
  %1713 = vmatprep.subr.mxu0 0.0
  %1714 = vmatpush1.xpose.msra.mxu0 0.0
  %1715 = vmatprep.subr.mxu0 0.0
  %1716 = vmatpush1.xpose.msra.mxu0 0.0
  %1717 = vmatprep.subr.mxu0 0.0
  %1718 = vmatpush1.xpose.msra.mxu0 0.0
  %1719 = vmatprep.subr.mxu0 0.0
  %1720 = vmatpush1.xpose.msra.mxu0 0.0
  %1721 = vmatprep.subr.mxu0 0.0
  %1722 = vmatpush1.xpose.msra.mxu0 0.0
  %1723 = vmatprep.subr.mxu0 0.0
  %1724 = vmatpush1.xpose.msra.mxu0 0.0
  %1725 = vmatprep.subr.mxu0 0.0
  %1726 = vmatpush1.xpose.msra.mxu0 0.0
  %1727 = vmatprep.subr.mxu0 0.0
  %1728 = vmatpush1.xpose.msra.mxu0 0.0
  %1729 = vmatprep.subr.mxu0 0.0
  %1730 = vmatpush1.xpose.msra.mxu0 0.0
  %1731 = vmatprep.subr.mxu0 0.0
  %1732 = vmatpush1.xpose.msra.mxu0 0.0
  %1733 = vmatprep.subr.mxu0 0.0
  %1734 = vmatpush1.xpose.msra.mxu0 0.0
  %1735 = vmatprep.subr.mxu0 0.0
  %1736 = vmatpush1.xpose.msra.mxu0 0.0
  %1737 = vmatprep.subr.mxu0 0.0
  %1738 = vmatpush1.xpose.msra.mxu0 0.0
  %1739 = vmatprep.subr.mxu0 0.0
  %1740 = vmatpush1.xpose.msra.mxu0 0.0
  %1741 = vmatprep.mubr.f32.mxu0 0.0
  %1742 = vmatmul.mubr.f32.gmra.mrb[0].mxu0 %v1673
  %v1743 = vpop.f32.mrb[0].mxu0
  %v1744 = vadd.f32 0.0, %v1743
  %v1745 = vpop.f32.mrb[0].mxu0
  %1746 = vdwg.mxu0
  %v1747 = vmul.f32 %v1744, 0.25
  %v1748 = vadd.f32 %v1747, %v421
  %v1749 = vsel %vm423, %v1748, -inf
  %1750 = vmax.xlane.f32.xlu0 %v1749
  %v1751 = vpop.xlane.xlu0 %1750
  %v1752 = vsub.f32 %v1748, %v1751
  %v1753 = vmul.f32 %v1752, 1.442695
  %v1754 = vpow.pop %v1753
  %v1755 = vsel %vm423, %v1754, 0.0
  %1756 = vadd.xlane.f32.xlu0 %v1755
  %v1757 = vpop.xlane.xlu0 %1756
  %v1758 = vrcp.pop %v1757
  %v1759 = vmul.f32 %v1754, %v1758
  %1760 = vrot.lane.b32.xlu0 %v1495, 48
  %v1761 = vpop.permute.xlu0 %1760
  %v1764 = vsel %vm423, %v1759, 0
  %1766 = vmatprep.subr.mxu0 0.0
  %1767 = vmatpush1.msra.mxu0 %v1761
  %1768 = vmatprep.subr.mxu0 0.0
  %1769 = vmatpush1.msra.mxu0 0.0
  %1770 = vmatprep.subr.mxu0 0.0
  %1771 = vmatpush1.msra.mxu0 0.0
  %1772 = vmatprep.subr.mxu0 0.0
  %1773 = vmatpush1.msra.mxu0 0.0
  %1774 = vmatprep.subr.mxu0 0.0
  %1775 = vmatpush1.msra.mxu0 0.0
  %1776 = vmatprep.subr.mxu0 0.0
  %1777 = vmatpush1.msra.mxu0 0.0
  %1778 = vmatprep.subr.mxu0 0.0
  %1779 = vmatpush1.msra.mxu0 0.0
  %1780 = vmatprep.subr.mxu0 0.0
  %1781 = vmatpush1.msra.mxu0 0.0
  %1782 = vmatprep.subr.mxu0 0.0
  %1783 = vmatpush1.msra.mxu0 0.0
  %1784 = vmatprep.subr.mxu0 0.0
  %1785 = vmatpush1.msra.mxu0 0.0
  %1786 = vmatprep.subr.mxu0 0.0
  %1787 = vmatpush1.msra.mxu0 0.0
  %1788 = vmatprep.subr.mxu0 0.0
  %1789 = vmatpush1.msra.mxu0 0.0
  %1790 = vmatprep.subr.mxu0 0.0
  %1791 = vmatpush1.msra.mxu0 0.0
  %1792 = vmatprep.subr.mxu0 0.0
  %1793 = vmatpush1.msra.mxu0 0.0
  %1794 = vmatprep.subr.mxu0 0.0
  %1795 = vmatpush1.msra.mxu0 0.0
  %1796 = vmatprep.subr.mxu0 0.0
  %1797 = vmatpush1.msra.mxu0 0.0
  %1798 = vmatprep.subr.mxu0 0.0
  %1799 = vmatpush1.msra.mxu0 0.0
  %1800 = vmatprep.subr.mxu0 0.0
  %1801 = vmatpush1.msra.mxu0 0.0
  %1802 = vmatprep.subr.mxu0 0.0
  %1803 = vmatpush1.msra.mxu0 0.0
  %1804 = vmatprep.subr.mxu0 0.0
  %1805 = vmatpush1.msra.mxu0 0.0
  %1806 = vmatprep.subr.mxu0 0.0
  %1807 = vmatpush1.msra.mxu0 0.0
  %1808 = vmatprep.subr.mxu0 0.0
  %1809 = vmatpush1.msra.mxu0 0.0
  %1810 = vmatprep.subr.mxu0 0.0
  %1811 = vmatpush1.msra.mxu0 0.0
  %1812 = vmatprep.subr.mxu0 0.0
  %1813 = vmatpush1.msra.mxu0 0.0
  %1814 = vmatprep.subr.mxu0 0.0
  %1815 = vmatpush1.msra.mxu0 0.0
  %1816 = vmatprep.subr.mxu0 0.0
  %1817 = vmatpush1.msra.mxu0 0.0
  %1818 = vmatprep.subr.mxu0 0.0
  %1819 = vmatpush1.msra.mxu0 0.0
  %1820 = vmatprep.subr.mxu0 0.0
  %1821 = vmatpush1.msra.mxu0 0.0
  %1822 = vmatprep.subr.mxu0 0.0
  %1823 = vmatpush1.msra.mxu0 0.0
  %1824 = vmatprep.subr.mxu0 0.0
  %1825 = vmatpush1.msra.mxu0 0.0
  %1826 = vmatprep.subr.mxu0 0.0
  %1827 = vmatpush1.msra.mxu0 0.0
  %1828 = vmatprep.subr.mxu0 0.0
  %1829 = vmatpush1.msra.mxu0 0.0
  %1830 = vmatprep.mubr.f32.mxu0 0.0
  %1831 = vmatmul.mubr.f32.gmra.mrb[0].mxu0 %v1764
  %v1832 = vpop.f32.mrb[0].mxu0
  %v1833 = vadd.f32 0.0, %v1832
  %v1834 = vpop.f32.mrb[0].mxu0
  %1835 = vdwg.mxu0
  %1837 = vrot.lane.b32.xlu0 %v1833, 16
  %v1838 = vpop.permute.xlu0 %1837
  %v1840 = vsel %vm342, %v1666, %v1838
  %1842 = vrot.lane.b32.xlu0 %v1500, 96
  %v1843 = vpop.permute.xlu0 %1842
  %v1844 = vsel %vm342, %v1500, 0
  %v1846 = vsel %vm342, %v1843, 0
  %1848 = vmatprep.subr.mxu0 0.0
  %1849 = vmatpush1.xpose.msra.mxu0 %v1846
  %1850 = vmatprep.subr.mxu0 0.0
  %1851 = vmatpush1.xpose.msra.mxu0 0.0
  %1852 = vmatprep.subr.mxu0 0.0
  %1853 = vmatpush1.xpose.msra.mxu0 0.0
  %1854 = vmatprep.subr.mxu0 0.0
  %1855 = vmatpush1.xpose.msra.mxu0 0.0
  %1856 = vmatprep.subr.mxu0 0.0
  %1857 = vmatpush1.xpose.msra.mxu0 0.0
  %1858 = vmatprep.subr.mxu0 0.0
  %1859 = vmatpush1.xpose.msra.mxu0 0.0
  %1860 = vmatprep.subr.mxu0 0.0
  %1861 = vmatpush1.xpose.msra.mxu0 0.0
  %1862 = vmatprep.subr.mxu0 0.0
  %1863 = vmatpush1.xpose.msra.mxu0 0.0
  %1864 = vmatprep.subr.mxu0 0.0
  %1865 = vmatpush1.xpose.msra.mxu0 0.0
  %1866 = vmatprep.subr.mxu0 0.0
  %1867 = vmatpush1.xpose.msra.mxu0 0.0
  %1868 = vmatprep.subr.mxu0 0.0
  %1869 = vmatpush1.xpose.msra.mxu0 0.0
  %1870 = vmatprep.subr.mxu0 0.0
  %1871 = vmatpush1.xpose.msra.mxu0 0.0
  %1872 = vmatprep.subr.mxu0 0.0
  %1873 = vmatpush1.xpose.msra.mxu0 0.0
  %1874 = vmatprep.subr.mxu0 0.0
  %1875 = vmatpush1.xpose.msra.mxu0 0.0
  %1876 = vmatprep.subr.mxu0 0.0
  %1877 = vmatpush1.xpose.msra.mxu0 0.0
  %1878 = vmatprep.subr.mxu0 0.0
  %1879 = vmatpush1.xpose.msra.mxu0 0.0
  %1880 = vmatprep.subr.mxu0 0.0
  %1881 = vmatpush1.xpose.msra.mxu0 0.0
  %1882 = vmatprep.subr.mxu0 0.0
  %1883 = vmatpush1.xpose.msra.mxu0 0.0
  %1884 = vmatprep.subr.mxu0 0.0
  %1885 = vmatpush1.xpose.msra.mxu0 0.0
  %1886 = vmatprep.subr.mxu0 0.0
  %1887 = vmatpush1.xpose.msra.mxu0 0.0
  %1888 = vmatprep.subr.mxu0 0.0
  %1889 = vmatpush1.xpose.msra.mxu0 0.0
  %1890 = vmatprep.subr.mxu0 0.0
  %1891 = vmatpush1.xpose.msra.mxu0 0.0
  %1892 = vmatprep.subr.mxu0 0.0
  %1893 = vmatpush1.xpose.msra.mxu0 0.0
  %1894 = vmatprep.subr.mxu0 0.0
  %1895 = vmatpush1.xpose.msra.mxu0 0.0
  %1896 = vmatprep.subr.mxu0 0.0
  %1897 = vmatpush1.xpose.msra.mxu0 0.0
  %1898 = vmatprep.subr.mxu0 0.0
  %1899 = vmatpush1.xpose.msra.mxu0 0.0
  %1900 = vmatprep.subr.mxu0 0.0
  %1901 = vmatpush1.xpose.msra.mxu0 0.0
  %1902 = vmatprep.subr.mxu0 0.0
  %1903 = vmatpush1.xpose.msra.mxu0 0.0
  %1904 = vmatprep.subr.mxu0 0.0
  %1905 = vmatpush1.xpose.msra.mxu0 0.0
  %1906 = vmatprep.subr.mxu0 0.0
  %1907 = vmatpush1.xpose.msra.mxu0 0.0
  %1908 = vmatprep.subr.mxu0 0.0
  %1909 = vmatpush1.xpose.msra.mxu0 0.0
  %1910 = vmatprep.subr.mxu0 0.0
  %1911 = vmatpush1.xpose.msra.mxu0 0.0
  %1912 = vmatprep.mubr.f32.mxu0 0.0
  %1913 = vmatmul.mubr.f32.gmra.mrb[0].mxu0 %v1844
  %v1914 = vpop.f32.mrb[0].mxu0
  %v1915 = vadd.f32 0.0, %v1914
  %v1916 = vpop.f32.mrb[0].mxu0
  %1917 = vdwg.mxu0
  %v1918 = vmul.f32 %v1915, 0.25
  %v1919 = vadd.f32 %v1918, %v764
  %v1920 = vsel %vm423, %v1919, -inf
  %1921 = vmax.xlane.f32.xlu0 %v1920
  %v1922 = vpop.xlane.xlu0 %1921
  %v1923 = vsub.f32 %v1919, %v1922
  %v1924 = vmul.f32 %v1923, 1.442695
  %v1925 = vpow.pop %v1924
  %v1926 = vsel %vm423, %v1925, 0.0
  %1927 = vadd.xlane.f32.xlu0 %v1926
  %v1928 = vpop.xlane.xlu0 %1927
  %v1929 = vrcp.pop %v1928
  %v1930 = vmul.f32 %v1925, %v1929
  %1931 = vrot.lane.b32.xlu0 %v1500, 64
  %v1932 = vpop.permute.xlu0 %1931
  %v1935 = vsel %vm423, %v1930, 0
  %1937 = vmatprep.subr.mxu0 0.0
  %1938 = vmatpush1.msra.mxu0 %v1932
  %1939 = vmatprep.subr.mxu0 0.0
  %1940 = vmatpush1.msra.mxu0 0.0
  %1941 = vmatprep.subr.mxu0 0.0
  %1942 = vmatpush1.msra.mxu0 0.0
  %1943 = vmatprep.subr.mxu0 0.0
  %1944 = vmatpush1.msra.mxu0 0.0
  %1945 = vmatprep.subr.mxu0 0.0
  %1946 = vmatpush1.msra.mxu0 0.0
  %1947 = vmatprep.subr.mxu0 0.0
  %1948 = vmatpush1.msra.mxu0 0.0
  %1949 = vmatprep.subr.mxu0 0.0
  %1950 = vmatpush1.msra.mxu0 0.0
  %1951 = vmatprep.subr.mxu0 0.0
  %1952 = vmatpush1.msra.mxu0 0.0
  %1953 = vmatprep.subr.mxu0 0.0
  %1954 = vmatpush1.msra.mxu0 0.0
  %1955 = vmatprep.subr.mxu0 0.0
  %1956 = vmatpush1.msra.mxu0 0.0
  %1957 = vmatprep.subr.mxu0 0.0
  %1958 = vmatpush1.msra.mxu0 0.0
  %1959 = vmatprep.subr.mxu0 0.0
  %1960 = vmatpush1.msra.mxu0 0.0
  %1961 = vmatprep.subr.mxu0 0.0
  %1962 = vmatpush1.msra.mxu0 0.0
  %1963 = vmatprep.subr.mxu0 0.0
  %1964 = vmatpush1.msra.mxu0 0.0
  %1965 = vmatprep.subr.mxu0 0.0
  %1966 = vmatpush1.msra.mxu0 0.0
  %1967 = vmatprep.subr.mxu0 0.0
  %1968 = vmatpush1.msra.mxu0 0.0
  %1969 = vmatprep.subr.mxu0 0.0
  %1970 = vmatpush1.msra.mxu0 0.0
  %1971 = vmatprep.subr.mxu0 0.0
  %1972 = vmatpush1.msra.mxu0 0.0
  %1973 = vmatprep.subr.mxu0 0.0
  %1974 = vmatpush1.msra.mxu0 0.0
  %1975 = vmatprep.subr.mxu0 0.0
  %1976 = vmatpush1.msra.mxu0 0.0
  %1977 = vmatprep.subr.mxu0 0.0
  %1978 = vmatpush1.msra.mxu0 0.0
  %1979 = vmatprep.subr.mxu0 0.0
  %1980 = vmatpush1.msra.mxu0 0.0
  %1981 = vmatprep.subr.mxu0 0.0
  %1982 = vmatpush1.msra.mxu0 0.0
  %1983 = vmatprep.subr.mxu0 0.0
  %1984 = vmatpush1.msra.mxu0 0.0
  %1985 = vmatprep.subr.mxu0 0.0
  %1986 = vmatpush1.msra.mxu0 0.0
  %1987 = vmatprep.subr.mxu0 0.0
  %1988 = vmatpush1.msra.mxu0 0.0
  %1989 = vmatprep.subr.mxu0 0.0
  %1990 = vmatpush1.msra.mxu0 0.0
  %1991 = vmatprep.subr.mxu0 0.0
  %1992 = vmatpush1.msra.mxu0 0.0
  %1993 = vmatprep.subr.mxu0 0.0
  %1994 = vmatpush1.msra.mxu0 0.0
  %1995 = vmatprep.subr.mxu0 0.0
  %1996 = vmatpush1.msra.mxu0 0.0
  %1997 = vmatprep.subr.mxu0 0.0
  %1998 = vmatpush1.msra.mxu0 0.0
  %1999 = vmatprep.subr.mxu0 0.0
  %2000 = vmatpush1.msra.mxu0 0.0
  %2001 = vmatprep.mubr.f32.mxu0 0.0
  %2002 = vmatmul.mubr.f32.gmra.mrb[0].mxu0 %v1935
  %v2003 = vpop.f32.mrb[0].mxu0
  %v2004 = vadd.f32 0.0, %v2003
  %v2005 = vpop.f32.mrb[0].mxu0
  %2006 = vdwg.mxu0
  %2007 = vrot.lane.b32.xlu0 %v1500, 112
  %v2008 = vpop.permute.xlu0 %2007
  %2009 = vrot.lane.b32.xlu0 %v1500, 80
  %v2010 = vpop.permute.xlu0 %2009
  %v2011 = vsel %vm342, %v2008, 0
  %v2013 = vsel %vm342, %v2010, 0
  %2015 = vmatprep.subr.mxu0 0.0
  %2016 = vmatpush1.xpose.msra.mxu0 %v2013
  %2017 = vmatprep.subr.mxu0 0.0
  %2018 = vmatpush1.xpose.msra.mxu0 0.0
  %2019 = vmatprep.subr.mxu0 0.0
  %2020 = vmatpush1.xpose.msra.mxu0 0.0
  %2021 = vmatprep.subr.mxu0 0.0
  %2022 = vmatpush1.xpose.msra.mxu0 0.0
  %2023 = vmatprep.subr.mxu0 0.0
  %2024 = vmatpush1.xpose.msra.mxu0 0.0
  %2025 = vmatprep.subr.mxu0 0.0
  %2026 = vmatpush1.xpose.msra.mxu0 0.0
  %2027 = vmatprep.subr.mxu0 0.0
  %2028 = vmatpush1.xpose.msra.mxu0 0.0
  %2029 = vmatprep.subr.mxu0 0.0
  %2030 = vmatpush1.xpose.msra.mxu0 0.0
  %2031 = vmatprep.subr.mxu0 0.0
  %2032 = vmatpush1.xpose.msra.mxu0 0.0
  %2033 = vmatprep.subr.mxu0 0.0
  %2034 = vmatpush1.xpose.msra.mxu0 0.0
  %2035 = vmatprep.subr.mxu0 0.0
  %2036 = vmatpush1.xpose.msra.mxu0 0.0
  %2037 = vmatprep.subr.mxu0 0.0
  %2038 = vmatpush1.xpose.msra.mxu0 0.0
  %2039 = vmatprep.subr.mxu0 0.0
  %2040 = vmatpush1.xpose.msra.mxu0 0.0
  %2041 = vmatprep.subr.mxu0 0.0
  %2042 = vmatpush1.xpose.msra.mxu0 0.0
  %2043 = vmatprep.subr.mxu0 0.0
  %2044 = vmatpush1.xpose.msra.mxu0 0.0
  %2045 = vmatprep.subr.mxu0 0.0
  %2046 = vmatpush1.xpose.msra.mxu0 0.0
  %2047 = vmatprep.subr.mxu0 0.0
  %2048 = vmatpush1.xpose.msra.mxu0 0.0
  %2049 = vmatprep.subr.mxu0 0.0
  %2050 = vmatpush1.xpose.msra.mxu0 0.0
  %2051 = vmatprep.subr.mxu0 0.0
  %2052 = vmatpush1.xpose.msra.mxu0 0.0
  %2053 = vmatprep.subr.mxu0 0.0
  %2054 = vmatpush1.xpose.msra.mxu0 0.0
  %2055 = vmatprep.subr.mxu0 0.0
  %2056 = vmatpush1.xpose.msra.mxu0 0.0
  %2057 = vmatprep.subr.mxu0 0.0
  %2058 = vmatpush1.xpose.msra.mxu0 0.0
  %2059 = vmatprep.subr.mxu0 0.0
  %2060 = vmatpush1.xpose.msra.mxu0 0.0
  %2061 = vmatprep.subr.mxu0 0.0
  %2062 = vmatpush1.xpose.msra.mxu0 0.0
  %2063 = vmatprep.subr.mxu0 0.0
  %2064 = vmatpush1.xpose.msra.mxu0 0.0
  %2065 = vmatprep.subr.mxu0 0.0
  %2066 = vmatpush1.xpose.msra.mxu0 0.0
  %2067 = vmatprep.subr.mxu0 0.0
  %2068 = vmatpush1.xpose.msra.mxu0 0.0
  %2069 = vmatprep.subr.mxu0 0.0
  %2070 = vmatpush1.xpose.msra.mxu0 0.0
  %2071 = vmatprep.subr.mxu0 0.0
  %2072 = vmatpush1.xpose.msra.mxu0 0.0
  %2073 = vmatprep.subr.mxu0 0.0
  %2074 = vmatpush1.xpose.msra.mxu0 0.0
  %2075 = vmatprep.subr.mxu0 0.0
  %2076 = vmatpush1.xpose.msra.mxu0 0.0
  %2077 = vmatprep.subr.mxu0 0.0
  %2078 = vmatpush1.xpose.msra.mxu0 0.0
  %2079 = vmatprep.mubr.f32.mxu0 0.0
  %2080 = vmatmul.mubr.f32.gmra.mrb[0].mxu0 %v2011
  %v2081 = vpop.f32.mrb[0].mxu0
  %v2082 = vadd.f32 0.0, %v2081
  %v2083 = vpop.f32.mrb[0].mxu0
  %2084 = vdwg.mxu0
  %v2085 = vmul.f32 %v2082, 0.25
  %v2086 = vadd.f32 %v2085, %v764
  %v2087 = vsel %vm423, %v2086, -inf
  %2088 = vmax.xlane.f32.xlu0 %v2087
  %v2089 = vpop.xlane.xlu0 %2088
  %v2090 = vsub.f32 %v2086, %v2089
  %v2091 = vmul.f32 %v2090, 1.442695
  %v2092 = vpow.pop %v2091
  %v2093 = vsel %vm423, %v2092, 0.0
  %2094 = vadd.xlane.f32.xlu0 %v2093
  %v2095 = vpop.xlane.xlu0 %2094
  %v2096 = vrcp.pop %v2095
  %v2097 = vmul.f32 %v2092, %v2096
  %2098 = vrot.lane.b32.xlu0 %v1500, 48
  %v2099 = vpop.permute.xlu0 %2098
  %v2102 = vsel %vm423, %v2097, 0
  %2104 = vmatprep.subr.mxu0 0.0
  %2105 = vmatpush1.msra.mxu0 %v2099
  %2106 = vmatprep.subr.mxu0 0.0
  %2107 = vmatpush1.msra.mxu0 0.0
  %2108 = vmatprep.subr.mxu0 0.0
  %2109 = vmatpush1.msra.mxu0 0.0
  %2110 = vmatprep.subr.mxu0 0.0
  %2111 = vmatpush1.msra.mxu0 0.0
  %2112 = vmatprep.subr.mxu0 0.0
  %2113 = vmatpush1.msra.mxu0 0.0
  %2114 = vmatprep.subr.mxu0 0.0
  %2115 = vmatpush1.msra.mxu0 0.0
  %2116 = vmatprep.subr.mxu0 0.0
  %2117 = vmatpush1.msra.mxu0 0.0
  %2118 = vmatprep.subr.mxu0 0.0
  %2119 = vmatpush1.msra.mxu0 0.0
  %2120 = vmatprep.subr.mxu0 0.0
  %2121 = vmatpush1.msra.mxu0 0.0
  %2122 = vmatprep.subr.mxu0 0.0
  %2123 = vmatpush1.msra.mxu0 0.0
  %2124 = vmatprep.subr.mxu0 0.0
  %2125 = vmatpush1.msra.mxu0 0.0
  %2126 = vmatprep.subr.mxu0 0.0
  %2127 = vmatpush1.msra.mxu0 0.0
  %2128 = vmatprep.subr.mxu0 0.0
  %2129 = vmatpush1.msra.mxu0 0.0
  %2130 = vmatprep.subr.mxu0 0.0
  %2131 = vmatpush1.msra.mxu0 0.0
  %2132 = vmatprep.subr.mxu0 0.0
  %2133 = vmatpush1.msra.mxu0 0.0
  %2134 = vmatprep.subr.mxu0 0.0
  %2135 = vmatpush1.msra.mxu0 0.0
  %2136 = vmatprep.subr.mxu0 0.0
  %2137 = vmatpush1.msra.mxu0 0.0
  %2138 = vmatprep.subr.mxu0 0.0
  %2139 = vmatpush1.msra.mxu0 0.0
  %2140 = vmatprep.subr.mxu0 0.0
  %2141 = vmatpush1.msra.mxu0 0.0
  %2142 = vmatprep.subr.mxu0 0.0
  %2143 = vmatpush1.msra.mxu0 0.0
  %2144 = vmatprep.subr.mxu0 0.0
  %2145 = vmatpush1.msra.mxu0 0.0
  %2146 = vmatprep.subr.mxu0 0.0
  %2147 = vmatpush1.msra.mxu0 0.0
  %2148 = vmatprep.subr.mxu0 0.0
  %2149 = vmatpush1.msra.mxu0 0.0
  %2150 = vmatprep.subr.mxu0 0.0
  %2151 = vmatpush1.msra.mxu0 0.0
  %2152 = vmatprep.subr.mxu0 0.0
  %2153 = vmatpush1.msra.mxu0 0.0
  %2154 = vmatprep.subr.mxu0 0.0
  %2155 = vmatpush1.msra.mxu0 0.0
  %2156 = vmatprep.subr.mxu0 0.0
  %2157 = vmatpush1.msra.mxu0 0.0
  %2158 = vmatprep.subr.mxu0 0.0
  %2159 = vmatpush1.msra.mxu0 0.0
  %2160 = vmatprep.subr.mxu0 0.0
  %2161 = vmatpush1.msra.mxu0 0.0
  %2162 = vmatprep.subr.mxu0 0.0
  %2163 = vmatpush1.msra.mxu0 0.0
  %2164 = vmatprep.subr.mxu0 0.0
  %2165 = vmatpush1.msra.mxu0 0.0
  %2166 = vmatprep.subr.mxu0 0.0
  %2167 = vmatpush1.msra.mxu0 0.0
  %2168 = vmatprep.mubr.f32.mxu0 0.0
  %2169 = vmatmul.mubr.f32.gmra.mrb[0].mxu0 %v2102
  %v2170 = vpop.f32.mrb[0].mxu0
  %v2171 = vadd.f32 0.0, %v2170
  %v2172 = vpop.f32.mrb[0].mxu0
  %2173 = vdwg.mxu0
  %2175 = vrot.lane.b32.xlu0 %v2171, 16
  %v2176 = vpop.permute.xlu0 %2175
  %v2178 = vsel %vm342, %v2004, %v2176
  %s2179 = scalar_lea.vmem %s9, 32
  %v2180 = vld [vmem:[%s2179] sm:$0xff]
  %v2181 = vld [vmem:[%s2179 + $0x8] sm:$0xff]
  %v2182 = vld [vmem:[%s2179 + $0x10] sm:$0xff]
  %v2183 = vld [vmem:[%s2179 + $0x18] sm:$0xff]
  %s2184 = scalar_lea.vmem %s10, 1
  %v2185 = vld [vmem:[%s2184] sm:$0x1]
  %v2187 = vlaneseq
  %v2188 = vshrl.u32 %v2187, 7
  %v2189 = vsub.s32 0, %v2188
  %v2190 = vrot.slane %v2185, %v2189
  %v2193 = vsel %vm199, %v1840, 0
  %v2196 = vsel %vm199, %v2178, 0
  %2198 = vmatprep.subr.mxu0 0.0
  %2199 = vmatpush1.msra.mxu0 %v2180
  %2200 = vmatprep.subr.mxu0 0.0
  %2201 = vmatpush1.msra.mxu0 %v2181
  %2202 = vmatprep.subr.mxu0 0.0
  %2203 = vmatpush1.msra.mxu0 %v2182
  %2204 = vmatprep.subr.mxu0 0.0
  %2205 = vmatpush1.msra.mxu0 %v2183
  %2206 = vmatprep.subr.mxu0 0.0
  %2207 = vmatpush1.msra.mxu0 0.0
  %2208 = vmatprep.subr.mxu0 0.0
  %2209 = vmatpush1.msra.mxu0 0.0
  %2210 = vmatprep.subr.mxu0 0.0
  %2211 = vmatpush1.msra.mxu0 0.0
  %2212 = vmatprep.subr.mxu0 0.0
  %2213 = vmatpush1.msra.mxu0 0.0
  %2214 = vmatprep.subr.mxu0 0.0
  %2215 = vmatpush1.msra.mxu0 0.0
  %2216 = vmatprep.subr.mxu0 0.0
  %2217 = vmatpush1.msra.mxu0 0.0
  %2218 = vmatprep.subr.mxu0 0.0
  %2219 = vmatpush1.msra.mxu0 0.0
  %2220 = vmatprep.subr.mxu0 0.0
  %2221 = vmatpush1.msra.mxu0 0.0
  %2222 = vmatprep.subr.mxu0 0.0
  %2223 = vmatpush1.msra.mxu0 0.0
  %2224 = vmatprep.subr.mxu0 0.0
  %2225 = vmatpush1.msra.mxu0 0.0
  %2226 = vmatprep.subr.mxu0 0.0
  %2227 = vmatpush1.msra.mxu0 0.0
  %2228 = vmatprep.subr.mxu0 0.0
  %2229 = vmatpush1.msra.mxu0 0.0
  %2230 = vmatprep.subr.mxu0 0.0
  %2231 = vmatpush1.msra.mxu0 0.0
  %2232 = vmatprep.subr.mxu0 0.0
  %2233 = vmatpush1.msra.mxu0 0.0
  %2234 = vmatprep.subr.mxu0 0.0
  %2235 = vmatpush1.msra.mxu0 0.0
  %2236 = vmatprep.subr.mxu0 0.0
  %2237 = vmatpush1.msra.mxu0 0.0
  %2238 = vmatprep.subr.mxu0 0.0
  %2239 = vmatpush1.msra.mxu0 0.0
  %2240 = vmatprep.subr.mxu0 0.0
  %2241 = vmatpush1.msra.mxu0 0.0
  %2242 = vmatprep.subr.mxu0 0.0
  %2243 = vmatpush1.msra.mxu0 0.0
  %2244 = vmatprep.subr.mxu0 0.0
  %2245 = vmatpush1.msra.mxu0 0.0
  %2246 = vmatprep.subr.mxu0 0.0
  %2247 = vmatpush1.msra.mxu0 0.0
  %2248 = vmatprep.subr.mxu0 0.0
  %2249 = vmatpush1.msra.mxu0 0.0
  %2250 = vmatprep.subr.mxu0 0.0
  %2251 = vmatpush1.msra.mxu0 0.0
  %2252 = vmatprep.subr.mxu0 0.0
  %2253 = vmatpush1.msra.mxu0 0.0
  %2254 = vmatprep.subr.mxu0 0.0
  %2255 = vmatpush1.msra.mxu0 0.0
  %2256 = vmatprep.subr.mxu0 0.0
  %2257 = vmatpush1.msra.mxu0 0.0
  %2258 = vmatprep.subr.mxu0 0.0
  %2259 = vmatpush1.msra.mxu0 0.0
  %2260 = vmatprep.subr.mxu0 0.0
  %2261 = vmatpush1.msra.mxu0 0.0
  %2262 = vmatprep.mubr.f32.mxu0 0.0
  %2263 = vmatmul.mubr.f32.gmra.mrb[0].mxu0 %v2193
  %v2264 = vpop.f32.mrb[0].mxu0
  %v2265 = vadd.f32 %v2190, %v2264
  %v2266 = vpop.f32.mrb[0].mxu0
  %2267 = vmatprep.mubr.f32.mxu0 0.0
  %2268 = vmatmul.mubr.f32.gmra.mrb[0].mxu0 %v2196
  %v2269 = vpop.f32.mrb[0].mxu0
  %v2270 = vadd.f32 %v2190, %v2269
  %v2271 = vpop.f32.mrb[0].mxu0
  %2272 = vdwg.mxu0
  %v2273 = vadd.f32 %v2265, %v1407
  %v2274 = vadd.f32 %v2270, %v1408
  %s2275 = scalar_lea.vmem %s11, 1
  %v2276 = vld [vmem:[%s2275] sm:$0x1]
  %s2277 = scalar_lea.vmem %s12, 1
  %v2278 = vld [vmem:[%s2277] sm:$0x1]
  %v2279 = vsel %vm199, %v2273, 0.0
  %2280 = vadd.xlane.f32.xlu0 %v2279
  %v2281 = vpop.xlane.xlu0 %2280
  %v2282 = vsel %vm199, %v2274, 0.0
  %2283 = vadd.xlane.f32.xlu0 %v2282
  %v2284 = vpop.xlane.xlu0 %2283
  %v2285 = vmul.f32 %v2281, %v206
  %v2286 = vmul.f32 %v2284, %v206
  %v2287 = vsub.f32 %v2273, %v2285
  %v2288 = vsub.f32 %v2274, %v2286
  %v2289 = vmul.f32 %v2287, %v2287
  %v2290 = vmul.f32 %v2288, %v2288
  %v2291 = vsel %vm199, %v2289, 0.0
  %2292 = vadd.xlane.f32.xlu0 %v2291
  %v2293 = vpop.xlane.xlu0 %2292
  %v2294 = vsel %vm199, %v2290, 0.0
  %2295 = vadd.xlane.f32.xlu0 %v2294
  %v2296 = vpop.xlane.xlu0 %2295
  %v2297 = vmul.f32 %v2293, %v206
  %v2298 = vmul.f32 %v2296, %v206
  %v2299 = vadd.f32 %v2297, 1e-05
  %v2300 = vadd.f32 %v2298, 1e-05
  %v2301 = vrsqrt.pop %v2299
  %v2302 = vrsqrt.pop %v2300
  %v2303 = vmul.f32 %v2287, %v2301
  %v2304 = vmul.f32 %v2288, %v2302
  %v2306 = vlaneseq
  %v2307 = vshrl.u32 %v2306, 7
  %v2308 = vsub.s32 0, %v2307
  %v2309 = vrot.slane %v2276, %v2308
  %v2311 = vmul.f32 %v2303, %v2309
  %v2312 = vmul.f32 %v2304, %v2309
  %v2314 = vlaneseq
  %v2315 = vshrl.u32 %v2314, 7
  %v2316 = vsub.s32 0, %v2315
  %v2317 = vrot.slane %v2278, %v2316
  %v2319 = vadd.f32 %v2311, %v2317
  %v2320 = vadd.f32 %v2312, %v2317
  %s2321 = scalar_lea.vmem %s13, 32
  %v2322 = vld [vmem:[%s2321] sm:$0xff]
  %v2323 = vld [vmem:[%s2321 + $0x8] sm:$0xff]
  %v2324 = vld [vmem:[%s2321 + $0x10] sm:$0xff]
  %v2325 = vld [vmem:[%s2321 + $0x18] sm:$0xff]
  %s2326 = scalar_lea.vmem %s14, 1
  %v2327 = vld [vmem:[%s2326] sm:$0x1]
  %v2329 = vlaneseq
  %v2330 = vshrl.u32 %v2329, 7
  %v2331 = vsub.s32 0, %v2330
  %v2332 = vrot.slane %v2327, %v2331
  %v2335 = vsel %vm199, %v2319, 0
  %v2338 = vsel %vm199, %v2320, 0
  %2340 = vmatprep.subr.mxu0 0.0
  %2341 = vmatpush1.msra.mxu0 %v2322
  %2342 = vmatprep.subr.mxu0 0.0
  %2343 = vmatpush1.msra.mxu0 %v2323
  %2344 = vmatprep.subr.mxu0 0.0
  %2345 = vmatpush1.msra.mxu0 %v2324
  %2346 = vmatprep.subr.mxu0 0.0
  %2347 = vmatpush1.msra.mxu0 %v2325
  %2348 = vmatprep.subr.mxu0 0.0
  %2349 = vmatpush1.msra.mxu0 0.0
  %2350 = vmatprep.subr.mxu0 0.0
  %2351 = vmatpush1.msra.mxu0 0.0
  %2352 = vmatprep.subr.mxu0 0.0
  %2353 = vmatpush1.msra.mxu0 0.0
  %2354 = vmatprep.subr.mxu0 0.0
  %2355 = vmatpush1.msra.mxu0 0.0
  %2356 = vmatprep.subr.mxu0 0.0
  %2357 = vmatpush1.msra.mxu0 0.0
  %2358 = vmatprep.subr.mxu0 0.0
  %2359 = vmatpush1.msra.mxu0 0.0
  %2360 = vmatprep.subr.mxu0 0.0
  %2361 = vmatpush1.msra.mxu0 0.0
  %2362 = vmatprep.subr.mxu0 0.0
  %2363 = vmatpush1.msra.mxu0 0.0
  %2364 = vmatprep.subr.mxu0 0.0
  %2365 = vmatpush1.msra.mxu0 0.0
  %2366 = vmatprep.subr.mxu0 0.0
  %2367 = vmatpush1.msra.mxu0 0.0
  %2368 = vmatprep.subr.mxu0 0.0
  %2369 = vmatpush1.msra.mxu0 0.0
  %2370 = vmatprep.subr.mxu0 0.0
  %2371 = vmatpush1.msra.mxu0 0.0
  %2372 = vmatprep.subr.mxu0 0.0
  %2373 = vmatpush1.msra.mxu0 0.0
  %2374 = vmatprep.subr.mxu0 0.0
  %2375 = vmatpush1.msra.mxu0 0.0
  %2376 = vmatprep.subr.mxu0 0.0
  %2377 = vmatpush1.msra.mxu0 0.0
  %2378 = vmatprep.subr.mxu0 0.0
  %2379 = vmatpush1.msra.mxu0 0.0
  %2380 = vmatprep.subr.mxu0 0.0
  %2381 = vmatpush1.msra.mxu0 0.0
  %2382 = vmatprep.subr.mxu0 0.0
  %2383 = vmatpush1.msra.mxu0 0.0
  %2384 = vmatprep.subr.mxu0 0.0
  %2385 = vmatpush1.msra.mxu0 0.0
  %2386 = vmatprep.subr.mxu0 0.0
  %2387 = vmatpush1.msra.mxu0 0.0
  %2388 = vmatprep.subr.mxu0 0.0
  %2389 = vmatpush1.msra.mxu0 0.0
  %2390 = vmatprep.subr.mxu0 0.0
  %2391 = vmatpush1.msra.mxu0 0.0
  %2392 = vmatprep.subr.mxu0 0.0
  %2393 = vmatpush1.msra.mxu0 0.0
  %2394 = vmatprep.subr.mxu0 0.0
  %2395 = vmatpush1.msra.mxu0 0.0
  %2396 = vmatprep.subr.mxu0 0.0
  %2397 = vmatpush1.msra.mxu0 0.0
  %2398 = vmatprep.subr.mxu0 0.0
  %2399 = vmatpush1.msra.mxu0 0.0
  %2400 = vmatprep.subr.mxu0 0.0
  %2401 = vmatpush1.msra.mxu0 0.0
  %2402 = vmatprep.subr.mxu0 0.0
  %2403 = vmatpush1.msra.mxu0 0.0
  %2404 = vmatprep.mubr.f32.mxu0 0.0
  %2405 = vmatmul.mubr.f32.gmra.mrb[0].mxu0 %v2335
  %v2406 = vpop.f32.mrb[0].mxu0
  %v2407 = vadd.f32 %v2332, %v2406
  %v2408 = vpop.f32.mrb[0].mxu0
  %2409 = vmatprep.mubr.f32.mxu0 0.0
  %2410 = vmatmul.mubr.f32.gmra.mrb[0].mxu0 %v2338
  %v2411 = vpop.f32.mrb[0].mxu0
  %v2412 = vadd.f32 %v2332, %v2411
  %v2413 = vpop.f32.mrb[0].mxu0
  %2414 = vdwg.mxu0
  %v2415 = vmul.f32 %v2407, 0.5
  %v2416 = vmul.f32 %v2412, 0.5
  %v2417 = vmul.f32 %v2407, 0.70710677
  %v2418 = vmul.f32 %v2412, 0.70710677
  %v2419 = verf.f32.pop %v2417
  %v2420 = verf.f32.pop %v2418
  %v2421 = vadd.f32 %v2419, 1.0
  %v2422 = vadd.f32 %v2420, 1.0
  %v2423 = vmul.f32 %v2415, %v2421
  %v2424 = vmul.f32 %v2416, %v2422
  %s2425 = scalar_lea.vmem %s15, 128
  %v2426 = vld [vmem:[%s2425] sm:$0xff]
  %v2427 = vld [vmem:[%s2425 + $0x8] sm:$0xff]
  %v2428 = vld [vmem:[%s2425 + $0x10] sm:$0xff]
  %v2429 = vld [vmem:[%s2425 + $0x18] sm:$0xff]
  %v2430 = vld [vmem:[%s2425 + $0x20] sm:$0xff]
  %v2431 = vld [vmem:[%s2425 + $0x28] sm:$0xff]
  %v2432 = vld [vmem:[%s2425 + $0x30] sm:$0xff]
  %v2433 = vld [vmem:[%s2425 + $0x38] sm:$0xff]
  %v2434 = vld [vmem:[%s2425 + $0x40] sm:$0xff]
  %v2435 = vld [vmem:[%s2425 + $0x48] sm:$0xff]
  %v2436 = vld [vmem:[%s2425 + $0x50] sm:$0xff]
  %v2437 = vld [vmem:[%s2425 + $0x58] sm:$0xff]
  %v2438 = vld [vmem:[%s2425 + $0x60] sm:$0xff]
  %v2439 = vld [vmem:[%s2425 + $0x68] sm:$0xff]
  %v2440 = vld [vmem:[%s2425 + $0x70] sm:$0xff]
  %v2441 = vld [vmem:[%s2425 + $0x78] sm:$0xff]
  %s2442 = scalar_lea.vmem %s16, 1
  %v2443 = vld [vmem:[%s2442] sm:$0x1]
  %v2445 = vlaneseq
  %v2446 = vshrl.u32 %v2445, 7
  %v2447 = vsub.s32 0, %v2446
  %v2448 = vrot.slane %v2443, %v2447
  %2450 = vmatprep.subr.mxu0 0.0
  %2451 = vmatpush1.msra.mxu0 %v2426
  %2452 = vmatprep.subr.mxu0 0.0
  %2453 = vmatpush1.msra.mxu0 %v2427
  %2454 = vmatprep.subr.mxu0 0.0
  %2455 = vmatpush1.msra.mxu0 %v2428
  %2456 = vmatprep.subr.mxu0 0.0
  %2457 = vmatpush1.msra.mxu0 %v2429
  %2458 = vmatprep.subr.mxu0 0.0
  %2459 = vmatpush1.msra.mxu0 %v2430
  %2460 = vmatprep.subr.mxu0 0.0
  %2461 = vmatpush1.msra.mxu0 %v2431
  %2462 = vmatprep.subr.mxu0 0.0
  %2463 = vmatpush1.msra.mxu0 %v2432
  %2464 = vmatprep.subr.mxu0 0.0
  %2465 = vmatpush1.msra.mxu0 %v2433
  %2466 = vmatprep.subr.mxu0 0.0
  %2467 = vmatpush1.msra.mxu0 %v2434
  %2468 = vmatprep.subr.mxu0 0.0
  %2469 = vmatpush1.msra.mxu0 %v2435
  %2470 = vmatprep.subr.mxu0 0.0
  %2471 = vmatpush1.msra.mxu0 %v2436
  %2472 = vmatprep.subr.mxu0 0.0
  %2473 = vmatpush1.msra.mxu0 %v2437
  %2474 = vmatprep.subr.mxu0 0.0
  %2475 = vmatpush1.msra.mxu0 %v2438
  %2476 = vmatprep.subr.mxu0 0.0
  %2477 = vmatpush1.msra.mxu0 %v2439
  %2478 = vmatprep.subr.mxu0 0.0
  %2479 = vmatpush1.msra.mxu0 %v2440
  %2480 = vmatprep.subr.mxu0 0.0
  %2481 = vmatpush1.msra.mxu0 %v2441
  %2482 = vmatprep.subr.mxu0 0.0
  %2483 = vmatpush1.msra.mxu0 0.0
  %2484 = vmatprep.subr.mxu0 0.0
  %2485 = vmatpush1.msra.mxu0 0.0
  %2486 = vmatprep.subr.mxu0 0.0
  %2487 = vmatpush1.msra.mxu0 0.0
  %2488 = vmatprep.subr.mxu0 0.0
  %2489 = vmatpush1.msra.mxu0 0.0
  %2490 = vmatprep.subr.mxu0 0.0
  %2491 = vmatpush1.msra.mxu0 0.0
  %2492 = vmatprep.subr.mxu0 0.0
  %2493 = vmatpush1.msra.mxu0 0.0
  %2494 = vmatprep.subr.mxu0 0.0
  %2495 = vmatpush1.msra.mxu0 0.0
  %2496 = vmatprep.subr.mxu0 0.0
  %2497 = vmatpush1.msra.mxu0 0.0
  %2498 = vmatprep.subr.mxu0 0.0
  %2499 = vmatpush1.msra.mxu0 0.0
  %2500 = vmatprep.subr.mxu0 0.0
  %2501 = vmatpush1.msra.mxu0 0.0
  %2502 = vmatprep.subr.mxu0 0.0
  %2503 = vmatpush1.msra.mxu0 0.0
  %2504 = vmatprep.subr.mxu0 0.0
  %2505 = vmatpush1.msra.mxu0 0.0
  %2506 = vmatprep.subr.mxu0 0.0
  %2507 = vmatpush1.msra.mxu0 0.0
  %2508 = vmatprep.subr.mxu0 0.0
  %2509 = vmatpush1.msra.mxu0 0.0
  %2510 = vmatprep.subr.mxu0 0.0
  %2511 = vmatpush1.msra.mxu0 0.0
  %2512 = vmatprep.subr.mxu0 0.0
  %2513 = vmatpush1.msra.mxu0 0.0
  %2514 = vmatprep.mubr.f32.mxu0 0.0
  %2515 = vmatmul.mubr.f32.gmra.mrb[0].mxu0 %v2423
  %v2516 = vpop.f32.mrb[0].mxu0
  %v2517 = vadd.f32 %v2448, %v2516
  %v2518 = vpop.f32.mrb[0].mxu0
  %2519 = vmatprep.mubr.f32.mxu0 0.0
  %2520 = vmatmul.mubr.f32.gmra.mrb[0].mxu0 %v2424
  %v2521 = vpop.f32.mrb[0].mxu0
  %v2522 = vadd.f32 %v2448, %v2521
  %v2523 = vpop.f32.mrb[0].mxu0
  %2524 = vdwg.mxu0
  %v2525 = vadd.f32 %v2517, %v2319
  %v2526 = vadd.f32 %v2522, %v2320
  %s2527 = scalar_lea.vmem %s17, 1
  %v2528 = vld [vmem:[%s2527] sm:$0x1]
  %s2529 = scalar_lea.vmem %s18, 1
  %v2530 = vld [vmem:[%s2529] sm:$0x1]
  %v2531 = vsel %vm199, %v2525, 0.0
  %2532 = vadd.xlane.f32.xlu0 %v2531
  %v2533 = vpop.xlane.xlu0 %2532
  %v2534 = vsel %vm199, %v2526, 0.0
  %2535 = vadd.xlane.f32.xlu0 %v2534
  %v2536 = vpop.xlane.xlu0 %2535
  %v2537 = vmul.f32 %v2533, %v206
  %v2538 = vmul.f32 %v2536, %v206
  %v2539 = vsub.f32 %v2525, %v2537
  %v2540 = vsub.f32 %v2526, %v2538
  %v2541 = vmul.f32 %v2539, %v2539
  %v2542 = vmul.f32 %v2540, %v2540
  %v2543 = vsel %vm199, %v2541, 0.0
  %2544 = vadd.xlane.f32.xlu0 %v2543
  %v2545 = vpop.xlane.xlu0 %2544
  %v2546 = vsel %vm199, %v2542, 0.0
  %2547 = vadd.xlane.f32.xlu0 %v2546
  %v2548 = vpop.xlane.xlu0 %2547
  %v2549 = vmul.f32 %v2545, %v206
  %v2550 = vmul.f32 %v2548, %v206
  %v2551 = vadd.f32 %v2549, 1e-05
  %v2552 = vadd.f32 %v2550, 1e-05
  %v2553 = vrsqrt.pop %v2551
  %v2554 = vrsqrt.pop %v2552
  %v2555 = vmul.f32 %v2539, %v2553
  %v2556 = vmul.f32 %v2540, %v2554
  %v2558 = vlaneseq
  %v2559 = vshrl.u32 %v2558, 7
  %v2560 = vsub.s32 0, %v2559
  %v2561 = vrot.slane %v2528, %v2560
  %v2563 = vmul.f32 %v2555, %v2561
  %v2564 = vmul.f32 %v2556, %v2561
  %v2566 = vlaneseq
  %v2567 = vshrl.u32 %v2566, 7
  %v2568 = vsub.s32 0, %v2567
  %v2569 = vrot.slane %v2530, %v2568
  %v2571 = vadd.f32 %v2563, %v2569
  %v2572 = vadd.f32 %v2564, %v2569
  %v2574 = vrot.slane %v2572, 7
  %vm2576 = vcmask 1040384
  %v2577 = vsel %vm2576, %v2571, %v2574
  %v2578 = vld [vmem:[%s19] sm:$0xff]
  %v2579 = vld [vmem:[%s19 + $0x8] sm:$0xff]
  %v2580 = vld [vmem:[%s19 + $0x10] sm:$0xff]
  %v2581 = vld [vmem:[%s19 + $0x18] sm:$0xff]
  %v2582 = vld [vmem:[%s20] sm:$0x1]
  %v2584 = vlaneseq
  %v2585 = vshrl.u32 %v2584, 7
  %v2586 = vsub.s32 0, %v2585
  %v2587 = vrot.slane %v2582, %v2586
  %v2590 = vsel %vm199, %v2577, 0
  %2592 = vmatprep.subr.mxu0 0.0
  %2593 = vmatpush1.msra.mxu0 %v2578
  %2594 = vmatprep.subr.mxu0 0.0
  %2595 = vmatpush1.msra.mxu0 %v2579
  %2596 = vmatprep.subr.mxu0 0.0
  %2597 = vmatpush1.msra.mxu0 %v2580
  %2598 = vmatprep.subr.mxu0 0.0
  %2599 = vmatpush1.msra.mxu0 %v2581
  %2600 = vmatprep.subr.mxu0 0.0
  %2601 = vmatpush1.msra.mxu0 0.0
  %2602 = vmatprep.subr.mxu0 0.0
  %2603 = vmatpush1.msra.mxu0 0.0
  %2604 = vmatprep.subr.mxu0 0.0
  %2605 = vmatpush1.msra.mxu0 0.0
  %2606 = vmatprep.subr.mxu0 0.0
  %2607 = vmatpush1.msra.mxu0 0.0
  %2608 = vmatprep.subr.mxu0 0.0
  %2609 = vmatpush1.msra.mxu0 0.0
  %2610 = vmatprep.subr.mxu0 0.0
  %2611 = vmatpush1.msra.mxu0 0.0
  %2612 = vmatprep.subr.mxu0 0.0
  %2613 = vmatpush1.msra.mxu0 0.0
  %2614 = vmatprep.subr.mxu0 0.0
  %2615 = vmatpush1.msra.mxu0 0.0
  %2616 = vmatprep.subr.mxu0 0.0
  %2617 = vmatpush1.msra.mxu0 0.0
  %2618 = vmatprep.subr.mxu0 0.0
  %2619 = vmatpush1.msra.mxu0 0.0
  %2620 = vmatprep.subr.mxu0 0.0
  %2621 = vmatpush1.msra.mxu0 0.0
  %2622 = vmatprep.subr.mxu0 0.0
  %2623 = vmatpush1.msra.mxu0 0.0
  %2624 = vmatprep.subr.mxu0 0.0
  %2625 = vmatpush1.msra.mxu0 0.0
  %2626 = vmatprep.subr.mxu0 0.0
  %2627 = vmatpush1.msra.mxu0 0.0
  %2628 = vmatprep.subr.mxu0 0.0
  %2629 = vmatpush1.msra.mxu0 0.0
  %2630 = vmatprep.subr.mxu0 0.0
  %2631 = vmatpush1.msra.mxu0 0.0
  %2632 = vmatprep.subr.mxu0 0.0
  %2633 = vmatpush1.msra.mxu0 0.0
  %2634 = vmatprep.subr.mxu0 0.0
  %2635 = vmatpush1.msra.mxu0 0.0
  %2636 = vmatprep.subr.mxu0 0.0
  %2637 = vmatpush1.msra.mxu0 0.0
  %2638 = vmatprep.subr.mxu0 0.0
  %2639 = vmatpush1.msra.mxu0 0.0
  %2640 = vmatprep.subr.mxu0 0.0
  %2641 = vmatpush1.msra.mxu0 0.0
  %2642 = vmatprep.subr.mxu0 0.0
  %2643 = vmatpush1.msra.mxu0 0.0
  %2644 = vmatprep.subr.mxu0 0.0
  %2645 = vmatpush1.msra.mxu0 0.0
  %2646 = vmatprep.subr.mxu0 0.0
  %2647 = vmatpush1.msra.mxu0 0.0
  %2648 = vmatprep.subr.mxu0 0.0
  %2649 = vmatpush1.msra.mxu0 0.0
  %2650 = vmatprep.subr.mxu0 0.0
  %2651 = vmatpush1.msra.mxu0 0.0
  %2652 = vmatprep.subr.mxu0 0.0
  %2653 = vmatpush1.msra.mxu0 0.0
  %2654 = vmatprep.subr.mxu0 0.0
  %2655 = vmatpush1.msra.mxu0 0.0
  %2656 = vmatprep.mubr.f32.mxu0 0.0
  %2657 = vmatmul.mubr.f32.gmra.mrb[0].mxu0 %v2590
  %v2658 = vpop.f32.mrb[0].mxu0
  %v2659 = vadd.f32 %v2587, %v2658
  %v2660 = vpop.f32.mrb[0].mxu0
  %2661 = vdwg.mxu0
  %v2662 = vtanh.pop %v2659
  %v2663 = vld [vmem:[%s21] sm:$0xff]
  %v2664 = vld [vmem:[%s21 + $0x8] sm:$0xff]
  %v2665 = vld [vmem:[%s21 + $0x10] sm:$0xff]
  %v2666 = vld [vmem:[%s21 + $0x18] sm:$0xff]
  %v2667 = vld [vmem:[%s21 + $0x20] sm:$0xff]
  %v2668 = vld [vmem:[%s21 + $0x28] sm:$0xff]
  %v2669 = vld [vmem:[%s21 + $0x30] sm:$0xff]
  %v2670 = vld [vmem:[%s21 + $0x38] sm:$0xff]
  %v2671 = vld [vmem:[%s21 + $0x40] sm:$0xff]
  %v2672 = vld [vmem:[%s21 + $0x48] sm:$0xff]
  %v2673 = vld [vmem:[%s21 + $0x50] sm:$0xff]
  %v2674 = vld [vmem:[%s21 + $0x58] sm:$0xff]
  %v2675 = vld [vmem:[%s21 + $0x60] sm:$0xff]
  %v2676 = vld [vmem:[%s21 + $0x68] sm:$0xff]
  %v2677 = vld [vmem:[%s21 + $0x70] sm:$0xff]
  %v2678 = vld [vmem:[%s21 + $0x78] sm:$0xff]
  %v2679 = vld [vmem:[%s22] sm:$0xf]
  %v2681 = vlaneseq
  %v2682 = vshrl.u32 %v2681, 7
  %v2683 = vsub.s32 0, %v2682
  %v2684 = vrot.slane %v2679, %v2683
  %v2685 = vlaneseq
  %v2686 = vshrl.u32 %v2685, 7
  %v2687 = vsub.s32 1, %v2686
  %v2688 = vrot.slane %v2679, %v2687
  %v2689 = vlaneseq
  %v2690 = vshrl.u32 %v2689, 7
  %v2691 = vsub.s32 2, %v2690
  %v2692 = vrot.slane %v2679, %v2691
  %v2693 = vlaneseq
  %v2694 = vshrl.u32 %v2693, 7
  %v2695 = vsub.s32 3, %v2694
  %v2696 = vrot.slane %v2679, %v2695
  %v2702 = vsel %vm199, %v2662, 0
  %2704 = vmatprep.subr.mxu0 %v2664
  %2705 = vmatpush1.msra.mxu0 %v2663
  %2706 = vmatprep.subr.mxu0 %v2668
  %2707 = vmatpush1.msra.mxu0 %v2667
  %2708 = vmatprep.subr.mxu0 %v2672
  %2709 = vmatpush1.msra.mxu0 %v2671
  %2710 = vmatprep.subr.mxu0 %v2676
  %2711 = vmatpush1.msra.mxu0 %v2675
  %2712 = vmatprep.subr.mxu0 0.0
  %2713 = vmatpush1.msra.mxu0 0.0
  %2714 = vmatprep.subr.mxu0 0.0
  %2715 = vmatpush1.msra.mxu0 0.0
  %2716 = vmatprep.subr.mxu0 0.0
  %2717 = vmatpush1.msra.mxu0 0.0
  %2718 = vmatprep.subr.mxu0 0.0
  %2719 = vmatpush1.msra.mxu0 0.0
  %2720 = vmatprep.subr.mxu0 0.0
  %2721 = vmatpush1.msra.mxu0 0.0
  %2722 = vmatprep.subr.mxu0 0.0
  %2723 = vmatpush1.msra.mxu0 0.0
  %2724 = vmatprep.subr.mxu0 0.0
  %2725 = vmatpush1.msra.mxu0 0.0
  %2726 = vmatprep.subr.mxu0 0.0
  %2727 = vmatpush1.msra.mxu0 0.0
  %2728 = vmatprep.subr.mxu0 0.0
  %2729 = vmatpush1.msra.mxu0 0.0
  %2730 = vmatprep.subr.mxu0 0.0
  %2731 = vmatpush1.msra.mxu0 0.0
  %2732 = vmatprep.subr.mxu0 0.0
  %2733 = vmatpush1.msra.mxu0 0.0
  %2734 = vmatprep.subr.mxu0 0.0
  %2735 = vmatpush1.msra.mxu0 0.0
  %2736 = vmatprep.subr.mxu0 0.0
  %2737 = vmatpush1.msra.mxu0 0.0
  %2738 = vmatprep.subr.mxu0 0.0
  %2739 = vmatpush1.msra.mxu0 0.0
  %2740 = vmatprep.subr.mxu0 0.0
  %2741 = vmatpush1.msra.mxu0 0.0
  %2742 = vmatprep.subr.mxu0 0.0
  %2743 = vmatpush1.msra.mxu0 0.0
  %2744 = vmatprep.subr.mxu0 0.0
  %2745 = vmatpush1.msra.mxu0 0.0
  %2746 = vmatprep.subr.mxu0 0.0
  %2747 = vmatpush1.msra.mxu0 0.0
  %2748 = vmatprep.subr.mxu0 0.0
  %2749 = vmatpush1.msra.mxu0 0.0
  %2750 = vmatprep.subr.mxu0 0.0
  %2751 = vmatpush1.msra.mxu0 0.0
  %2752 = vmatprep.subr.mxu0 0.0
  %2753 = vmatpush1.msra.mxu0 0.0
  %2754 = vmatprep.subr.mxu0 0.0
  %2755 = vmatpush1.msra.mxu0 0.0
  %2756 = vmatprep.subr.mxu0 0.0
  %2757 = vmatpush1.msra.mxu0 0.0
  %2758 = vmatprep.subr.mxu0 0.0
  %2759 = vmatpush1.msra.mxu0 0.0
  %2760 = vmatprep.subr.mxu0 0.0
  %2761 = vmatpush1.msra.mxu0 0.0
  %2762 = vmatprep.subr.mxu0 0.0
  %2763 = vmatpush1.msra.mxu0 0.0
  %2764 = vmatprep.subr.mxu0 0.0
  %2765 = vmatpush1.msra.mxu0 0.0
  %2766 = vmatprep.subr.mxu0 0.0
  %2767 = vmatpush1.msra.mxu0 0.0
  %2768 = vmatprep.mubr.f32.mxu0 0.0
  %2769 = vmatmul.mubr.f32.gmra.mrb[0].mxu0 %v2702
  %v2770 = vpop.f32.mrb[0].mxu0
  %v2771 = vadd.f32 %v2684, %v2770
  %v2772 = vpop.f32.mrb[0].mxu0
  %v2773 = vadd.f32 %v2688, %v2772
  %2774 = vdwg.mxu0
  %2775 = vmatprep.subr.mxu0 %v2666
  %2776 = vmatpush1.msra.mxu0 %v2665
  %2777 = vmatprep.subr.mxu0 %v2670
  %2778 = vmatpush1.msra.mxu0 %v2669
  %2779 = vmatprep.subr.mxu0 %v2674
  %2780 = vmatpush1.msra.mxu0 %v2673
  %2781 = vmatprep.subr.mxu0 %v2678
  %2782 = vmatpush1.msra.mxu0 %v2677
  %2783 = vmatprep.subr.mxu0 0.0
  %2784 = vmatpush1.msra.mxu0 0.0
  %2785 = vmatprep.subr.mxu0 0.0
  %2786 = vmatpush1.msra.mxu0 0.0
  %2787 = vmatprep.subr.mxu0 0.0
  %2788 = vmatpush1.msra.mxu0 0.0
  %2789 = vmatprep.subr.mxu0 0.0
  %2790 = vmatpush1.msra.mxu0 0.0
  %2791 = vmatprep.subr.mxu0 0.0
  %2792 = vmatpush1.msra.mxu0 0.0
  %2793 = vmatprep.subr.mxu0 0.0
  %2794 = vmatpush1.msra.mxu0 0.0
  %2795 = vmatprep.subr.mxu0 0.0
  %2796 = vmatpush1.msra.mxu0 0.0
  %2797 = vmatprep.subr.mxu0 0.0
  %2798 = vmatpush1.msra.mxu0 0.0
  %2799 = vmatprep.subr.mxu0 0.0
  %2800 = vmatpush1.msra.mxu0 0.0
  %2801 = vmatprep.subr.mxu0 0.0
  %2802 = vmatpush1.msra.mxu0 0.0
  %2803 = vmatprep.subr.mxu0 0.0
  %2804 = vmatpush1.msra.mxu0 0.0
  %2805 = vmatprep.subr.mxu0 0.0
  %2806 = vmatpush1.msra.mxu0 0.0
  %2807 = vmatprep.subr.mxu0 0.0
  %2808 = vmatpush1.msra.mxu0 0.0
  %2809 = vmatprep.subr.mxu0 0.0
  %2810 = vmatpush1.msra.mxu0 0.0
  %2811 = vmatprep.subr.mxu0 0.0
  %2812 = vmatpush1.msra.mxu0 0.0
  %2813 = vmatprep.subr.mxu0 0.0
  %2814 = vmatpush1.msra.mxu0 0.0
  %2815 = vmatprep.subr.mxu0 0.0
  %2816 = vmatpush1.msra.mxu0 0.0
  %2817 = vmatprep.subr.mxu0 0.0
  %2818 = vmatpush1.msra.mxu0 0.0
  %2819 = vmatprep.subr.mxu0 0.0
  %2820 = vmatpush1.msra.mxu0 0.0
  %2821 = vmatprep.subr.mxu0 0.0
  %2822 = vmatpush1.msra.mxu0 0.0
  %2823 = vmatprep.subr.mxu0 0.0
  %2824 = vmatpush1.msra.mxu0 0.0
  %2825 = vmatprep.subr.mxu0 0.0
  %2826 = vmatpush1.msra.mxu0 0.0
  %2827 = vmatprep.subr.mxu0 0.0
  %2828 = vmatpush1.msra.mxu0 0.0
  %2829 = vmatprep.subr.mxu0 0.0
  %2830 = vmatpush1.msra.mxu0 0.0
  %2831 = vmatprep.subr.mxu0 0.0
  %2832 = vmatpush1.msra.mxu0 0.0
  %2833 = vmatprep.subr.mxu0 0.0
  %2834 = vmatpush1.msra.mxu0 0.0
  %2835 = vmatprep.subr.mxu0 0.0
  %2836 = vmatpush1.msra.mxu0 0.0
  %2837 = vmatprep.subr.mxu0 0.0
  %2838 = vmatpush1.msra.mxu0 0.0
  %2839 = vmatprep.mubr.f32.mxu0 0.0
  %2840 = vmatmul.mubr.f32.gmra.mrb[0].mxu0 %v2702
  %v2841 = vpop.f32.mrb[0].mxu0
  %v2842 = vadd.f32 %v2692, %v2841
  %v2843 = vpop.f32.mrb[0].mxu0
  %v2844 = vadd.f32 %v2696, %v2843
  %2845 = vdwg.mxu0
  %v2846 = vmul.f32 %v2771, 0.5
  %v2847 = vmul.f32 %v2773, 0.5
  %v2848 = vmul.f32 %v2842, 0.5
  %v2849 = vmul.f32 %v2844, 0.5
  %v2850 = vmul.f32 %v2771, 0.70710677
  %v2851 = vmul.f32 %v2773, 0.70710677
  %v2852 = vmul.f32 %v2842, 0.70710677
  %v2853 = vmul.f32 %v2844, 0.70710677
  %v2854 = verf.f32.pop %v2850
  %v2855 = verf.f32.pop %v2851
  %v2856 = verf.f32.pop %v2852
  %v2857 = verf.f32.pop %v2853
  %v2858 = vadd.f32 %v2854, 1.0
  %v2859 = vadd.f32 %v2855, 1.0
  %v2860 = vadd.f32 %v2856, 1.0
  %v2861 = vadd.f32 %v2857, 1.0
  %v2862 = vmul.f32 %v2846, %v2858
  %v2863 = vmul.f32 %v2847, %v2859
  %v2864 = vmul.f32 %v2848, %v2860
  %v2865 = vmul.f32 %v2849, %v2861
  %v2866 = vld [vmem:[%s23] sm:$0xff]
  %v2867 = vld [vmem:[%s23 + $0x8] sm:$0xff]
  %v2868 = vld [vmem:[%s23 + $0x10] sm:$0xff]
  %v2869 = vld [vmem:[%s23 + $0x18] sm:$0xff]
  %v2870 = vld [vmem:[%s23 + $0x20] sm:$0xff]
  %v2871 = vld [vmem:[%s23 + $0x28] sm:$0xff]
  %v2872 = vld [vmem:[%s23 + $0x30] sm:$0xff]
  %v2873 = vld [vmem:[%s23 + $0x38] sm:$0xff]
  %v2874 = vld [vmem:[%s23 + $0x40] sm:$0xff]
  %v2875 = vld [vmem:[%s23 + $0x48] sm:$0xff]
  %v2876 = vld [vmem:[%s23 + $0x50] sm:$0xff]
  %v2877 = vld [vmem:[%s23 + $0x58] sm:$0xff]
  %v2878 = vld [vmem:[%s23 + $0x60] sm:$0xff]
  %v2879 = vld [vmem:[%s23 + $0x68] sm:$0xff]
  %v2880 = vld [vmem:[%s23 + $0x70] sm:$0xff]
  %v2881 = vld [vmem:[%s23 + $0x78] sm:$0xff]
  %v2882 = vld [vmem:[%s23 + $0x80] sm:$0xff]
  %v2883 = vld [vmem:[%s23 + $0x88] sm:$0xff]
  %v2884 = vld [vmem:[%s23 + $0x90] sm:$0xff]
  %v2885 = vld [vmem:[%s23 + $0x98] sm:$0xff]
  %v2886 = vld [vmem:[%s23 + $0xa0] sm:$0xff]
  %v2887 = vld [vmem:[%s23 + $0xa8] sm:$0xff]
  %v2888 = vld [vmem:[%s23 + $0xb0] sm:$0xff]
  %v2889 = vld [vmem:[%s23 + $0xb8] sm:$0xff]
  %v2890 = vld [vmem:[%s23 + $0xc0] sm:$0xff]
  %v2891 = vld [vmem:[%s23 + $0xc8] sm:$0xff]
  %v2892 = vld [vmem:[%s23 + $0xd0] sm:$0xff]
  %v2893 = vld [vmem:[%s23 + $0xd8] sm:$0xff]
  %v2894 = vld [vmem:[%s23 + $0xe0] sm:$0xff]
  %v2895 = vld [vmem:[%s23 + $0xe8] sm:$0xff]
  %v2896 = vld [vmem:[%s23 + $0xf0] sm:$0xff]
  %v2897 = vld [vmem:[%s23 + $0xf8] sm:$0xff]
  %v2898 = vld [vmem:[%s23 + $0x100] sm:$0xff]
  %v2899 = vld [vmem:[%s23 + $0x108] sm:$0xff]
  %v2900 = vld [vmem:[%s23 + $0x110] sm:$0xff]
  %v2901 = vld [vmem:[%s23 + $0x118] sm:$0xff]
  %v2902 = vld [vmem:[%s23 + $0x120] sm:$0xff]
  %v2903 = vld [vmem:[%s23 + $0x128] sm:$0xff]
  %v2904 = vld [vmem:[%s23 + $0x130] sm:$0xff]
  %v2905 = vld [vmem:[%s23 + $0x138] sm:$0xff]
  %v2906 = vld [vmem:[%s23 + $0x140] sm:$0xff]
  %v2907 = vld [vmem:[%s23 + $0x148] sm:$0xff]
  %v2908 = vld [vmem:[%s23 + $0x150] sm:$0xff]
  %v2909 = vld [vmem:[%s23 + $0x158] sm:$0xff]
  %v2910 = vld [vmem:[%s23 + $0x160] sm:$0xff]
  %v2911 = vld [vmem:[%s23 + $0x168] sm:$0xff]
  %v2912 = vld [vmem:[%s23 + $0x170] sm:$0xff]
  %v2913 = vld [vmem:[%s23 + $0x178] sm:$0xff]
  %v2914 = vld [vmem:[%s23 + $0x180] sm:$0xff]
  %v2915 = vld [vmem:[%s23 + $0x188] sm:$0xff]
  %v2916 = vld [vmem:[%s23 + $0x190] sm:$0xff]
  %v2917 = vld [vmem:[%s23 + $0x198] sm:$0xff]
  %v2918 = vld [vmem:[%s23 + $0x1a0] sm:$0xff]
  %v2919 = vld [vmem:[%s23 + $0x1a8] sm:$0xff]
  %v2920 = vld [vmem:[%s23 + $0x1b0] sm:$0xff]
  %v2921 = vld [vmem:[%s23 + $0x1b8] sm:$0xff]
  %v2922 = vld [vmem:[%s23 + $0x1c0] sm:$0xff]
  %v2923 = vld [vmem:[%s23 + $0x1c8] sm:$0xff]
  %v2924 = vld [vmem:[%s23 + $0x1d0] sm:$0xff]
  %v2925 = vld [vmem:[%s23 + $0x1d8] sm:$0xff]
  %v2926 = vld [vmem:[%s23 + $0x1e0] sm:$0xff]
  %v2927 = vld [vmem:[%s23 + $0x1e8] sm:$0xff]
  %v2928 = vld [vmem:[%s23 + $0x1f0] sm:$0xff]
  %v2929 = vld [vmem:[%s23 + $0x1f8] sm:$0xff]
  %v2930 = vld [vmem:[%s24] sm:$0x1]
  %v2932 = vlaneseq
  %v2933 = vshrl.u32 %v2932, 7
  %v2934 = vsub.s32 0, %v2933
  %v2935 = vrot.slane %v2930, %v2934
  %2937 = vmatprep.subr.mxu0 0.0
  %2938 = vmatpush1.msra.mxu0 %v2866
  %2939 = vmatprep.subr.mxu0 0.0
  %2940 = vmatpush1.msra.mxu0 %v2867
  %2941 = vmatprep.subr.mxu0 0.0
  %2942 = vmatpush1.msra.mxu0 %v2868
  %2943 = vmatprep.subr.mxu0 0.0
  %2944 = vmatpush1.msra.mxu0 %v2869
  %2945 = vmatprep.subr.mxu0 0.0
  %2946 = vmatpush1.msra.mxu0 %v2870
  %2947 = vmatprep.subr.mxu0 0.0
  %2948 = vmatpush1.msra.mxu0 %v2871
  %2949 = vmatprep.subr.mxu0 0.0
  %2950 = vmatpush1.msra.mxu0 %v2872
  %2951 = vmatprep.subr.mxu0 0.0
  %2952 = vmatpush1.msra.mxu0 %v2873
  %2953 = vmatprep.subr.mxu0 0.0
  %2954 = vmatpush1.msra.mxu0 %v2874
  %2955 = vmatprep.subr.mxu0 0.0
  %2956 = vmatpush1.msra.mxu0 %v2875
  %2957 = vmatprep.subr.mxu0 0.0
  %2958 = vmatpush1.msra.mxu0 %v2876
  %2959 = vmatprep.subr.mxu0 0.0
  %2960 = vmatpush1.msra.mxu0 %v2877
  %2961 = vmatprep.subr.mxu0 0.0
  %2962 = vmatpush1.msra.mxu0 %v2878
  %2963 = vmatprep.subr.mxu0 0.0
  %2964 = vmatpush1.msra.mxu0 %v2879
  %2965 = vmatprep.subr.mxu0 0.0
  %2966 = vmatpush1.msra.mxu0 %v2880
  %2967 = vmatprep.subr.mxu0 0.0
  %2968 = vmatpush1.msra.mxu0 %v2881
  %2969 = vmatprep.subr.mxu0 0.0
  %2970 = vmatpush1.msra.mxu0 %v2882
  %2971 = vmatprep.subr.mxu0 0.0
  %2972 = vmatpush1.msra.mxu0 %v2883
  %2973 = vmatprep.subr.mxu0 0.0
  %2974 = vmatpush1.msra.mxu0 %v2884
  %2975 = vmatprep.subr.mxu0 0.0
  %2976 = vmatpush1.msra.mxu0 %v2885
  %2977 = vmatprep.subr.mxu0 0.0
  %2978 = vmatpush1.msra.mxu0 %v2886
  %2979 = vmatprep.subr.mxu0 0.0
  %2980 = vmatpush1.msra.mxu0 %v2887
  %2981 = vmatprep.subr.mxu0 0.0
  %2982 = vmatpush1.msra.mxu0 %v2888
  %2983 = vmatprep.subr.mxu0 0.0
  %2984 = vmatpush1.msra.mxu0 %v2889
  %2985 = vmatprep.subr.mxu0 0.0
  %2986 = vmatpush1.msra.mxu0 %v2890
  %2987 = vmatprep.subr.mxu0 0.0
  %2988 = vmatpush1.msra.mxu0 %v2891
  %2989 = vmatprep.subr.mxu0 0.0
  %2990 = vmatpush1.msra.mxu0 %v2892
  %2991 = vmatprep.subr.mxu0 0.0
  %2992 = vmatpush1.msra.mxu0 %v2893
  %2993 = vmatprep.subr.mxu0 0.0
  %2994 = vmatpush1.msra.mxu0 %v2894
  %2995 = vmatprep.subr.mxu0 0.0
  %2996 = vmatpush1.msra.mxu0 %v2895
  %2997 = vmatprep.subr.mxu0 0.0
  %2998 = vmatpush1.msra.mxu0 %v2896
  %2999 = vmatprep.subr.mxu0 0.0
  %3000 = vmatpush1.msra.mxu0 %v2897
  %3001 = vmatprep.mubr.f32.mxu0 %v2863
  %3002 = vmatmul.mubr.f32.gmra.mrb[0].mxu0 %v2862
  %v3003 = vpop.f32.mrb[0].mxu0
  %v3004 = vadd.f32 %v2935, %v3003
  %v3005 = vpop.f32.mrb[0].mxu0
  %3006 = vdwg.mxu0
  %3007 = vmatprep.subr.mxu0 0.0
  %3008 = vmatpush1.msra.mxu0 %v2898
  %3009 = vmatprep.subr.mxu0 0.0
  %3010 = vmatpush1.msra.mxu0 %v2899
  %3011 = vmatprep.subr.mxu0 0.0
  %3012 = vmatpush1.msra.mxu0 %v2900
  %3013 = vmatprep.subr.mxu0 0.0
  %3014 = vmatpush1.msra.mxu0 %v2901
  %3015 = vmatprep.subr.mxu0 0.0
  %3016 = vmatpush1.msra.mxu0 %v2902
  %3017 = vmatprep.subr.mxu0 0.0
  %3018 = vmatpush1.msra.mxu0 %v2903
  %3019 = vmatprep.subr.mxu0 0.0
  %3020 = vmatpush1.msra.mxu0 %v2904
  %3021 = vmatprep.subr.mxu0 0.0
  %3022 = vmatpush1.msra.mxu0 %v2905
  %3023 = vmatprep.subr.mxu0 0.0
  %3024 = vmatpush1.msra.mxu0 %v2906
  %3025 = vmatprep.subr.mxu0 0.0
  %3026 = vmatpush1.msra.mxu0 %v2907
  %3027 = vmatprep.subr.mxu0 0.0
  %3028 = vmatpush1.msra.mxu0 %v2908
  %3029 = vmatprep.subr.mxu0 0.0
  %3030 = vmatpush1.msra.mxu0 %v2909
  %3031 = vmatprep.subr.mxu0 0.0
  %3032 = vmatpush1.msra.mxu0 %v2910
  %3033 = vmatprep.subr.mxu0 0.0
  %3034 = vmatpush1.msra.mxu0 %v2911
  %3035 = vmatprep.subr.mxu0 0.0
  %3036 = vmatpush1.msra.mxu0 %v2912
  %3037 = vmatprep.subr.mxu0 0.0
  %3038 = vmatpush1.msra.mxu0 %v2913
  %3039 = vmatprep.subr.mxu0 0.0
  %3040 = vmatpush1.msra.mxu0 %v2914
  %3041 = vmatprep.subr.mxu0 0.0
  %3042 = vmatpush1.msra.mxu0 %v2915
  %3043 = vmatprep.subr.mxu0 0.0
  %3044 = vmatpush1.msra.mxu0 %v2916
  %3045 = vmatprep.subr.mxu0 0.0
  %3046 = vmatpush1.msra.mxu0 %v2917
  %3047 = vmatprep.subr.mxu0 0.0
  %3048 = vmatpush1.msra.mxu0 %v2918
  %3049 = vmatprep.subr.mxu0 0.0
  %3050 = vmatpush1.msra.mxu0 %v2919
  %3051 = vmatprep.subr.mxu0 0.0
  %3052 = vmatpush1.msra.mxu0 %v2920
  %3053 = vmatprep.subr.mxu0 0.0
  %3054 = vmatpush1.msra.mxu0 %v2921
  %3055 = vmatprep.subr.mxu0 0.0
  %3056 = vmatpush1.msra.mxu0 %v2922
  %3057 = vmatprep.subr.mxu0 0.0
  %3058 = vmatpush1.msra.mxu0 %v2923
  %3059 = vmatprep.subr.mxu0 0.0
  %3060 = vmatpush1.msra.mxu0 %v2924
  %3061 = vmatprep.subr.mxu0 0.0
  %3062 = vmatpush1.msra.mxu0 %v2925
  %3063 = vmatprep.subr.mxu0 0.0
  %3064 = vmatpush1.msra.mxu0 %v2926
  %3065 = vmatprep.subr.mxu0 0.0
  %3066 = vmatpush1.msra.mxu0 %v2927
  %3067 = vmatprep.subr.mxu0 0.0
  %3068 = vmatpush1.msra.mxu0 %v2928
  %3069 = vmatprep.subr.mxu0 0.0
  %3070 = vmatpush1.msra.mxu0 %v2929
  %3071 = vmatprep.mubr.f32.mxu0 %v2865
  %3072 = vmatmul.mubr.f32.gmra.mrb[0].mxu0 %v2864
  %v3073 = vpop.f32.mrb[0].mxu0
  %v3074 = vadd.f32 %v3004, %v3073
  %v3075 = vpop.f32.mrb[0].mxu0
  %3076 = vdwg.mxu0
  %vm3077 = vcmask 50176
  %3078 = vst.msk [vmem:[%s25] sm:$0x3] %vm3077, %v3074
  // Predicated region
  $region102: #{model_forward.1} parent=0 // pred_check
    _
  $region103: #{model_forward.1} parent=0 // pred_check_branch
    %3080 = sbr.rel (0) target = $region105
  $region104: #{model_forward.1} parent=0 // pred_region
    _
  $region105: #{model_forward.1} parent=0 // pred_fallthru
    _
  // Predicated region
  $region106: #{model_forward.1} parent=0 // pred_check
    _
  $region107: #{model_forward.1} parent=0 // pred_check_branch
    %3082 = sbr.rel (0) target = $region109
  $region108: #{model_forward.1} parent=0 // pred_region
    _
  $region109: #{model_forward.1} parent=0 // pred_fallthru
    _

</llo_original>
